<compile_context>
chip_gen: v5e
topology: v5e:2x2
jax: 0.10.0
libtpu: 0.0.40
codegen_flags: <defaults>
</compile_context>

<pallas_src>
import functools

import numpy as np

import jax
import jax.numpy as jnp
from jax import lax
from jax.experimental import pallas as pl
from jax.experimental.pallas import tpu as pltpu


def _round_up(x, m):
    return (x + m - 1) // m * m


def _largest_divisor(n, cap, multiple_of=1):
    """Largest divisor of n that is a multiple of `multiple_of` and <= cap (or None)."""
    best = None
    d = multiple_of
    top = min(n, cap)
    while d <= top:
        if n % d == 0:
            best = d
        d += multiple_of
    return best


def _repcpe_kernel(x_ref, w_ref, b_ref, m_ref, o_ref, xw_sc, wm_sc, *,
                   HW, LP, NB, CRB, KK, deltas):
    """Depthwise conv + residual on the flattened (channels, H*W) layout.

    x_ref : (NB, CRB, HW)      input block (channels on sublanes, H*W on lanes)
    w_ref : (CRB, KK)          f32 per-channel taps (residual folded into centre)
    b_ref : (CRB, 1)           f32 bias
    m_ref : (KK, HW)           f32 per-tap validity masks over the flat H*W axis
    o_ref : (NB, CRB, HW)
    xw_sc : (CRB, LP+HW+LP)    f32 staging row with zeroed halos (defined OOB reads)
    wm_sc : (KK, CRB, HW)      f32 masked per-channel taps (hoisted out of batch loop)
    """
    f32 = jnp.float32

    # Refresh the masked taps / halo only when the channel tile may have changed.
    # (Batch axis is "arbitrary", so every core chunk starts at program_id(1) == 0.)
    @pl.when(pl.program_id(1) == 0)
    def _():
        xw_sc[:, :LP] = jnp.zeros((CRB, LP), f32)
        xw_sc[:, LP + HW:] = jnp.zeros((CRB, LP), f32)
        for k in range(KK):
            w_col = w_ref[:, k:k + 1]                      # (CRB, 1)
            m_row = m_ref[k:k + 1, :]                      # (1, HW)
            wm_sc[k] = jnp.broadcast_to(w_col, (CRB, HW)) * m_row

    # Bias broadcast hoisted out of the batch loop (once per grid step).
    bias_bc = jnp.broadcast_to(b_ref[...], (CRB, HW))      # (CRB, HW) f32

    def body(b, carry):
        # Stage this batch element (single f32 convert) between the zeroed halos.
        xw_sc[:, LP:LP + HW] = x_ref[b].astype(f32)        # lane-aligned store
        xw = xw_sc[...]                                    # small value (few vregs)
        acc = bias_bc
        for k in range(KK):                                # KH*KW taps, unrolled
            s = LP + deltas[k]                             # static lane offset
            acc = acc + xw[:, s:s + HW] * wm_sc[k]         # masked-tap MAC (f32)
        o_ref[b] = acc.astype(o_ref.dtype)
        return carry

    if NB == 1:
        body(0, 0)
    else:
        lax.fori_loop(0, NB, body, 0)


@functools.partial(jax.jit, static_argnames=("spatial_shape",))
def repcpe_forward(x_nchw, weight, bias, spatial_shape=(7, 7)):
    """RepCPE forward (non-reparameterized branch): depthwise conv PE + residual.

    x_nchw : (N, C, H, W)    PyTorch NCHW input
    weight : (C, 1, KH, KW)  depthwise conv weight (OIHW, I = C/groups = 1)
    bias   : (C,)
    """
    KH, KW = spatial_shape
    assert KH % 2 == 1 and KW % 2 == 1, "module's same-padding assumes an odd kernel"
    pad_h, pad_w = KH // 2, KW // 2
    N, C, H, W = x_nchw.shape
    HW = H * W
    KK = KH * KW
    dtype = x_nchw.dtype
    isz = jnp.dtype(dtype).itemsize

    # Depthwise taps as (C, KH*KW) in f32; residual folded into the centre tap
    # (reparam identity: conv(x, w + delta_center) == conv(x, w) + x), fold in f32.
    w_flat = weight.reshape(C, KK).astype(jnp.float32)
    center = pad_h * KW + pad_w
    w_flat = w_flat.at[:, center].add(1.0)
    b_col = bias.reshape(C, 1).astype(jnp.float32)

    # Per-tap flat-index shifts and validity masks over the flattened H*W axis.
    # A shifted read x[l + di*W + dj] is the correct (h+di, w+dj) sample exactly
    # when it is in-image; everywhere else the mask (folded into the tap) is 0.
    hh, ww = np.divmod(np.arange(HW), W)
    masks = np.zeros((KK, HW), np.float32)
    deltas = []
    for i in range(KH):
        for j in range(KW):
            di, dj = i - pad_h, j - pad_w
            deltas.append(di * W + dj)
            valid = ((hh + di >= 0) & (hh + di < H) &
                     (ww + dj >= 0) & (ww + dj < W))
            masks[i * KW + j] = valid.astype(np.float32)
    masks = jnp.asarray(masks)
    deltas = tuple(deltas)

    # Tile sizes: CRB channels on sublanes (keeps acc + staged row well inside the
    # 64-vreg file), NB batch elements per grid step.  Keep >=2 grid steps when
    # possible so both v7x TensorCores get work.
    if C % 8 == 0:
        CRB = _largest_divisor(C, max(8, 4096 // max(HW, 1)), multiple_of=8) or 8
    else:
        CRB = C                                   # full-extent block for odd C
    NB = _largest_divisor(N, max(1, (1 << 20) // (CRB * HW * isz))) or 1
    if (C // CRB) * (N // NB) < 2 and N >= 2:
        NB = _largest_divisor(N, N // 2) or 1
    # TODO(synk): awkward (prime) N degrades NB to 1; a cdiv grid + masked tail
    #             block would keep per-step work up on v6e.

    P = pad_h * W + pad_w                          # max |flat shift|
    LP = _round_up(max(P, 1), 128)                 # lane-aligned halo width

    x_flat = x_nchw.reshape(N, C, HW)              # free contiguous reshape (no HBM pass)

    kern = functools.partial(_repcpe_kernel, HW=HW, LP=LP, NB=NB, CRB=CRB,
                             KK=KK, deltas=deltas)
    out_flat = pl.pallas_call(
        kern,
        out_shape=jax.ShapeDtypeStruct((N, C, HW), dtype),
        grid_spec=pltpu.PrefetchScalarGridSpec(
            num_scalar_prefetch=0,
            grid=(C // CRB, N // NB),              # channel tiles outer, batch inner
            in_specs=[
                pl.BlockSpec((NB, CRB, HW), lambda c, n: (n, c, 0)),
                pl.BlockSpec((CRB, KK), lambda c, n: (c, 0)),
                pl.BlockSpec((CRB, 1), lambda c, n: (c, 0)),
                pl.BlockSpec((KK, HW), lambda c, n: (0, 0)),
            ],
            out_specs=pl.BlockSpec((NB, CRB, HW), lambda c, n: (n, c, 0)),
            scratch_shapes=[
                pltpu.VMEM((CRB, LP + HW + LP), jnp.float32),   # staged row + halos
                pltpu.VMEM((KK, CRB, HW), jnp.float32),         # masked per-channel taps
            ],
        ),
        compiler_params=pltpu.CompilerParams(
            # channel axis parallel (feeds both v7x TCs); batch axis arbitrary so a
            # core chunk always starts at program_id(1)==0 (tap-scratch refresh guard).
            dimension_semantics=("parallel", "arbitrary")),
    )(x_flat, w_flat, b_col, masks)

    return out_flat.reshape(N, C, H, W)            # free reshape back to NCHW


def _reference(x_nchw, weight, bias, spatial_shape):
    """Pure-JAX reference: grouped (depthwise) conv + bias + residual."""
    KH, KW = spatial_shape
    pad_h, pad_w = KH // 2, KW // 2
    C = x_nchw.shape[1]
    y = lax.conv_general_dilated(
        x_nchw.astype(jnp.float32), weight.astype(jnp.float32),
        window_strides=(1, 1), padding=[(pad_h, pad_h), (pad_w, pad_w)],
        feature_group_count=C,
        dimension_numbers=("NCHW", "OIHW", "NCHW"))
    return (y + bias.astype(jnp.float32)[None, :, None, None]
            + x_nchw.astype(jnp.float32)).astype(x_nchw.dtype)


if __name__ == "__main__":
    def run_case(key, N, C, H, W, spatial_shape, dtype, atol, rtol):
        KH, KW = spatial_shape
        kx, kw, kb = jax.random.split(key, 3)
        x = jax.random.normal(kx, (N, C, H, W), dtype=jnp.float32).astype(dtype)
        weight = (jax.random.normal(kw, (C, 1, KH, KW), dtype=jnp.float32) * 0.05
                  ).astype(dtype)
        bias = (jax.random.normal(kb, (C,), dtype=jnp.float32) * 0.05).astype(dtype)
        out = jax.block_until_ready(
            repcpe_forward(x, weight, bias, spatial_shape=spatial_shape))
        ref = _reference(x, weight, bias, spatial_shape)
        assert out.shape == (N, C, H, W)
        assert out.dtype == dtype
        assert jnp.allclose(out.astype(jnp.float32), ref.astype(jnp.float32),
                            atol=atol, rtol=rtol), f"mismatch vs reference ({dtype})"

    key = jax.random.PRNGKey(0)
    k1, k2, k3 = jax.random.split(key, 3)
    # in_channels == embed_dim == 32, 16x16 map (lane-dense: H*W = 256)
    run_case(k1, 2, 32, 16, 16, (7, 7), jnp.float32, 1e-4, 1e-4)
    # larger channel count, small 8x8 map (channel-tiled parallel grid)
    run_case(k2, 1, 256, 8, 8, (7, 7), jnp.float32, 1e-4, 1e-4)
    # bf16 activations/weights (kernel accumulates in f32)
    run_case(k3, 2, 32, 16, 16, (7, 7), jnp.bfloat16, 5e-2, 2e-2)

    print("KERNEL_OK")
</pallas_src>

<mosaic_0001>
module attributes {stable_mosaic.version = 11 : i64} {
  func.func @_repcpe_kernel(%arg0: i32, %arg1: i32, %arg2: memref<2x16x256xf32, #tpu.memory_space<vmem>>, %arg3: memref<16x49xf32, #tpu.memory_space<vmem>>, %arg4: memref<16x1xf32, #tpu.memory_space<vmem>>, %arg5: memref<49x256xf32, #tpu.memory_space<vmem>>, %arg6: memref<2x16x256xf32, #tpu.memory_space<vmem>>, %arg7: memref<16x512xf32, #tpu.memory_space<vmem>>, %arg8: memref<49x16x256xf32, #tpu.memory_space<vmem>>) attributes {dimension_semantics = [#tpu.dimension_semantics<parallel>, #tpu.dimension_semantics<arbitrary>], iteration_bounds = array<i64: 2, 1>, scalar_prefetch = 0 : i64, scratch_operands = 2 : i64, tpu.core_type = #tpu.core_type<tc>, window_params = [{transform_indices = @transform_0, window_bounds = array<i64: 2, 16, 256>}, {transform_indices = @transform_1, window_bounds = array<i64: 16, 49>}, {transform_indices = @transform_2, window_bounds = array<i64: 16, 1>}, {pipeline_mode = #tpu.pipeline_mode<synchronous>, transform_indices = @transform_3, window_bounds = array<i64: 49, 256>}, {transform_indices = @transform_4, window_bounds = array<i64: 2, 16, 256>}]} {
    %c0_i32 = arith.constant 0 : i32
    %0 = arith.cmpi eq, %arg1, %c0_i32 : i32
    %1 = arith.extui %0 : i1 to i32
    %c0_i32_0 = arith.constant 0 : i32
    %2 = arith.cmpi ne, %1, %c0_i32_0 : i32
    scf.if %2 {
      %cst = arith.constant 0.000000e+00 : f32
      %7 = vector.broadcast %cst : f32 to vector<16x128xf32>
      %c0_4 = arith.constant 0 : index
      %c0_5 = arith.constant 0 : index
      %8 = vector.load %arg7[%c0_4, %c0_5] : memref<16x512xf32, #tpu.memory_space<vmem>>, vector<16x128xf32>
      tpu.vector_store %arg7[%c0_4, %c0_5], %7 {strides = array<i32>} : memref<16x512xf32, #tpu.memory_space<vmem>>, vector<16x128xf32>,
      %cst_6 = arith.constant 0.000000e+00 : f32
      %9 = vector.broadcast %cst_6 : f32 to vector<16x128xf32>
      %c0_7 = arith.constant 0 : index
      %c384 = arith.constant 384 : index
      %10 = vector.load %arg7[%c0_7, %c384] : memref<16x512xf32, #tpu.memory_space<vmem>>, vector<16x128xf32>
      tpu.vector_store %arg7[%c0_7, %c384], %9 {strides = array<i32>} : memref<16x512xf32, #tpu.memory_space<vmem>>, vector<16x128xf32>,
      %c0_8 = arith.constant 0 : index
      %c0_9 = arith.constant 0 : index
      %11 = vector.load %arg3[%c0_8, %c0_9] : memref<16x49xf32, #tpu.memory_space<vmem>>, vector<16x1xf32>
      %c0_10 = arith.constant 0 : index
      %c0_11 = arith.constant 0 : index
      %12 = vector.load %arg5[%c0_10, %c0_11] : memref<49x256xf32, #tpu.memory_space<vmem>>, vector<1x256xf32>
      %13 = vector.shape_cast %11 : vector<16x1xf32> to vector<16x1xf32>
      %14 = vector.broadcast %13 : vector<16x1xf32> to vector<16x256xf32>
      %15 = vector.broadcast %12 : vector<1x256xf32> to vector<16x256xf32>
      %16 = arith.mulf %14, %15 : vector<16x256xf32>
      %c0_12 = arith.constant 0 : index
      %c0_13 = arith.constant 0 : index
      %c0_14 = arith.constant 0 : index
      %17 = vector.load %arg8[%c0_12, %c0_13, %c0_14] : memref<49x16x256xf32, #tpu.memory_space<vmem>>, vector<1x16x256xf32>
      %18 = vector.shape_cast %17 : vector<1x16x256xf32> to vector<16x256xf32>
      %19 = vector.shape_cast %16 : vector<16x256xf32> to vector<1x16x256xf32>
      tpu.vector_store %arg8[%c0_12, %c0_13, %c0_14], %19 {strides = array<i32>} : memref<49x16x256xf32, #tpu.memory_space<vmem>>, vector<1x16x256xf32>,
      %c0_15 = arith.constant 0 : index
      %c1 = arith.constant 1 : index
      %20 = vector.load %arg3[%c0_15, %c1] : memref<16x49xf32, #tpu.memory_space<vmem>>, vector<16x1xf32>
      %c1_16 = arith.constant 1 : index
      %c0_17 = arith.constant 0 : index
      %21 = vector.load %arg5[%c1_16, %c0_17] : memref<49x256xf32, #tpu.memory_space<vmem>>, vector<1x256xf32>
      %22 = vector.shape_cast %20 : vector<16x1xf32> to vector<16x1xf32>
      %23 = vector.broadcast %22 : vector<16x1xf32> to vector<16x256xf32>
      %24 = vector.broadcast %21 : vector<1x256xf32> to vector<16x256xf32>
      %25 = arith.mulf %23, %24 : vector<16x256xf32>
      %c1_18 = arith.constant 1 : index
      %c0_19 = arith.constant 0 : index
      %c0_20 = arith.constant 0 : index
      %26 = vector.load %arg8[%c1_18, %c0_19, %c0_20] : memref<49x16x256xf32, #tpu.memory_space<vmem>>, vector<1x16x256xf32>
      %27 = vector.shape_cast %26 : vector<1x16x256xf32> to vector<16x256xf32>
      %28 = vector.shape_cast %25 : vector<16x256xf32> to vector<1x16x256xf32>
      tpu.vector_store %arg8[%c1_18, %c0_19, %c0_20], %28 {strides = array<i32>} : memref<49x16x256xf32, #tpu.memory_space<vmem>>, vector<1x16x256xf32>,
      %c0_21 = arith.constant 0 : index
      %c2 = arith.constant 2 : index
      %29 = vector.load %arg3[%c0_21, %c2] : memref<16x49xf32, #tpu.memory_space<vmem>>, vector<16x1xf32>
      %c2_22 = arith.constant 2 : index
      %c0_23 = arith.constant 0 : index
      %30 = vector.load %arg5[%c2_22, %c0_23] : memref<49x256xf32, #tpu.memory_space<vmem>>, vector<1x256xf32>
      %31 = vector.shape_cast %29 : vector<16x1xf32> to vector<16x1xf32>
      %32 = vector.broadcast %31 : vector<16x1xf32> to vector<16x256xf32>
      %33 = vector.broadcast %30 : vector<1x256xf32> to vector<16x256xf32>
      %34 = arith.mulf %32, %33 : vector<16x256xf32>
      %c2_24 = arith.constant 2 : index
      %c0_25 = arith.constant 0 : index
      %c0_26 = arith.constant 0 : index
      %35 = vector.load %arg8[%c2_24, %c0_25, %c0_26] : memref<49x16x256xf32, #tpu.memory_space<vmem>>, vector<1x16x256xf32>
      %36 = vector.shape_cast %35 : vector<1x16x256xf32> to vector<16x256xf32>
      %37 = vector.shape_cast %34 : vector<16x256xf32> to vector<1x16x256xf32>
      tpu.vector_store %arg8[%c2_24, %c0_25, %c0_26], %37 {strides = array<i32>} : memref<49x16x256xf32, #tpu.memory_space<vmem>>, vector<1x16x256xf32>,
      %c0_27 = arith.constant 0 : index
      %c3 = arith.constant 3 : index
      %38 = vector.load %arg3[%c0_27, %c3] : memref<16x49xf32, #tpu.memory_space<vmem>>, vector<16x1xf32>
      %c3_28 = arith.constant 3 : index
      %c0_29 = arith.constant 0 : index
      %39 = vector.load %arg5[%c3_28, %c0_29] : memref<49x256xf32, #tpu.memory_space<vmem>>, vector<1x256xf32>
      %40 = vector.shape_cast %38 : vector<16x1xf32> to vector<16x1xf32>
      %41 = vector.broadcast %40 : vector<16x1xf32> to vector<16x256xf32>
      %42 = vector.broadcast %39 : vector<1x256xf32> to vector<16x256xf32>
      %43 = arith.mulf %41, %42 : vector<16x256xf32>
      %c3_30 = arith.constant 3 : index
      %c0_31 = arith.constant 0 : index
      %c0_32 = arith.constant 0 : index
      %44 = vector.load %arg8[%c3_30, %c0_31, %c0_32] : memref<49x16x256xf32, #tpu.memory_space<vmem>>, vector<1x16x256xf32>
      %45 = vector.shape_cast %44 : vector<1x16x256xf32> to vector<16x256xf32>
      %46 = vector.shape_cast %43 : vector<16x256xf32> to vector<1x16x256xf32>
      tpu.vector_store %arg8[%c3_30, %c0_31, %c0_32], %46 {strides = array<i32>} : memref<49x16x256xf32, #tpu.memory_space<vmem>>, vector<1x16x256xf32>,
      %c0_33 = arith.constant 0 : index
      %c4 = arith.constant 4 : index
      %47 = vector.load %arg3[%c0_33, %c4] : memref<16x49xf32, #tpu.memory_space<vmem>>, vector<16x1xf32>
      %c4_34 = arith.constant 4 : index
      %c0_35 = arith.constant 0 : index
      %48 = vector.load %arg5[%c4_34, %c0_35] : memref<49x256xf32, #tpu.memory_space<vmem>>, vector<1x256xf32>
      %49 = vector.shape_cast %47 : vector<16x1xf32> to vector<16x1xf32>
      %50 = vector.broadcast %49 : vector<16x1xf32> to vector<16x256xf32>
      %51 = vector.broadcast %48 : vector<1x256xf32> to vector<16x256xf32>
      %52 = arith.mulf %50, %51 : vector<16x256xf32>
      %c4_36 = arith.constant 4 : index
      %c0_37 = arith.constant 0 : index
      %c0_38 = arith.constant 0 : index
      %53 = vector.load %arg8[%c4_36, %c0_37, %c0_38] : memref<49x16x256xf32, #tpu.memory_space<vmem>>, vector<1x16x256xf32>
      %54 = vector.shape_cast %53 : vector<1x16x256xf32> to vector<16x256xf32>
      %55 = vector.shape_cast %52 : vector<16x256xf32> to vector<1x16x256xf32>
      tpu.vector_store %arg8[%c4_36, %c0_37, %c0_38], %55 {strides = array<i32>} : memref<49x16x256xf32, #tpu.memory_space<vmem>>, vector<1x16x256xf32>,
      %c0_39 = arith.constant 0 : index
      %c5 = arith.constant 5 : index
      %56 = vector.load %arg3[%c0_39, %c5] : memref<16x49xf32, #tpu.memory_space<vmem>>, vector<16x1xf32>
      %c5_40 = arith.constant 5 : index
      %c0_41 = arith.constant 0 : index
      %57 = vector.load %arg5[%c5_40, %c0_41] : memref<49x256xf32, #tpu.memory_space<vmem>>, vector<1x256xf32>
      %58 = vector.shape_cast %56 : vector<16x1xf32> to vector<16x1xf32>
      %59 = vector.broadcast %58 : vector<16x1xf32> to vector<16x256xf32>
      %60 = vector.broadcast %57 : vector<1x256xf32> to vector<16x256xf32>
      %61 = arith.mulf %59, %60 : vector<16x256xf32>
      %c5_42 = arith.constant 5 : index
      %c0_43 = arith.constant 0 : index
      %c0_44 = arith.constant 0 : index
      %62 = vector.load %arg8[%c5_42, %c0_43, %c0_44] : memref<49x16x256xf32, #tpu.memory_space<vmem>>, vector<1x16x256xf32>
      %63 = vector.shape_cast %62 : vector<1x16x256xf32> to vector<16x256xf32>
      %64 = vector.shape_cast %61 : vector<16x256xf32> to vector<1x16x256xf32>
      tpu.vector_store %arg8[%c5_42, %c0_43, %c0_44], %64 {strides = array<i32>} : memref<49x16x256xf32, #tpu.memory_space<vmem>>, vector<1x16x256xf32>,
      %c0_45 = arith.constant 0 : index
      %c6 = arith.constant 6 : index
      %65 = vector.load %arg3[%c0_45, %c6] : memref<16x49xf32, #tpu.memory_space<vmem>>, vector<16x1xf32>
      %c6_46 = arith.constant 6 : index
      %c0_47 = arith.constant 0 : index
      %66 = vector.load %arg5[%c6_46, %c0_47] : memref<49x256xf32, #tpu.memory_space<vmem>>, vector<1x256xf32>
      %67 = vector.shape_cast %65 : vector<16x1xf32> to vector<16x1xf32>
      %68 = vector.broadcast %67 : vector<16x1xf32> to vector<16x256xf32>
      %69 = vector.broadcast %66 : vector<1x256xf32> to vector<16x256xf32>
      %70 = arith.mulf %68, %69 : vector<16x256xf32>
      %c6_48 = arith.constant 6 : index
      %c0_49 = arith.constant 0 : index
      %c0_50 = arith.constant 0 : index
      %71 = vector.load %arg8[%c6_48, %c0_49, %c0_50] : memref<49x16x256xf32, #tpu.memory_space<vmem>>, vector<1x16x256xf32>
      %72 = vector.shape_cast %71 : vector<1x16x256xf32> to vector<16x256xf32>
      %73 = vector.shape_cast %70 : vector<16x256xf32> to vector<1x16x256xf32>
      tpu.vector_store %arg8[%c6_48, %c0_49, %c0_50], %73 {strides = array<i32>} : memref<49x16x256xf32, #tpu.memory_space<vmem>>, vector<1x16x256xf32>,
      %c0_51 = arith.constant 0 : index
      %c7 = arith.constant 7 : index
      %74 = vector.load %arg3[%c0_51, %c7] : memref<16x49xf32, #tpu.memory_space<vmem>>, vector<16x1xf32>
      %c7_52 = arith.constant 7 : index
      %c0_53 = arith.constant 0 : index
      %75 = vector.load %arg5[%c7_52, %c0_53] : memref<49x256xf32, #tpu.memory_space<vmem>>, vector<1x256xf32>
      %76 = vector.shape_cast %74 : vector<16x1xf32> to vector<16x1xf32>
      %77 = vector.broadcast %76 : vector<16x1xf32> to vector<16x256xf32>
      %78 = vector.broadcast %75 : vector<1x256xf32> to vector<16x256xf32>
      %79 = arith.mulf %77, %78 : vector<16x256xf32>
      %c7_54 = arith.constant 7 : index
      %c0_55 = arith.constant 0 : index
      %c0_56 = arith.constant 0 : index
      %80 = vector.load %arg8[%c7_54, %c0_55, %c0_56] : memref<49x16x256xf32, #tpu.memory_space<vmem>>, vector<1x16x256xf32>
      %81 = vector.shape_cast %80 : vector<1x16x256xf32> to vector<16x256xf32>
      %82 = vector.shape_cast %79 : vector<16x256xf32> to vector<1x16x256xf32>
      tpu.vector_store %arg8[%c7_54, %c0_55, %c0_56], %82 {strides = array<i32>} : memref<49x16x256xf32, #tpu.memory_space<vmem>>, vector<1x16x256xf32>,
      %c0_57 = arith.constant 0 : index
      %c8 = arith.constant 8 : index
      %83 = vector.load %arg3[%c0_57, %c8] : memref<16x49xf32, #tpu.memory_space<vmem>>, vector<16x1xf32>
      %c8_58 = arith.constant 8 : index
      %c0_59 = arith.constant 0 : index
      %84 = vector.load %arg5[%c8_58, %c0_59] : memref<49x256xf32, #tpu.memory_space<vmem>>, vector<1x256xf32>
      %85 = vector.shape_cast %83 : vector<16x1xf32> to vector<16x1xf32>
      %86 = vector.broadcast %85 : vector<16x1xf32> to vector<16x256xf32>
      %87 = vector.broadcast %84 : vector<1x256xf32> to vector<16x256xf32>
      %88 = arith.mulf %86, %87 : vector<16x256xf32>
      %c8_60 = arith.constant 8 : index
      %c0_61 = arith.constant 0 : index
      %c0_62 = arith.constant 0 : index
      %89 = vector.load %arg8[%c8_60, %c0_61, %c0_62] : memref<49x16x256xf32, #tpu.memory_space<vmem>>, vector<1x16x256xf32>
      %90 = vector.shape_cast %89 : vector<1x16x256xf32> to vector<16x256xf32>
      %91 = vector.shape_cast %88 : vector<16x256xf32> to vector<1x16x256xf32>
      tpu.vector_store %arg8[%c8_60, %c0_61, %c0_62], %91 {strides = array<i32>} : memref<49x16x256xf32, #tpu.memory_space<vmem>>, vector<1x16x256xf32>,
      %c0_63 = arith.constant 0 : index
      %c9 = arith.constant 9 : index
      %92 = vector.load %arg3[%c0_63, %c9] : memref<16x49xf32, #tpu.memory_space<vmem>>, vector<16x1xf32>
      %c9_64 = arith.constant 9 : index
      %c0_65 = arith.constant 0 : index
      %93 = vector.load %arg5[%c9_64, %c0_65] : memref<49x256xf32, #tpu.memory_space<vmem>>, vector<1x256xf32>
      %94 = vector.shape_cast %92 : vector<16x1xf32> to vector<16x1xf32>
      %95 = vector.broadcast %94 : vector<16x1xf32> to vector<16x256xf32>
      %96 = vector.broadcast %93 : vector<1x256xf32> to vector<16x256xf32>
      %97 = arith.mulf %95, %96 : vector<16x256xf32>
      %c9_66 = arith.constant 9 : index
      %c0_67 = arith.constant 0 : index
      %c0_68 = arith.constant 0 : index
      %98 = vector.load %arg8[%c9_66, %c0_67, %c0_68] : memref<49x16x256xf32, #tpu.memory_space<vmem>>, vector<1x16x256xf32>
      %99 = vector.shape_cast %98 : vector<1x16x256xf32> to vector<16x256xf32>
      %100 = vector.shape_cast %97 : vector<16x256xf32> to vector<1x16x256xf32>
      tpu.vector_store %arg8[%c9_66, %c0_67, %c0_68], %100 {strides = array<i32>} : memref<49x16x256xf32, #tpu.memory_space<vmem>>, vector<1x16x256xf32>,
      %c0_69 = arith.constant 0 : index
      %c10 = arith.constant 10 : index
      %101 = vector.load %arg3[%c0_69, %c10] : memref<16x49xf32, #tpu.memory_space<vmem>>, vector<16x1xf32>
      %c10_70 = arith.constant 10 : index
      %c0_71 = arith.constant 0 : index
      %102 = vector.load %arg5[%c10_70, %c0_71] : memref<49x256xf32, #tpu.memory_space<vmem>>, vector<1x256xf32>
      %103 = vector.shape_cast %101 : vector<16x1xf32> to vector<16x1xf32>
      %104 = vector.broadcast %103 : vector<16x1xf32> to vector<16x256xf32>
      %105 = vector.broadcast %102 : vector<1x256xf32> to vector<16x256xf32>
      %106 = arith.mulf %104, %105 : vector<16x256xf32>
      %c10_72 = arith.constant 10 : index
      %c0_73 = arith.constant 0 : index
      %c0_74 = arith.constant 0 : index
      %107 = vector.load %arg8[%c10_72, %c0_73, %c0_74] : memref<49x16x256xf32, #tpu.memory_space<vmem>>, vector<1x16x256xf32>
      %108 = vector.shape_cast %107 : vector<1x16x256xf32> to vector<16x256xf32>
      %109 = vector.shape_cast %106 : vector<16x256xf32> to vector<1x16x256xf32>
      tpu.vector_store %arg8[%c10_72, %c0_73, %c0_74], %109 {strides = array<i32>} : memref<49x16x256xf32, #tpu.memory_space<vmem>>, vector<1x16x256xf32>,
      %c0_75 = arith.constant 0 : index
      %c11 = arith.constant 11 : index
      %110 = vector.load %arg3[%c0_75, %c11] : memref<16x49xf32, #tpu.memory_space<vmem>>, vector<16x1xf32>
      %c11_76 = arith.constant 11 : index
      %c0_77 = arith.constant 0 : index
      %111 = vector.load %arg5[%c11_76, %c0_77] : memref<49x256xf32, #tpu.memory_space<vmem>>, vector<1x256xf32>
      %112 = vector.shape_cast %110 : vector<16x1xf32> to vector<16x1xf32>
      %113 = vector.broadcast %112 : vector<16x1xf32> to vector<16x256xf32>
      %114 = vector.broadcast %111 : vector<1x256xf32> to vector<16x256xf32>
      %115 = arith.mulf %113, %114 : vector<16x256xf32>
      %c11_78 = arith.constant 11 : index
      %c0_79 = arith.constant 0 : index
      %c0_80 = arith.constant 0 : index
      %116 = vector.load %arg8[%c11_78, %c0_79, %c0_80] : memref<49x16x256xf32, #tpu.memory_space<vmem>>, vector<1x16x256xf32>
      %117 = vector.shape_cast %116 : vector<1x16x256xf32> to vector<16x256xf32>
      %118 = vector.shape_cast %115 : vector<16x256xf32> to vector<1x16x256xf32>
      tpu.vector_store %arg8[%c11_78, %c0_79, %c0_80], %118 {strides = array<i32>} : memref<49x16x256xf32, #tpu.memory_space<vmem>>, vector<1x16x256xf32>,
      %c0_81 = arith.constant 0 : index
      %c12 = arith.constant 12 : index
      %119 = vector.load %arg3[%c0_81, %c12] : memref<16x49xf32, #tpu.memory_space<vmem>>, vector<16x1xf32>
      %c12_82 = arith.constant 12 : index
      %c0_83 = arith.constant 0 : index
      %120 = vector.load %arg5[%c12_82, %c0_83] : memref<49x256xf32, #tpu.memory_space<vmem>>, vector<1x256xf32>
      %121 = vector.shape_cast %119 : vector<16x1xf32> to vector<16x1xf32>
      %122 = vector.broadcast %121 : vector<16x1xf32> to vector<16x256xf32>
      %123 = vector.broadcast %120 : vector<1x256xf32> to vector<16x256xf32>
      %124 = arith.mulf %122, %123 : vector<16x256xf32>
      %c12_84 = arith.constant 12 : index
      %c0_85 = arith.constant 0 : index
      %c0_86 = arith.constant 0 : index
      %125 = vector.load %arg8[%c12_84, %c0_85, %c0_86] : memref<49x16x256xf32, #tpu.memory_space<vmem>>, vector<1x16x256xf32>
      %126 = vector.shape_cast %125 : vector<1x16x256xf32> to vector<16x256xf32>
      %127 = vector.shape_cast %124 : vector<16x256xf32> to vector<1x16x256xf32>
      tpu.vector_store %arg8[%c12_84, %c0_85, %c0_86], %127 {strides = array<i32>} : memref<49x16x256xf32, #tpu.memory_space<vmem>>, vector<1x16x256xf32>,
      %c0_87 = arith.constant 0 : index
      %c13 = arith.constant 13 : index
      %128 = vector.load %arg3[%c0_87, %c13] : memref<16x49xf32, #tpu.memory_space<vmem>>, vector<16x1xf32>
      %c13_88 = arith.constant 13 : index
      %c0_89 = arith.constant 0 : index
      %129 = vector.load %arg5[%c13_88, %c0_89] : memref<49x256xf32, #tpu.memory_space<vmem>>, vector<1x256xf32>
      %130 = vector.shape_cast %128 : vector<16x1xf32> to vector<16x1xf32>
      %131 = vector.broadcast %130 : vector<16x1xf32> to vector<16x256xf32>
      %132 = vector.broadcast %129 : vector<1x256xf32> to vector<16x256xf32>
      %133 = arith.mulf %131, %132 : vector<16x256xf32>
      %c13_90 = arith.constant 13 : index
      %c0_91 = arith.constant 0 : index
      %c0_92 = arith.constant 0 : index
      %134 = vector.load %arg8[%c13_90, %c0_91, %c0_92] : memref<49x16x256xf32, #tpu.memory_space<vmem>>, vector<1x16x256xf32>
      %135 = vector.shape_cast %134 : vector<1x16x256xf32> to vector<16x256xf32>
      %136 = vector.shape_cast %133 : vector<16x256xf32> to vector<1x16x256xf32>
      tpu.vector_store %arg8[%c13_90, %c0_91, %c0_92], %136 {strides = array<i32>} : memref<49x16x256xf32, #tpu.memory_space<vmem>>, vector<1x16x256xf32>,
      %c0_93 = arith.constant 0 : index
      %c14 = arith.constant 14 : index
      %137 = vector.load %arg3[%c0_93, %c14] : memref<16x49xf32, #tpu.memory_space<vmem>>, vector<16x1xf32>
      %c14_94 = arith.constant 14 : index
      %c0_95 = arith.constant 0 : index
      %138 = vector.load %arg5[%c14_94, %c0_95] : memref<49x256xf32, #tpu.memory_space<vmem>>, vector<1x256xf32>
      %139 = vector.shape_cast %137 : vector<16x1xf32> to vector<16x1xf32>
      %140 = vector.broadcast %139 : vector<16x1xf32> to vector<16x256xf32>
      %141 = vector.broadcast %138 : vector<1x256xf32> to vector<16x256xf32>
      %142 = arith.mulf %140, %141 : vector<16x256xf32>
      %c14_96 = arith.constant 14 : index
      %c0_97 = arith.constant 0 : index
      %c0_98 = arith.constant 0 : index
      %143 = vector.load %arg8[%c14_96, %c0_97, %c0_98] : memref<49x16x256xf32, #tpu.memory_space<vmem>>, vector<1x16x256xf32>
      %144 = vector.shape_cast %143 : vector<1x16x256xf32> to vector<16x256xf32>
      %145 = vector.shape_cast %142 : vector<16x256xf32> to vector<1x16x256xf32>
      tpu.vector_store %arg8[%c14_96, %c0_97, %c0_98], %145 {strides = array<i32>} : memref<49x16x256xf32, #tpu.memory_space<vmem>>, vector<1x16x256xf32>,
      %c0_99 = arith.constant 0 : index
      %c15 = arith.constant 15 : index
      %146 = vector.load %arg3[%c0_99, %c15] : memref<16x49xf32, #tpu.memory_space<vmem>>, vector<16x1xf32>
      %c15_100 = arith.constant 15 : index
      %c0_101 = arith.constant 0 : index
      %147 = vector.load %arg5[%c15_100, %c0_101] : memref<49x256xf32, #tpu.memory_space<vmem>>, vector<1x256xf32>
      %148 = vector.shape_cast %146 : vector<16x1xf32> to vector<16x1xf32>
      %149 = vector.broadcast %148 : vector<16x1xf32> to vector<16x256xf32>
      %150 = vector.broadcast %147 : vector<1x256xf32> to vector<16x256xf32>
      %151 = arith.mulf %149, %150 : vector<16x256xf32>
      %c15_102 = arith.constant 15 : index
      %c0_103 = arith.constant 0 : index
      %c0_104 = arith.constant 0 : index
      %152 = vector.load %arg8[%c15_102, %c0_103, %c0_104] : memref<49x16x256xf32, #tpu.memory_space<vmem>>, vector<1x16x256xf32>
      %153 = vector.shape_cast %152 : vector<1x16x256xf32> to vector<16x256xf32>
      %154 = vector.shape_cast %151 : vector<16x256xf32> to vector<1x16x256xf32>
      tpu.vector_store %arg8[%c15_102, %c0_103, %c0_104], %154 {strides = array<i32>} : memref<49x16x256xf32, #tpu.memory_space<vmem>>, vector<1x16x256xf32>,
      %c0_105 = arith.constant 0 : index
      %c16 = arith.constant 16 : index
      %155 = vector.load %arg3[%c0_105, %c16] : memref<16x49xf32, #tpu.memory_space<vmem>>, vector<16x1xf32>
      %c16_106 = arith.constant 16 : index
      %c0_107 = arith.constant 0 : index
      %156 = vector.load %arg5[%c16_106, %c0_107] : memref<49x256xf32, #tpu.memory_space<vmem>>, vector<1x256xf32>
      %157 = vector.shape_cast %155 : vector<16x1xf32> to vector<16x1xf32>
      %158 = vector.broadcast %157 : vector<16x1xf32> to vector<16x256xf32>
      %159 = vector.broadcast %156 : vector<1x256xf32> to vector<16x256xf32>
      %160 = arith.mulf %158, %159 : vector<16x256xf32>
      %c16_108 = arith.constant 16 : index
      %c0_109 = arith.constant 0 : index
      %c0_110 = arith.constant 0 : index
      %161 = vector.load %arg8[%c16_108, %c0_109, %c0_110] : memref<49x16x256xf32, #tpu.memory_space<vmem>>, vector<1x16x256xf32>
      %162 = vector.shape_cast %161 : vector<1x16x256xf32> to vector<16x256xf32>
      %163 = vector.shape_cast %160 : vector<16x256xf32> to vector<1x16x256xf32>
      tpu.vector_store %arg8[%c16_108, %c0_109, %c0_110], %163 {strides = array<i32>} : memref<49x16x256xf32, #tpu.memory_space<vmem>>, vector<1x16x256xf32>,
      %c0_111 = arith.constant 0 : index
      %c17 = arith.constant 17 : index
      %164 = vector.load %arg3[%c0_111, %c17] : memref<16x49xf32, #tpu.memory_space<vmem>>, vector<16x1xf32>
      %c17_112 = arith.constant 17 : index
      %c0_113 = arith.constant 0 : index
      %165 = vector.load %arg5[%c17_112, %c0_113] : memref<49x256xf32, #tpu.memory_space<vmem>>, vector<1x256xf32>
      %166 = vector.shape_cast %164 : vector<16x1xf32> to vector<16x1xf32>
      %167 = vector.broadcast %166 : vector<16x1xf32> to vector<16x256xf32>
      %168 = vector.broadcast %165 : vector<1x256xf32> to vector<16x256xf32>
      %169 = arith.mulf %167, %168 : vector<16x256xf32>
      %c17_114 = arith.constant 17 : index
      %c0_115 = arith.constant 0 : index
      %c0_116 = arith.constant 0 : index
      %170 = vector.load %arg8[%c17_114, %c0_115, %c0_116] : memref<49x16x256xf32, #tpu.memory_space<vmem>>, vector<1x16x256xf32>
      %171 = vector.shape_cast %170 : vector<1x16x256xf32> to vector<16x256xf32>
      %172 = vector.shape_cast %169 : vector<16x256xf32> to vector<1x16x256xf32>
      tpu.vector_store %arg8[%c17_114, %c0_115, %c0_116], %172 {strides = array<i32>} : memref<49x16x256xf32, #tpu.memory_space<vmem>>, vector<1x16x256xf32>,
      %c0_117 = arith.constant 0 : index
      %c18 = arith.constant 18 : index
      %173 = vector.load %arg3[%c0_117, %c18] : memref<16x49xf32, #tpu.memory_space<vmem>>, vector<16x1xf32>
      %c18_118 = arith.constant 18 : index
      %c0_119 = arith.constant 0 : index
      %174 = vector.load %arg5[%c18_118, %c0_119] : memref<49x256xf32, #tpu.memory_space<vmem>>, vector<1x256xf32>
      %175 = vector.shape_cast %173 : vector<16x1xf32> to vector<16x1xf32>
      %176 = vector.broadcast %175 : vector<16x1xf32> to vector<16x256xf32>
      %177 = vector.broadcast %174 : vector<1x256xf32> to vector<16x256xf32>
      %178 = arith.mulf %176, %177 : vector<16x256xf32>
      %c18_120 = arith.constant 18 : index
      %c0_121 = arith.constant 0 : index
      %c0_122 = arith.constant 0 : index
      %179 = vector.load %arg8[%c18_120, %c0_121, %c0_122] : memref<49x16x256xf32, #tpu.memory_space<vmem>>, vector<1x16x256xf32>
      %180 = vector.shape_cast %179 : vector<1x16x256xf32> to vector<16x256xf32>
      %181 = vector.shape_cast %178 : vector<16x256xf32> to vector<1x16x256xf32>
      tpu.vector_store %arg8[%c18_120, %c0_121, %c0_122], %181 {strides = array<i32>} : memref<49x16x256xf32, #tpu.memory_space<vmem>>, vector<1x16x256xf32>,
      %c0_123 = arith.constant 0 : index
      %c19 = arith.constant 19 : index
      %182 = vector.load %arg3[%c0_123, %c19] : memref<16x49xf32, #tpu.memory_space<vmem>>, vector<16x1xf32>
      %c19_124 = arith.constant 19 : index
      %c0_125 = arith.constant 0 : index
      %183 = vector.load %arg5[%c19_124, %c0_125] : memref<49x256xf32, #tpu.memory_space<vmem>>, vector<1x256xf32>
      %184 = vector.shape_cast %182 : vector<16x1xf32> to vector<16x1xf32>
      %185 = vector.broadcast %184 : vector<16x1xf32> to vector<16x256xf32>
      %186 = vector.broadcast %183 : vector<1x256xf32> to vector<16x256xf32>
      %187 = arith.mulf %185, %186 : vector<16x256xf32>
      %c19_126 = arith.constant 19 : index
      %c0_127 = arith.constant 0 : index
      %c0_128 = arith.constant 0 : index
      %188 = vector.load %arg8[%c19_126, %c0_127, %c0_128] : memref<49x16x256xf32, #tpu.memory_space<vmem>>, vector<1x16x256xf32>
      %189 = vector.shape_cast %188 : vector<1x16x256xf32> to vector<16x256xf32>
      %190 = vector.shape_cast %187 : vector<16x256xf32> to vector<1x16x256xf32>
      tpu.vector_store %arg8[%c19_126, %c0_127, %c0_128], %190 {strides = array<i32>} : memref<49x16x256xf32, #tpu.memory_space<vmem>>, vector<1x16x256xf32>,
      %c0_129 = arith.constant 0 : index
      %c20 = arith.constant 20 : index
      %191 = vector.load %arg3[%c0_129, %c20] : memref<16x49xf32, #tpu.memory_space<vmem>>, vector<16x1xf32>
      %c20_130 = arith.constant 20 : index
      %c0_131 = arith.constant 0 : index
      %192 = vector.load %arg5[%c20_130, %c0_131] : memref<49x256xf32, #tpu.memory_space<vmem>>, vector<1x256xf32>
      %193 = vector.shape_cast %191 : vector<16x1xf32> to vector<16x1xf32>
      %194 = vector.broadcast %193 : vector<16x1xf32> to vector<16x256xf32>
      %195 = vector.broadcast %192 : vector<1x256xf32> to vector<16x256xf32>
      %196 = arith.mulf %194, %195 : vector<16x256xf32>
      %c20_132 = arith.constant 20 : index
      %c0_133 = arith.constant 0 : index
      %c0_134 = arith.constant 0 : index
      %197 = vector.load %arg8[%c20_132, %c0_133, %c0_134] : memref<49x16x256xf32, #tpu.memory_space<vmem>>, vector<1x16x256xf32>
      %198 = vector.shape_cast %197 : vector<1x16x256xf32> to vector<16x256xf32>
      %199 = vector.shape_cast %196 : vector<16x256xf32> to vector<1x16x256xf32>
      tpu.vector_store %arg8[%c20_132, %c0_133, %c0_134], %199 {strides = array<i32>} : memref<49x16x256xf32, #tpu.memory_space<vmem>>, vector<1x16x256xf32>,
      %c0_135 = arith.constant 0 : index
      %c21 = arith.constant 21 : index
      %200 = vector.load %arg3[%c0_135, %c21] : memref<16x49xf32, #tpu.memory_space<vmem>>, vector<16x1xf32>
      %c21_136 = arith.constant 21 : index
      %c0_137 = arith.constant 0 : index
      %201 = vector.load %arg5[%c21_136, %c0_137] : memref<49x256xf32, #tpu.memory_space<vmem>>, vector<1x256xf32>
      %202 = vector.shape_cast %200 : vector<16x1xf32> to vector<16x1xf32>
      %203 = vector.broadcast %202 : vector<16x1xf32> to vector<16x256xf32>
      %204 = vector.broadcast %201 : vector<1x256xf32> to vector<16x256xf32>
      %205 = arith.mulf %203, %204 : vector<16x256xf32>
      %c21_138 = arith.constant 21 : index
      %c0_139 = arith.constant 0 : index
      %c0_140 = arith.constant 0 : index
      %206 = vector.load %arg8[%c21_138, %c0_139, %c0_140] : memref<49x16x256xf32, #tpu.memory_space<vmem>>, vector<1x16x256xf32>
      %207 = vector.shape_cast %206 : vector<1x16x256xf32> to vector<16x256xf32>
      %208 = vector.shape_cast %205 : vector<16x256xf32> to vector<1x16x256xf32>
      tpu.vector_store %arg8[%c21_138, %c0_139, %c0_140], %208 {strides = array<i32>} : memref<49x16x256xf32, #tpu.memory_space<vmem>>, vector<1x16x256xf32>,
      %c0_141 = arith.constant 0 : index
      %c22 = arith.constant 22 : index
      %209 = vector.load %arg3[%c0_141, %c22] : memref<16x49xf32, #tpu.memory_space<vmem>>, vector<16x1xf32>
      %c22_142 = arith.constant 22 : index
      %c0_143 = arith.constant 0 : index
      %210 = vector.load %arg5[%c22_142, %c0_143] : memref<49x256xf32, #tpu.memory_space<vmem>>, vector<1x256xf32>
      %211 = vector.shape_cast %209 : vector<16x1xf32> to vector<16x1xf32>
      %212 = vector.broadcast %211 : vector<16x1xf32> to vector<16x256xf32>
      %213 = vector.broadcast %210 : vector<1x256xf32> to vector<16x256xf32>
      %214 = arith.mulf %212, %213 : vector<16x256xf32>
      %c22_144 = arith.constant 22 : index
      %c0_145 = arith.constant 0 : index
      %c0_146 = arith.constant 0 : index
      %215 = vector.load %arg8[%c22_144, %c0_145, %c0_146] : memref<49x16x256xf32, #tpu.memory_space<vmem>>, vector<1x16x256xf32>
      %216 = vector.shape_cast %215 : vector<1x16x256xf32> to vector<16x256xf32>
      %217 = vector.shape_cast %214 : vector<16x256xf32> to vector<1x16x256xf32>
      tpu.vector_store %arg8[%c22_144, %c0_145, %c0_146], %217 {strides = array<i32>} : memref<49x16x256xf32, #tpu.memory_space<vmem>>, vector<1x16x256xf32>,
      %c0_147 = arith.constant 0 : index
      %c23 = arith.constant 23 : index
      %218 = vector.load %arg3[%c0_147, %c23] : memref<16x49xf32, #tpu.memory_space<vmem>>, vector<16x1xf32>
      %c23_148 = arith.constant 23 : index
      %c0_149 = arith.constant 0 : index
      %219 = vector.load %arg5[%c23_148, %c0_149] : memref<49x256xf32, #tpu.memory_space<vmem>>, vector<1x256xf32>
      %220 = vector.shape_cast %218 : vector<16x1xf32> to vector<16x1xf32>
      %221 = vector.broadcast %220 : vector<16x1xf32> to vector<16x256xf32>
      %222 = vector.broadcast %219 : vector<1x256xf32> to vector<16x256xf32>
      %223 = arith.mulf %221, %222 : vector<16x256xf32>
      %c23_150 = arith.constant 23 : index
      %c0_151 = arith.constant 0 : index
      %c0_152 = arith.constant 0 : index
      %224 = vector.load %arg8[%c23_150, %c0_151, %c0_152] : memref<49x16x256xf32, #tpu.memory_space<vmem>>, vector<1x16x256xf32>
      %225 = vector.shape_cast %224 : vector<1x16x256xf32> to vector<16x256xf32>
      %226 = vector.shape_cast %223 : vector<16x256xf32> to vector<1x16x256xf32>
      tpu.vector_store %arg8[%c23_150, %c0_151, %c0_152], %226 {strides = array<i32>} : memref<49x16x256xf32, #tpu.memory_space<vmem>>, vector<1x16x256xf32>,
      %c0_153 = arith.constant 0 : index
      %c24 = arith.constant 24 : index
      %227 = vector.load %arg3[%c0_153, %c24] : memref<16x49xf32, #tpu.memory_space<vmem>>, vector<16x1xf32>
      %c24_154 = arith.constant 24 : index
      %c0_155 = arith.constant 0 : index
      %228 = vector.load %arg5[%c24_154, %c0_155] : memref<49x256xf32, #tpu.memory_space<vmem>>, vector<1x256xf32>
      %229 = vector.shape_cast %227 : vector<16x1xf32> to vector<16x1xf32>
      %230 = vector.broadcast %229 : vector<16x1xf32> to vector<16x256xf32>
      %231 = vector.broadcast %228 : vector<1x256xf32> to vector<16x256xf32>
      %232 = arith.mulf %230, %231 : vector<16x256xf32>
      %c24_156 = arith.constant 24 : index
      %c0_157 = arith.constant 0 : index
      %c0_158 = arith.constant 0 : index
      %233 = vector.load %arg8[%c24_156, %c0_157, %c0_158] : memref<49x16x256xf32, #tpu.memory_space<vmem>>, vector<1x16x256xf32>
      %234 = vector.shape_cast %233 : vector<1x16x256xf32> to vector<16x256xf32>
      %235 = vector.shape_cast %232 : vector<16x256xf32> to vector<1x16x256xf32>
      tpu.vector_store %arg8[%c24_156, %c0_157, %c0_158], %235 {strides = array<i32>} : memref<49x16x256xf32, #tpu.memory_space<vmem>>, vector<1x16x256xf32>,
      %c0_159 = arith.constant 0 : index
      %c25 = arith.constant 25 : index
      %236 = vector.load %arg3[%c0_159, %c25] : memref<16x49xf32, #tpu.memory_space<vmem>>, vector<16x1xf32>
      %c25_160 = arith.constant 25 : index
      %c0_161 = arith.constant 0 : index
      %237 = vector.load %arg5[%c25_160, %c0_161] : memref<49x256xf32, #tpu.memory_space<vmem>>, vector<1x256xf32>
      %238 = vector.shape_cast %236 : vector<16x1xf32> to vector<16x1xf32>
      %239 = vector.broadcast %238 : vector<16x1xf32> to vector<16x256xf32>
      %240 = vector.broadcast %237 : vector<1x256xf32> to vector<16x256xf32>
      %241 = arith.mulf %239, %240 : vector<16x256xf32>
      %c25_162 = arith.constant 25 : index
      %c0_163 = arith.constant 0 : index
      %c0_164 = arith.constant 0 : index
      %242 = vector.load %arg8[%c25_162, %c0_163, %c0_164] : memref<49x16x256xf32, #tpu.memory_space<vmem>>, vector<1x16x256xf32>
      %243 = vector.shape_cast %242 : vector<1x16x256xf32> to vector<16x256xf32>
      %244 = vector.shape_cast %241 : vector<16x256xf32> to vector<1x16x256xf32>
      tpu.vector_store %arg8[%c25_162, %c0_163, %c0_164], %244 {strides = array<i32>} : memref<49x16x256xf32, #tpu.memory_space<vmem>>, vector<1x16x256xf32>,
      %c0_165 = arith.constant 0 : index
      %c26 = arith.constant 26 : index
      %245 = vector.load %arg3[%c0_165, %c26] : memref<16x49xf32, #tpu.memory_space<vmem>>, vector<16x1xf32>
      %c26_166 = arith.constant 26 : index
      %c0_167 = arith.constant 0 : index
      %246 = vector.load %arg5[%c26_166, %c0_167] : memref<49x256xf32, #tpu.memory_space<vmem>>, vector<1x256xf32>
      %247 = vector.shape_cast %245 : vector<16x1xf32> to vector<16x1xf32>
      %248 = vector.broadcast %247 : vector<16x1xf32> to vector<16x256xf32>
      %249 = vector.broadcast %246 : vector<1x256xf32> to vector<16x256xf32>
      %250 = arith.mulf %248, %249 : vector<16x256xf32>
      %c26_168 = arith.constant 26 : index
      %c0_169 = arith.constant 0 : index
      %c0_170 = arith.constant 0 : index
      %251 = vector.load %arg8[%c26_168, %c0_169, %c0_170] : memref<49x16x256xf32, #tpu.memory_space<vmem>>, vector<1x16x256xf32>
      %252 = vector.shape_cast %251 : vector<1x16x256xf32> to vector<16x256xf32>
      %253 = vector.shape_cast %250 : vector<16x256xf32> to vector<1x16x256xf32>
      tpu.vector_store %arg8[%c26_168, %c0_169, %c0_170], %253 {strides = array<i32>} : memref<49x16x256xf32, #tpu.memory_space<vmem>>, vector<1x16x256xf32>,
      %c0_171 = arith.constant 0 : index
      %c27 = arith.constant 27 : index
      %254 = vector.load %arg3[%c0_171, %c27] : memref<16x49xf32, #tpu.memory_space<vmem>>, vector<16x1xf32>
      %c27_172 = arith.constant 27 : index
      %c0_173 = arith.constant 0 : index
      %255 = vector.load %arg5[%c27_172, %c0_173] : memref<49x256xf32, #tpu.memory_space<vmem>>, vector<1x256xf32>
      %256 = vector.shape_cast %254 : vector<16x1xf32> to vector<16x1xf32>
      %257 = vector.broadcast %256 : vector<16x1xf32> to vector<16x256xf32>
      %258 = vector.broadcast %255 : vector<1x256xf32> to vector<16x256xf32>
      %259 = arith.mulf %257, %258 : vector<16x256xf32>
      %c27_174 = arith.constant 27 : index
      %c0_175 = arith.constant 0 : index
      %c0_176 = arith.constant 0 : index
      %260 = vector.load %arg8[%c27_174, %c0_175, %c0_176] : memref<49x16x256xf32, #tpu.memory_space<vmem>>, vector<1x16x256xf32>
      %261 = vector.shape_cast %260 : vector<1x16x256xf32> to vector<16x256xf32>
      %262 = vector.shape_cast %259 : vector<16x256xf32> to vector<1x16x256xf32>
      tpu.vector_store %arg8[%c27_174, %c0_175, %c0_176], %262 {strides = array<i32>} : memref<49x16x256xf32, #tpu.memory_space<vmem>>, vector<1x16x256xf32>,
      %c0_177 = arith.constant 0 : index
      %c28 = arith.constant 28 : index
      %263 = vector.load %arg3[%c0_177, %c28] : memref<16x49xf32, #tpu.memory_space<vmem>>, vector<16x1xf32>
      %c28_178 = arith.constant 28 : index
      %c0_179 = arith.constant 0 : index
      %264 = vector.load %arg5[%c28_178, %c0_179] : memref<49x256xf32, #tpu.memory_space<vmem>>, vector<1x256xf32>
      %265 = vector.shape_cast %263 : vector<16x1xf32> to vector<16x1xf32>
      %266 = vector.broadcast %265 : vector<16x1xf32> to vector<16x256xf32>
      %267 = vector.broadcast %264 : vector<1x256xf32> to vector<16x256xf32>
      %268 = arith.mulf %266, %267 : vector<16x256xf32>
      %c28_180 = arith.constant 28 : index
      %c0_181 = arith.constant 0 : index
      %c0_182 = arith.constant 0 : index
      %269 = vector.load %arg8[%c28_180, %c0_181, %c0_182] : memref<49x16x256xf32, #tpu.memory_space<vmem>>, vector<1x16x256xf32>
      %270 = vector.shape_cast %269 : vector<1x16x256xf32> to vector<16x256xf32>
      %271 = vector.shape_cast %268 : vector<16x256xf32> to vector<1x16x256xf32>
      tpu.vector_store %arg8[%c28_180, %c0_181, %c0_182], %271 {strides = array<i32>} : memref<49x16x256xf32, #tpu.memory_space<vmem>>, vector<1x16x256xf32>,
      %c0_183 = arith.constant 0 : index
      %c29 = arith.constant 29 : index
      %272 = vector.load %arg3[%c0_183, %c29] : memref<16x49xf32, #tpu.memory_space<vmem>>, vector<16x1xf32>
      %c29_184 = arith.constant 29 : index
      %c0_185 = arith.constant 0 : index
      %273 = vector.load %arg5[%c29_184, %c0_185] : memref<49x256xf32, #tpu.memory_space<vmem>>, vector<1x256xf32>
      %274 = vector.shape_cast %272 : vector<16x1xf32> to vector<16x1xf32>
      %275 = vector.broadcast %274 : vector<16x1xf32> to vector<16x256xf32>
      %276 = vector.broadcast %273 : vector<1x256xf32> to vector<16x256xf32>
      %277 = arith.mulf %275, %276 : vector<16x256xf32>
      %c29_186 = arith.constant 29 : index
      %c0_187 = arith.constant 0 : index
      %c0_188 = arith.constant 0 : index
      %278 = vector.load %arg8[%c29_186, %c0_187, %c0_188] : memref<49x16x256xf32, #tpu.memory_space<vmem>>, vector<1x16x256xf32>
      %279 = vector.shape_cast %278 : vector<1x16x256xf32> to vector<16x256xf32>
      %280 = vector.shape_cast %277 : vector<16x256xf32> to vector<1x16x256xf32>
      tpu.vector_store %arg8[%c29_186, %c0_187, %c0_188], %280 {strides = array<i32>} : memref<49x16x256xf32, #tpu.memory_space<vmem>>, vector<1x16x256xf32>,
      %c0_189 = arith.constant 0 : index
      %c30 = arith.constant 30 : index
      %281 = vector.load %arg3[%c0_189, %c30] : memref<16x49xf32, #tpu.memory_space<vmem>>, vector<16x1xf32>
      %c30_190 = arith.constant 30 : index
      %c0_191 = arith.constant 0 : index
      %282 = vector.load %arg5[%c30_190, %c0_191] : memref<49x256xf32, #tpu.memory_space<vmem>>, vector<1x256xf32>
      %283 = vector.shape_cast %281 : vector<16x1xf32> to vector<16x1xf32>
      %284 = vector.broadcast %283 : vector<16x1xf32> to vector<16x256xf32>
      %285 = vector.broadcast %282 : vector<1x256xf32> to vector<16x256xf32>
      %286 = arith.mulf %284, %285 : vector<16x256xf32>
      %c30_192 = arith.constant 30 : index
      %c0_193 = arith.constant 0 : index
      %c0_194 = arith.constant 0 : index
      %287 = vector.load %arg8[%c30_192, %c0_193, %c0_194] : memref<49x16x256xf32, #tpu.memory_space<vmem>>, vector<1x16x256xf32>
      %288 = vector.shape_cast %287 : vector<1x16x256xf32> to vector<16x256xf32>
      %289 = vector.shape_cast %286 : vector<16x256xf32> to vector<1x16x256xf32>
      tpu.vector_store %arg8[%c30_192, %c0_193, %c0_194], %289 {strides = array<i32>} : memref<49x16x256xf32, #tpu.memory_space<vmem>>, vector<1x16x256xf32>,
      %c0_195 = arith.constant 0 : index
      %c31 = arith.constant 31 : index
      %290 = vector.load %arg3[%c0_195, %c31] : memref<16x49xf32, #tpu.memory_space<vmem>>, vector<16x1xf32>
      %c31_196 = arith.constant 31 : index
      %c0_197 = arith.constant 0 : index
      %291 = vector.load %arg5[%c31_196, %c0_197] : memref<49x256xf32, #tpu.memory_space<vmem>>, vector<1x256xf32>
      %292 = vector.shape_cast %290 : vector<16x1xf32> to vector<16x1xf32>
      %293 = vector.broadcast %292 : vector<16x1xf32> to vector<16x256xf32>
      %294 = vector.broadcast %291 : vector<1x256xf32> to vector<16x256xf32>
      %295 = arith.mulf %293, %294 : vector<16x256xf32>
      %c31_198 = arith.constant 31 : index
      %c0_199 = arith.constant 0 : index
      %c0_200 = arith.constant 0 : index
      %296 = vector.load %arg8[%c31_198, %c0_199, %c0_200] : memref<49x16x256xf32, #tpu.memory_space<vmem>>, vector<1x16x256xf32>
      %297 = vector.shape_cast %296 : vector<1x16x256xf32> to vector<16x256xf32>
      %298 = vector.shape_cast %295 : vector<16x256xf32> to vector<1x16x256xf32>
      tpu.vector_store %arg8[%c31_198, %c0_199, %c0_200], %298 {strides = array<i32>} : memref<49x16x256xf32, #tpu.memory_space<vmem>>, vector<1x16x256xf32>,
      %c0_201 = arith.constant 0 : index
      %c32 = arith.constant 32 : index
      %299 = vector.load %arg3[%c0_201, %c32] : memref<16x49xf32, #tpu.memory_space<vmem>>, vector<16x1xf32>
      %c32_202 = arith.constant 32 : index
      %c0_203 = arith.constant 0 : index
      %300 = vector.load %arg5[%c32_202, %c0_203] : memref<49x256xf32, #tpu.memory_space<vmem>>, vector<1x256xf32>
      %301 = vector.shape_cast %299 : vector<16x1xf32> to vector<16x1xf32>
      %302 = vector.broadcast %301 : vector<16x1xf32> to vector<16x256xf32>
      %303 = vector.broadcast %300 : vector<1x256xf32> to vector<16x256xf32>
      %304 = arith.mulf %302, %303 : vector<16x256xf32>
      %c32_204 = arith.constant 32 : index
      %c0_205 = arith.constant 0 : index
      %c0_206 = arith.constant 0 : index
      %305 = vector.load %arg8[%c32_204, %c0_205, %c0_206] : memref<49x16x256xf32, #tpu.memory_space<vmem>>, vector<1x16x256xf32>
      %306 = vector.shape_cast %305 : vector<1x16x256xf32> to vector<16x256xf32>
      %307 = vector.shape_cast %304 : vector<16x256xf32> to vector<1x16x256xf32>
      tpu.vector_store %arg8[%c32_204, %c0_205, %c0_206], %307 {strides = array<i32>} : memref<49x16x256xf32, #tpu.memory_space<vmem>>, vector<1x16x256xf32>,
      %c0_207 = arith.constant 0 : index
      %c33 = arith.constant 33 : index
      %308 = vector.load %arg3[%c0_207, %c33] : memref<16x49xf32, #tpu.memory_space<vmem>>, vector<16x1xf32>
      %c33_208 = arith.constant 33 : index
      %c0_209 = arith.constant 0 : index
      %309 = vector.load %arg5[%c33_208, %c0_209] : memref<49x256xf32, #tpu.memory_space<vmem>>, vector<1x256xf32>
      %310 = vector.shape_cast %308 : vector<16x1xf32> to vector<16x1xf32>
      %311 = vector.broadcast %310 : vector<16x1xf32> to vector<16x256xf32>
      %312 = vector.broadcast %309 : vector<1x256xf32> to vector<16x256xf32>
      %313 = arith.mulf %311, %312 : vector<16x256xf32>
      %c33_210 = arith.constant 33 : index
      %c0_211 = arith.constant 0 : index
      %c0_212 = arith.constant 0 : index
      %314 = vector.load %arg8[%c33_210, %c0_211, %c0_212] : memref<49x16x256xf32, #tpu.memory_space<vmem>>, vector<1x16x256xf32>
      %315 = vector.shape_cast %314 : vector<1x16x256xf32> to vector<16x256xf32>
      %316 = vector.shape_cast %313 : vector<16x256xf32> to vector<1x16x256xf32>
      tpu.vector_store %arg8[%c33_210, %c0_211, %c0_212], %316 {strides = array<i32>} : memref<49x16x256xf32, #tpu.memory_space<vmem>>, vector<1x16x256xf32>,
      %c0_213 = arith.constant 0 : index
      %c34 = arith.constant 34 : index
      %317 = vector.load %arg3[%c0_213, %c34] : memref<16x49xf32, #tpu.memory_space<vmem>>, vector<16x1xf32>
      %c34_214 = arith.constant 34 : index
      %c0_215 = arith.constant 0 : index
      %318 = vector.load %arg5[%c34_214, %c0_215] : memref<49x256xf32, #tpu.memory_space<vmem>>, vector<1x256xf32>
      %319 = vector.shape_cast %317 : vector<16x1xf32> to vector<16x1xf32>
      %320 = vector.broadcast %319 : vector<16x1xf32> to vector<16x256xf32>
      %321 = vector.broadcast %318 : vector<1x256xf32> to vector<16x256xf32>
      %322 = arith.mulf %320, %321 : vector<16x256xf32>
      %c34_216 = arith.constant 34 : index
      %c0_217 = arith.constant 0 : index
      %c0_218 = arith.constant 0 : index
      %323 = vector.load %arg8[%c34_216, %c0_217, %c0_218] : memref<49x16x256xf32, #tpu.memory_space<vmem>>, vector<1x16x256xf32>
      %324 = vector.shape_cast %323 : vector<1x16x256xf32> to vector<16x256xf32>
      %325 = vector.shape_cast %322 : vector<16x256xf32> to vector<1x16x256xf32>
      tpu.vector_store %arg8[%c34_216, %c0_217, %c0_218], %325 {strides = array<i32>} : memref<49x16x256xf32, #tpu.memory_space<vmem>>, vector<1x16x256xf32>,
      %c0_219 = arith.constant 0 : index
      %c35 = arith.constant 35 : index
      %326 = vector.load %arg3[%c0_219, %c35] : memref<16x49xf32, #tpu.memory_space<vmem>>, vector<16x1xf32>
      %c35_220 = arith.constant 35 : index
      %c0_221 = arith.constant 0 : index
      %327 = vector.load %arg5[%c35_220, %c0_221] : memref<49x256xf32, #tpu.memory_space<vmem>>, vector<1x256xf32>
      %328 = vector.shape_cast %326 : vector<16x1xf32> to vector<16x1xf32>
      %329 = vector.broadcast %328 : vector<16x1xf32> to vector<16x256xf32>
      %330 = vector.broadcast %327 : vector<1x256xf32> to vector<16x256xf32>
      %331 = arith.mulf %329, %330 : vector<16x256xf32>
      %c35_222 = arith.constant 35 : index
      %c0_223 = arith.constant 0 : index
      %c0_224 = arith.constant 0 : index
      %332 = vector.load %arg8[%c35_222, %c0_223, %c0_224] : memref<49x16x256xf32, #tpu.memory_space<vmem>>, vector<1x16x256xf32>
      %333 = vector.shape_cast %332 : vector<1x16x256xf32> to vector<16x256xf32>
      %334 = vector.shape_cast %331 : vector<16x256xf32> to vector<1x16x256xf32>
      tpu.vector_store %arg8[%c35_222, %c0_223, %c0_224], %334 {strides = array<i32>} : memref<49x16x256xf32, #tpu.memory_space<vmem>>, vector<1x16x256xf32>,
      %c0_225 = arith.constant 0 : index
      %c36 = arith.constant 36 : index
      %335 = vector.load %arg3[%c0_225, %c36] : memref<16x49xf32, #tpu.memory_space<vmem>>, vector<16x1xf32>
      %c36_226 = arith.constant 36 : index
      %c0_227 = arith.constant 0 : index
      %336 = vector.load %arg5[%c36_226, %c0_227] : memref<49x256xf32, #tpu.memory_space<vmem>>, vector<1x256xf32>
      %337 = vector.shape_cast %335 : vector<16x1xf32> to vector<16x1xf32>
      %338 = vector.broadcast %337 : vector<16x1xf32> to vector<16x256xf32>
      %339 = vector.broadcast %336 : vector<1x256xf32> to vector<16x256xf32>
      %340 = arith.mulf %338, %339 : vector<16x256xf32>
      %c36_228 = arith.constant 36 : index
      %c0_229 = arith.constant 0 : index
      %c0_230 = arith.constant 0 : index
      %341 = vector.load %arg8[%c36_228, %c0_229, %c0_230] : memref<49x16x256xf32, #tpu.memory_space<vmem>>, vector<1x16x256xf32>
      %342 = vector.shape_cast %341 : vector<1x16x256xf32> to vector<16x256xf32>
      %343 = vector.shape_cast %340 : vector<16x256xf32> to vector<1x16x256xf32>
      tpu.vector_store %arg8[%c36_228, %c0_229, %c0_230], %343 {strides = array<i32>} : memref<49x16x256xf32, #tpu.memory_space<vmem>>, vector<1x16x256xf32>,
      %c0_231 = arith.constant 0 : index
      %c37 = arith.constant 37 : index
      %344 = vector.load %arg3[%c0_231, %c37] : memref<16x49xf32, #tpu.memory_space<vmem>>, vector<16x1xf32>
      %c37_232 = arith.constant 37 : index
      %c0_233 = arith.constant 0 : index
      %345 = vector.load %arg5[%c37_232, %c0_233] : memref<49x256xf32, #tpu.memory_space<vmem>>, vector<1x256xf32>
      %346 = vector.shape_cast %344 : vector<16x1xf32> to vector<16x1xf32>
      %347 = vector.broadcast %346 : vector<16x1xf32> to vector<16x256xf32>
      %348 = vector.broadcast %345 : vector<1x256xf32> to vector<16x256xf32>
      %349 = arith.mulf %347, %348 : vector<16x256xf32>
      %c37_234 = arith.constant 37 : index
      %c0_235 = arith.constant 0 : index
      %c0_236 = arith.constant 0 : index
      %350 = vector.load %arg8[%c37_234, %c0_235, %c0_236] : memref<49x16x256xf32, #tpu.memory_space<vmem>>, vector<1x16x256xf32>
      %351 = vector.shape_cast %350 : vector<1x16x256xf32> to vector<16x256xf32>
      %352 = vector.shape_cast %349 : vector<16x256xf32> to vector<1x16x256xf32>
      tpu.vector_store %arg8[%c37_234, %c0_235, %c0_236], %352 {strides = array<i32>} : memref<49x16x256xf32, #tpu.memory_space<vmem>>, vector<1x16x256xf32>,
      %c0_237 = arith.constant 0 : index
      %c38 = arith.constant 38 : index
      %353 = vector.load %arg3[%c0_237, %c38] : memref<16x49xf32, #tpu.memory_space<vmem>>, vector<16x1xf32>
      %c38_238 = arith.constant 38 : index
      %c0_239 = arith.constant 0 : index
      %354 = vector.load %arg5[%c38_238, %c0_239] : memref<49x256xf32, #tpu.memory_space<vmem>>, vector<1x256xf32>
      %355 = vector.shape_cast %353 : vector<16x1xf32> to vector<16x1xf32>
      %356 = vector.broadcast %355 : vector<16x1xf32> to vector<16x256xf32>
      %357 = vector.broadcast %354 : vector<1x256xf32> to vector<16x256xf32>
      %358 = arith.mulf %356, %357 : vector<16x256xf32>
      %c38_240 = arith.constant 38 : index
      %c0_241 = arith.constant 0 : index
      %c0_242 = arith.constant 0 : index
      %359 = vector.load %arg8[%c38_240, %c0_241, %c0_242] : memref<49x16x256xf32, #tpu.memory_space<vmem>>, vector<1x16x256xf32>
      %360 = vector.shape_cast %359 : vector<1x16x256xf32> to vector<16x256xf32>
      %361 = vector.shape_cast %358 : vector<16x256xf32> to vector<1x16x256xf32>
      tpu.vector_store %arg8[%c38_240, %c0_241, %c0_242], %361 {strides = array<i32>} : memref<49x16x256xf32, #tpu.memory_space<vmem>>, vector<1x16x256xf32>,
      %c0_243 = arith.constant 0 : index
      %c39 = arith.constant 39 : index
      %362 = vector.load %arg3[%c0_243, %c39] : memref<16x49xf32, #tpu.memory_space<vmem>>, vector<16x1xf32>
      %c39_244 = arith.constant 39 : index
      %c0_245 = arith.constant 0 : index
      %363 = vector.load %arg5[%c39_244, %c0_245] : memref<49x256xf32, #tpu.memory_space<vmem>>, vector<1x256xf32>
      %364 = vector.shape_cast %362 : vector<16x1xf32> to vector<16x1xf32>
      %365 = vector.broadcast %364 : vector<16x1xf32> to vector<16x256xf32>
      %366 = vector.broadcast %363 : vector<1x256xf32> to vector<16x256xf32>
      %367 = arith.mulf %365, %366 : vector<16x256xf32>
      %c39_246 = arith.constant 39 : index
      %c0_247 = arith.constant 0 : index
      %c0_248 = arith.constant 0 : index
      %368 = vector.load %arg8[%c39_246, %c0_247, %c0_248] : memref<49x16x256xf32, #tpu.memory_space<vmem>>, vector<1x16x256xf32>
      %369 = vector.shape_cast %368 : vector<1x16x256xf32> to vector<16x256xf32>
      %370 = vector.shape_cast %367 : vector<16x256xf32> to vector<1x16x256xf32>
      tpu.vector_store %arg8[%c39_246, %c0_247, %c0_248], %370 {strides = array<i32>} : memref<49x16x256xf32, #tpu.memory_space<vmem>>, vector<1x16x256xf32>,
      %c0_249 = arith.constant 0 : index
      %c40 = arith.constant 40 : index
      %371 = vector.load %arg3[%c0_249, %c40] : memref<16x49xf32, #tpu.memory_space<vmem>>, vector<16x1xf32>
      %c40_250 = arith.constant 40 : index
      %c0_251 = arith.constant 0 : index
      %372 = vector.load %arg5[%c40_250, %c0_251] : memref<49x256xf32, #tpu.memory_space<vmem>>, vector<1x256xf32>
      %373 = vector.shape_cast %371 : vector<16x1xf32> to vector<16x1xf32>
      %374 = vector.broadcast %373 : vector<16x1xf32> to vector<16x256xf32>
      %375 = vector.broadcast %372 : vector<1x256xf32> to vector<16x256xf32>
      %376 = arith.mulf %374, %375 : vector<16x256xf32>
      %c40_252 = arith.constant 40 : index
      %c0_253 = arith.constant 0 : index
      %c0_254 = arith.constant 0 : index
      %377 = vector.load %arg8[%c40_252, %c0_253, %c0_254] : memref<49x16x256xf32, #tpu.memory_space<vmem>>, vector<1x16x256xf32>
      %378 = vector.shape_cast %377 : vector<1x16x256xf32> to vector<16x256xf32>
      %379 = vector.shape_cast %376 : vector<16x256xf32> to vector<1x16x256xf32>
      tpu.vector_store %arg8[%c40_252, %c0_253, %c0_254], %379 {strides = array<i32>} : memref<49x16x256xf32, #tpu.memory_space<vmem>>, vector<1x16x256xf32>,
      %c0_255 = arith.constant 0 : index
      %c41 = arith.constant 41 : index
      %380 = vector.load %arg3[%c0_255, %c41] : memref<16x49xf32, #tpu.memory_space<vmem>>, vector<16x1xf32>
      %c41_256 = arith.constant 41 : index
      %c0_257 = arith.constant 0 : index
      %381 = vector.load %arg5[%c41_256, %c0_257] : memref<49x256xf32, #tpu.memory_space<vmem>>, vector<1x256xf32>
      %382 = vector.shape_cast %380 : vector<16x1xf32> to vector<16x1xf32>
      %383 = vector.broadcast %382 : vector<16x1xf32> to vector<16x256xf32>
      %384 = vector.broadcast %381 : vector<1x256xf32> to vector<16x256xf32>
      %385 = arith.mulf %383, %384 : vector<16x256xf32>
      %c41_258 = arith.constant 41 : index
      %c0_259 = arith.constant 0 : index
      %c0_260 = arith.constant 0 : index
      %386 = vector.load %arg8[%c41_258, %c0_259, %c0_260] : memref<49x16x256xf32, #tpu.memory_space<vmem>>, vector<1x16x256xf32>
      %387 = vector.shape_cast %386 : vector<1x16x256xf32> to vector<16x256xf32>
      %388 = vector.shape_cast %385 : vector<16x256xf32> to vector<1x16x256xf32>
      tpu.vector_store %arg8[%c41_258, %c0_259, %c0_260], %388 {strides = array<i32>} : memref<49x16x256xf32, #tpu.memory_space<vmem>>, vector<1x16x256xf32>,
      %c0_261 = arith.constant 0 : index
      %c42 = arith.constant 42 : index
      %389 = vector.load %arg3[%c0_261, %c42] : memref<16x49xf32, #tpu.memory_space<vmem>>, vector<16x1xf32>
      %c42_262 = arith.constant 42 : index
      %c0_263 = arith.constant 0 : index
      %390 = vector.load %arg5[%c42_262, %c0_263] : memref<49x256xf32, #tpu.memory_space<vmem>>, vector<1x256xf32>
      %391 = vector.shape_cast %389 : vector<16x1xf32> to vector<16x1xf32>
      %392 = vector.broadcast %391 : vector<16x1xf32> to vector<16x256xf32>
      %393 = vector.broadcast %390 : vector<1x256xf32> to vector<16x256xf32>
      %394 = arith.mulf %392, %393 : vector<16x256xf32>
      %c42_264 = arith.constant 42 : index
      %c0_265 = arith.constant 0 : index
      %c0_266 = arith.constant 0 : index
      %395 = vector.load %arg8[%c42_264, %c0_265, %c0_266] : memref<49x16x256xf32, #tpu.memory_space<vmem>>, vector<1x16x256xf32>
      %396 = vector.shape_cast %395 : vector<1x16x256xf32> to vector<16x256xf32>
      %397 = vector.shape_cast %394 : vector<16x256xf32> to vector<1x16x256xf32>
      tpu.vector_store %arg8[%c42_264, %c0_265, %c0_266], %397 {strides = array<i32>} : memref<49x16x256xf32, #tpu.memory_space<vmem>>, vector<1x16x256xf32>,
      %c0_267 = arith.constant 0 : index
      %c43 = arith.constant 43 : index
      %398 = vector.load %arg3[%c0_267, %c43] : memref<16x49xf32, #tpu.memory_space<vmem>>, vector<16x1xf32>
      %c43_268 = arith.constant 43 : index
      %c0_269 = arith.constant 0 : index
      %399 = vector.load %arg5[%c43_268, %c0_269] : memref<49x256xf32, #tpu.memory_space<vmem>>, vector<1x256xf32>
      %400 = vector.shape_cast %398 : vector<16x1xf32> to vector<16x1xf32>
      %401 = vector.broadcast %400 : vector<16x1xf32> to vector<16x256xf32>
      %402 = vector.broadcast %399 : vector<1x256xf32> to vector<16x256xf32>
      %403 = arith.mulf %401, %402 : vector<16x256xf32>
      %c43_270 = arith.constant 43 : index
      %c0_271 = arith.constant 0 : index
      %c0_272 = arith.constant 0 : index
      %404 = vector.load %arg8[%c43_270, %c0_271, %c0_272] : memref<49x16x256xf32, #tpu.memory_space<vmem>>, vector<1x16x256xf32>
      %405 = vector.shape_cast %404 : vector<1x16x256xf32> to vector<16x256xf32>
      %406 = vector.shape_cast %403 : vector<16x256xf32> to vector<1x16x256xf32>
      tpu.vector_store %arg8[%c43_270, %c0_271, %c0_272], %406 {strides = array<i32>} : memref<49x16x256xf32, #tpu.memory_space<vmem>>, vector<1x16x256xf32>,
      %c0_273 = arith.constant 0 : index
      %c44 = arith.constant 44 : index
      %407 = vector.load %arg3[%c0_273, %c44] : memref<16x49xf32, #tpu.memory_space<vmem>>, vector<16x1xf32>
      %c44_274 = arith.constant 44 : index
      %c0_275 = arith.constant 0 : index
      %408 = vector.load %arg5[%c44_274, %c0_275] : memref<49x256xf32, #tpu.memory_space<vmem>>, vector<1x256xf32>
      %409 = vector.shape_cast %407 : vector<16x1xf32> to vector<16x1xf32>
      %410 = vector.broadcast %409 : vector<16x1xf32> to vector<16x256xf32>
      %411 = vector.broadcast %408 : vector<1x256xf32> to vector<16x256xf32>
      %412 = arith.mulf %410, %411 : vector<16x256xf32>
      %c44_276 = arith.constant 44 : index
      %c0_277 = arith.constant 0 : index
      %c0_278 = arith.constant 0 : index
      %413 = vector.load %arg8[%c44_276, %c0_277, %c0_278] : memref<49x16x256xf32, #tpu.memory_space<vmem>>, vector<1x16x256xf32>
      %414 = vector.shape_cast %413 : vector<1x16x256xf32> to vector<16x256xf32>
      %415 = vector.shape_cast %412 : vector<16x256xf32> to vector<1x16x256xf32>
      tpu.vector_store %arg8[%c44_276, %c0_277, %c0_278], %415 {strides = array<i32>} : memref<49x16x256xf32, #tpu.memory_space<vmem>>, vector<1x16x256xf32>,
      %c0_279 = arith.constant 0 : index
      %c45 = arith.constant 45 : index
      %416 = vector.load %arg3[%c0_279, %c45] : memref<16x49xf32, #tpu.memory_space<vmem>>, vector<16x1xf32>
      %c45_280 = arith.constant 45 : index
      %c0_281 = arith.constant 0 : index
      %417 = vector.load %arg5[%c45_280, %c0_281] : memref<49x256xf32, #tpu.memory_space<vmem>>, vector<1x256xf32>
      %418 = vector.shape_cast %416 : vector<16x1xf32> to vector<16x1xf32>
      %419 = vector.broadcast %418 : vector<16x1xf32> to vector<16x256xf32>
      %420 = vector.broadcast %417 : vector<1x256xf32> to vector<16x256xf32>
      %421 = arith.mulf %419, %420 : vector<16x256xf32>
      %c45_282 = arith.constant 45 : index
      %c0_283 = arith.constant 0 : index
      %c0_284 = arith.constant 0 : index
      %422 = vector.load %arg8[%c45_282, %c0_283, %c0_284] : memref<49x16x256xf32, #tpu.memory_space<vmem>>, vector<1x16x256xf32>
      %423 = vector.shape_cast %422 : vector<1x16x256xf32> to vector<16x256xf32>
      %424 = vector.shape_cast %421 : vector<16x256xf32> to vector<1x16x256xf32>
      tpu.vector_store %arg8[%c45_282, %c0_283, %c0_284], %424 {strides = array<i32>} : memref<49x16x256xf32, #tpu.memory_space<vmem>>, vector<1x16x256xf32>,
      %c0_285 = arith.constant 0 : index
      %c46 = arith.constant 46 : index
      %425 = vector.load %arg3[%c0_285, %c46] : memref<16x49xf32, #tpu.memory_space<vmem>>, vector<16x1xf32>
      %c46_286 = arith.constant 46 : index
      %c0_287 = arith.constant 0 : index
      %426 = vector.load %arg5[%c46_286, %c0_287] : memref<49x256xf32, #tpu.memory_space<vmem>>, vector<1x256xf32>
      %427 = vector.shape_cast %425 : vector<16x1xf32> to vector<16x1xf32>
      %428 = vector.broadcast %427 : vector<16x1xf32> to vector<16x256xf32>
      %429 = vector.broadcast %426 : vector<1x256xf32> to vector<16x256xf32>
      %430 = arith.mulf %428, %429 : vector<16x256xf32>
      %c46_288 = arith.constant 46 : index
      %c0_289 = arith.constant 0 : index
      %c0_290 = arith.constant 0 : index
      %431 = vector.load %arg8[%c46_288, %c0_289, %c0_290] : memref<49x16x256xf32, #tpu.memory_space<vmem>>, vector<1x16x256xf32>
      %432 = vector.shape_cast %431 : vector<1x16x256xf32> to vector<16x256xf32>
      %433 = vector.shape_cast %430 : vector<16x256xf32> to vector<1x16x256xf32>
      tpu.vector_store %arg8[%c46_288, %c0_289, %c0_290], %433 {strides = array<i32>} : memref<49x16x256xf32, #tpu.memory_space<vmem>>, vector<1x16x256xf32>,
      %c0_291 = arith.constant 0 : index
      %c47 = arith.constant 47 : index
      %434 = vector.load %arg3[%c0_291, %c47] : memref<16x49xf32, #tpu.memory_space<vmem>>, vector<16x1xf32>
      %c47_292 = arith.constant 47 : index
      %c0_293 = arith.constant 0 : index
      %435 = vector.load %arg5[%c47_292, %c0_293] : memref<49x256xf32, #tpu.memory_space<vmem>>, vector<1x256xf32>
      %436 = vector.shape_cast %434 : vector<16x1xf32> to vector<16x1xf32>
      %437 = vector.broadcast %436 : vector<16x1xf32> to vector<16x256xf32>
      %438 = vector.broadcast %435 : vector<1x256xf32> to vector<16x256xf32>
      %439 = arith.mulf %437, %438 : vector<16x256xf32>
      %c47_294 = arith.constant 47 : index
      %c0_295 = arith.constant 0 : index
      %c0_296 = arith.constant 0 : index
      %440 = vector.load %arg8[%c47_294, %c0_295, %c0_296] : memref<49x16x256xf32, #tpu.memory_space<vmem>>, vector<1x16x256xf32>
      %441 = vector.shape_cast %440 : vector<1x16x256xf32> to vector<16x256xf32>
      %442 = vector.shape_cast %439 : vector<16x256xf32> to vector<1x16x256xf32>
      tpu.vector_store %arg8[%c47_294, %c0_295, %c0_296], %442 {strides = array<i32>} : memref<49x16x256xf32, #tpu.memory_space<vmem>>, vector<1x16x256xf32>,
      %c0_297 = arith.constant 0 : index
      %c48 = arith.constant 48 : index
      %443 = vector.load %arg3[%c0_297, %c48] : memref<16x49xf32, #tpu.memory_space<vmem>>, vector<16x1xf32>
      %c48_298 = arith.constant 48 : index
      %c0_299 = arith.constant 0 : index
      %444 = vector.load %arg5[%c48_298, %c0_299] : memref<49x256xf32, #tpu.memory_space<vmem>>, vector<1x256xf32>
      %445 = vector.shape_cast %443 : vector<16x1xf32> to vector<16x1xf32>
      %446 = vector.broadcast %445 : vector<16x1xf32> to vector<16x256xf32>
      %447 = vector.broadcast %444 : vector<1x256xf32> to vector<16x256xf32>
      %448 = arith.mulf %446, %447 : vector<16x256xf32>
      %c48_300 = arith.constant 48 : index
      %c0_301 = arith.constant 0 : index
      %c0_302 = arith.constant 0 : index
      %449 = vector.load %arg8[%c48_300, %c0_301, %c0_302] : memref<49x16x256xf32, #tpu.memory_space<vmem>>, vector<1x16x256xf32>
      %450 = vector.shape_cast %449 : vector<1x16x256xf32> to vector<16x256xf32>
      %451 = vector.shape_cast %448 : vector<16x256xf32> to vector<1x16x256xf32>
      tpu.vector_store %arg8[%c48_300, %c0_301, %c0_302], %451 {strides = array<i32>} : memref<49x16x256xf32, #tpu.memory_space<vmem>>, vector<1x16x256xf32>,
    } else {
    }
    %c0 = arith.constant 0 : index
    %c0_1 = arith.constant 0 : index
    %3 = vector.load %arg4[%c0, %c0_1] : memref<16x1xf32, #tpu.memory_space<vmem>>, vector<16x1xf32>
    %4 = vector.shape_cast %3 : vector<16x1xf32> to vector<16x1xf32>
    %5 = vector.broadcast %4 : vector<16x1xf32> to vector<16x256xf32>
    %c0_i32_2 = arith.constant 0 : i32
    %c2_i32 = arith.constant 2 : i32
    %6 = arith.addi %c0_i32_2, %c2_i32 : i32
    %c1_i32 = arith.constant 1 : i32
    scf.for %arg9 = %c0_i32_2 to %6 step %c1_i32  : i32 {
      %7 = arith.index_cast %arg9 : i32 to index
      %c0_4 = arith.constant 0 : index
      %c0_5 = arith.constant 0 : index
      %8 = vector.load %arg2[%7, %c0_4, %c0_5] : memref<2x16x256xf32, #tpu.memory_space<vmem>>, vector<1x16x256xf32>
      %9 = vector.shape_cast %8 : vector<1x16x256xf32> to vector<16x256xf32>
      %c0_6 = arith.constant 0 : index
      %c128 = arith.constant 128 : index
      %10 = vector.load %arg7[%c0_6, %c128] : memref<16x512xf32, #tpu.memory_space<vmem>>, vector<16x256xf32>
      tpu.vector_store %arg7[%c0_6, %c128], %9 {strides = array<i32>} : memref<16x512xf32, #tpu.memory_space<vmem>>, vector<16x256xf32>,
      %c0_7 = arith.constant 0 : index
      %c0_8 = arith.constant 0 : index
      %11 = vector.load %arg7[%c0_7, %c0_8] : memref<16x512xf32, #tpu.memory_space<vmem>>, vector<16x512xf32>
      %12 = vector.extract_strided_slice %11 {offsets = [0, 77], sizes = [16, 256], strides = [1, 1]} : vector<16x512xf32> to vector<16x256xf32>
      %c0_9 = arith.constant 0 : index
      %c0_10 = arith.constant 0 : index
      %c0_11 = arith.constant 0 : index
      %13 = vector.load %arg8[%c0_9, %c0_10, %c0_11] : memref<49x16x256xf32, #tpu.memory_space<vmem>>, vector<1x16x256xf32>
      %14 = vector.shape_cast %13 : vector<1x16x256xf32> to vector<16x256xf32>
      %15 = arith.mulf %12, %14 : vector<16x256xf32>
      %16 = arith.addf %5, %15 : vector<16x256xf32>
      %17 = vector.extract_strided_slice %11 {offsets = [0, 78], sizes = [16, 256], strides = [1, 1]} : vector<16x512xf32> to vector<16x256xf32>
      %c1 = arith.constant 1 : index
      %c0_12 = arith.constant 0 : index
      %c0_13 = arith.constant 0 : index
      %18 = vector.load %arg8[%c1, %c0_12, %c0_13] : memref<49x16x256xf32, #tpu.memory_space<vmem>>, vector<1x16x256xf32>
      %19 = vector.shape_cast %18 : vector<1x16x256xf32> to vector<16x256xf32>
      %20 = arith.mulf %17, %19 : vector<16x256xf32>
      %21 = arith.addf %16, %20 : vector<16x256xf32>
      %22 = vector.extract_strided_slice %11 {offsets = [0, 79], sizes = [16, 256], strides = [1, 1]} : vector<16x512xf32> to vector<16x256xf32>
      %c2 = arith.constant 2 : index
      %c0_14 = arith.constant 0 : index
      %c0_15 = arith.constant 0 : index
      %23 = vector.load %arg8[%c2, %c0_14, %c0_15] : memref<49x16x256xf32, #tpu.memory_space<vmem>>, vector<1x16x256xf32>
      %24 = vector.shape_cast %23 : vector<1x16x256xf32> to vector<16x256xf32>
      %25 = arith.mulf %22, %24 : vector<16x256xf32>
      %26 = arith.addf %21, %25 : vector<16x256xf32>
      %27 = vector.extract_strided_slice %11 {offsets = [0, 80], sizes = [16, 256], strides = [1, 1]} : vector<16x512xf32> to vector<16x256xf32>
      %c3 = arith.constant 3 : index
      %c0_16 = arith.constant 0 : index
      %c0_17 = arith.constant 0 : index
      %28 = vector.load %arg8[%c3, %c0_16, %c0_17] : memref<49x16x256xf32, #tpu.memory_space<vmem>>, vector<1x16x256xf32>
      %29 = vector.shape_cast %28 : vector<1x16x256xf32> to vector<16x256xf32>
      %30 = arith.mulf %27, %29 : vector<16x256xf32>
      %31 = arith.addf %26, %30 : vector<16x256xf32>
      %32 = vector.extract_strided_slice %11 {offsets = [0, 81], sizes = [16, 256], strides = [1, 1]} : vector<16x512xf32> to vector<16x256xf32>
      %c4 = arith.constant 4 : index
      %c0_18 = arith.constant 0 : index
      %c0_19 = arith.constant 0 : index
      %33 = vector.load %arg8[%c4, %c0_18, %c0_19] : memref<49x16x256xf32, #tpu.memory_space<vmem>>, vector<1x16x256xf32>
      %34 = vector.shape_cast %33 : vector<1x16x256xf32> to vector<16x256xf32>
      %35 = arith.mulf %32, %34 : vector<16x256xf32>
      %36 = arith.addf %31, %35 : vector<16x256xf32>
      %37 = vector.extract_strided_slice %11 {offsets = [0, 82], sizes = [16, 256], strides = [1, 1]} : vector<16x512xf32> to vector<16x256xf32>
      %c5 = arith.constant 5 : index
      %c0_20 = arith.constant 0 : index
      %c0_21 = arith.constant 0 : index
      %38 = vector.load %arg8[%c5, %c0_20, %c0_21] : memref<49x16x256xf32, #tpu.memory_space<vmem>>, vector<1x16x256xf32>
      %39 = vector.shape_cast %38 : vector<1x16x256xf32> to vector<16x256xf32>
      %40 = arith.mulf %37, %39 : vector<16x256xf32>
      %41 = arith.addf %36, %40 : vector<16x256xf32>
      %42 = vector.extract_strided_slice %11 {offsets = [0, 83], sizes = [16, 256], strides = [1, 1]} : vector<16x512xf32> to vector<16x256xf32>
      %c6 = arith.constant 6 : index
      %c0_22 = arith.constant 0 : index
      %c0_23 = arith.constant 0 : index
      %43 = vector.load %arg8[%c6, %c0_22, %c0_23] : memref<49x16x256xf32, #tpu.memory_space<vmem>>, vector<1x16x256xf32>
      %44 = vector.shape_cast %43 : vector<1x16x256xf32> to vector<16x256xf32>
      %45 = arith.mulf %42, %44 : vector<16x256xf32>
      %46 = arith.addf %41, %45 : vector<16x256xf32>
      %47 = vector.extract_strided_slice %11 {offsets = [0, 93], sizes = [16, 256], strides = [1, 1]} : vector<16x512xf32> to vector<16x256xf32>
      %c7 = arith.constant 7 : index
      %c0_24 = arith.constant 0 : index
      %c0_25 = arith.constant 0 : index
      %48 = vector.load %arg8[%c7, %c0_24, %c0_25] : memref<49x16x256xf32, #tpu.memory_space<vmem>>, vector<1x16x256xf32>
      %49 = vector.shape_cast %48 : vector<1x16x256xf32> to vector<16x256xf32>
      %50 = arith.mulf %47, %49 : vector<16x256xf32>
      %51 = arith.addf %46, %50 : vector<16x256xf32>
      %52 = vector.extract_strided_slice %11 {offsets = [0, 94], sizes = [16, 256], strides = [1, 1]} : vector<16x512xf32> to vector<16x256xf32>
      %c8 = arith.constant 8 : index
      %c0_26 = arith.constant 0 : index
      %c0_27 = arith.constant 0 : index
      %53 = vector.load %arg8[%c8, %c0_26, %c0_27] : memref<49x16x256xf32, #tpu.memory_space<vmem>>, vector<1x16x256xf32>
      %54 = vector.shape_cast %53 : vector<1x16x256xf32> to vector<16x256xf32>
      %55 = arith.mulf %52, %54 : vector<16x256xf32>
      %56 = arith.addf %51, %55 : vector<16x256xf32>
      %57 = vector.extract_strided_slice %11 {offsets = [0, 95], sizes = [16, 256], strides = [1, 1]} : vector<16x512xf32> to vector<16x256xf32>
      %c9 = arith.constant 9 : index
      %c0_28 = arith.constant 0 : index
      %c0_29 = arith.constant 0 : index
      %58 = vector.load %arg8[%c9, %c0_28, %c0_29] : memref<49x16x256xf32, #tpu.memory_space<vmem>>, vector<1x16x256xf32>
      %59 = vector.shape_cast %58 : vector<1x16x256xf32> to vector<16x256xf32>
      %60 = arith.mulf %57, %59 : vector<16x256xf32>
      %61 = arith.addf %56, %60 : vector<16x256xf32>
      %62 = vector.extract_strided_slice %11 {offsets = [0, 96], sizes = [16, 256], strides = [1, 1]} : vector<16x512xf32> to vector<16x256xf32>
      %c10 = arith.constant 10 : index
      %c0_30 = arith.constant 0 : index
      %c0_31 = arith.constant 0 : index
      %63 = vector.load %arg8[%c10, %c0_30, %c0_31] : memref<49x16x256xf32, #tpu.memory_space<vmem>>, vector<1x16x256xf32>
      %64 = vector.shape_cast %63 : vector<1x16x256xf32> to vector<16x256xf32>
      %65 = arith.mulf %62, %64 : vector<16x256xf32>
      %66 = arith.addf %61, %65 : vector<16x256xf32>
      %67 = vector.extract_strided_slice %11 {offsets = [0, 97], sizes = [16, 256], strides = [1, 1]} : vector<16x512xf32> to vector<16x256xf32>
      %c11 = arith.constant 11 : index
      %c0_32 = arith.constant 0 : index
      %c0_33 = arith.constant 0 : index
      %68 = vector.load %arg8[%c11, %c0_32, %c0_33] : memref<49x16x256xf32, #tpu.memory_space<vmem>>, vector<1x16x256xf32>
      %69 = vector.shape_cast %68 : vector<1x16x256xf32> to vector<16x256xf32>
      %70 = arith.mulf %67, %69 : vector<16x256xf32>
      %71 = arith.addf %66, %70 : vector<16x256xf32>
      %72 = vector.extract_strided_slice %11 {offsets = [0, 98], sizes = [16, 256], strides = [1, 1]} : vector<16x512xf32> to vector<16x256xf32>
      %c12 = arith.constant 12 : index
      %c0_34 = arith.constant 0 : index
      %c0_35 = arith.constant 0 : index
      %73 = vector.load %arg8[%c12, %c0_34, %c0_35] : memref<49x16x256xf32, #tpu.memory_space<vmem>>, vector<1x16x256xf32>
      %74 = vector.shape_cast %73 : vector<1x16x256xf32> to vector<16x256xf32>
      %75 = arith.mulf %72, %74 : vector<16x256xf32>
      %76 = arith.addf %71, %75 : vector<16x256xf32>
      %77 = vector.extract_strided_slice %11 {offsets = [0, 99], sizes = [16, 256], strides = [1, 1]} : vector<16x512xf32> to vector<16x256xf32>
      %c13 = arith.constant 13 : index
      %c0_36 = arith.constant 0 : index
      %c0_37 = arith.constant 0 : index
      %78 = vector.load %arg8[%c13, %c0_36, %c0_37] : memref<49x16x256xf32, #tpu.memory_space<vmem>>, vector<1x16x256xf32>
      %79 = vector.shape_cast %78 : vector<1x16x256xf32> to vector<16x256xf32>
      %80 = arith.mulf %77, %79 : vector<16x256xf32>
      %81 = arith.addf %76, %80 : vector<16x256xf32>
      %82 = vector.extract_strided_slice %11 {offsets = [0, 109], sizes = [16, 256], strides = [1, 1]} : vector<16x512xf32> to vector<16x256xf32>
      %c14 = arith.constant 14 : index
      %c0_38 = arith.constant 0 : index
      %c0_39 = arith.constant 0 : index
      %83 = vector.load %arg8[%c14, %c0_38, %c0_39] : memref<49x16x256xf32, #tpu.memory_space<vmem>>, vector<1x16x256xf32>
      %84 = vector.shape_cast %83 : vector<1x16x256xf32> to vector<16x256xf32>
      %85 = arith.mulf %82, %84 : vector<16x256xf32>
      %86 = arith.addf %81, %85 : vector<16x256xf32>
      %87 = vector.extract_strided_slice %11 {offsets = [0, 110], sizes = [16, 256], strides = [1, 1]} : vector<16x512xf32> to vector<16x256xf32>
      %c15 = arith.constant 15 : index
      %c0_40 = arith.constant 0 : index
      %c0_41 = arith.constant 0 : index
      %88 = vector.load %arg8[%c15, %c0_40, %c0_41] : memref<49x16x256xf32, #tpu.memory_space<vmem>>, vector<1x16x256xf32>
      %89 = vector.shape_cast %88 : vector<1x16x256xf32> to vector<16x256xf32>
      %90 = arith.mulf %87, %89 : vector<16x256xf32>
      %91 = arith.addf %86, %90 : vector<16x256xf32>
      %92 = vector.extract_strided_slice %11 {offsets = [0, 111], sizes = [16, 256], strides = [1, 1]} : vector<16x512xf32> to vector<16x256xf32>
      %c16 = arith.constant 16 : index
      %c0_42 = arith.constant 0 : index
      %c0_43 = arith.constant 0 : index
      %93 = vector.load %arg8[%c16, %c0_42, %c0_43] : memref<49x16x256xf32, #tpu.memory_space<vmem>>, vector<1x16x256xf32>
      %94 = vector.shape_cast %93 : vector<1x16x256xf32> to vector<16x256xf32>
      %95 = arith.mulf %92, %94 : vector<16x256xf32>
      %96 = arith.addf %91, %95 : vector<16x256xf32>
      %97 = vector.extract_strided_slice %11 {offsets = [0, 112], sizes = [16, 256], strides = [1, 1]} : vector<16x512xf32> to vector<16x256xf32>
      %c17 = arith.constant 17 : index
      %c0_44 = arith.constant 0 : index
      %c0_45 = arith.constant 0 : index
      %98 = vector.load %arg8[%c17, %c0_44, %c0_45] : memref<49x16x256xf32, #tpu.memory_space<vmem>>, vector<1x16x256xf32>
      %99 = vector.shape_cast %98 : vector<1x16x256xf32> to vector<16x256xf32>
      %100 = arith.mulf %97, %99 : vector<16x256xf32>
      %101 = arith.addf %96, %100 : vector<16x256xf32>
      %102 = vector.extract_strided_slice %11 {offsets = [0, 113], sizes = [16, 256], strides = [1, 1]} : vector<16x512xf32> to vector<16x256xf32>
      %c18 = arith.constant 18 : index
      %c0_46 = arith.constant 0 : index
      %c0_47 = arith.constant 0 : index
      %103 = vector.load %arg8[%c18, %c0_46, %c0_47] : memref<49x16x256xf32, #tpu.memory_space<vmem>>, vector<1x16x256xf32>
      %104 = vector.shape_cast %103 : vector<1x16x256xf32> to vector<16x256xf32>
      %105 = arith.mulf %102, %104 : vector<16x256xf32>
      %106 = arith.addf %101, %105 : vector<16x256xf32>
      %107 = vector.extract_strided_slice %11 {offsets = [0, 114], sizes = [16, 256], strides = [1, 1]} : vector<16x512xf32> to vector<16x256xf32>
      %c19 = arith.constant 19 : index
      %c0_48 = arith.constant 0 : index
      %c0_49 = arith.constant 0 : index
      %108 = vector.load %arg8[%c19, %c0_48, %c0_49] : memref<49x16x256xf32, #tpu.memory_space<vmem>>, vector<1x16x256xf32>
      %109 = vector.shape_cast %108 : vector<1x16x256xf32> to vector<16x256xf32>
      %110 = arith.mulf %107, %109 : vector<16x256xf32>
      %111 = arith.addf %106, %110 : vector<16x256xf32>
      %112 = vector.extract_strided_slice %11 {offsets = [0, 115], sizes = [16, 256], strides = [1, 1]} : vector<16x512xf32> to vector<16x256xf32>
      %c20 = arith.constant 20 : index
      %c0_50 = arith.constant 0 : index
      %c0_51 = arith.constant 0 : index
      %113 = vector.load %arg8[%c20, %c0_50, %c0_51] : memref<49x16x256xf32, #tpu.memory_space<vmem>>, vector<1x16x256xf32>
      %114 = vector.shape_cast %113 : vector<1x16x256xf32> to vector<16x256xf32>
      %115 = arith.mulf %112, %114 : vector<16x256xf32>
      %116 = arith.addf %111, %115 : vector<16x256xf32>
      %117 = vector.extract_strided_slice %11 {offsets = [0, 125], sizes = [16, 256], strides = [1, 1]} : vector<16x512xf32> to vector<16x256xf32>
      %c21 = arith.constant 21 : index
      %c0_52 = arith.constant 0 : index
      %c0_53 = arith.constant 0 : index
      %118 = vector.load %arg8[%c21, %c0_52, %c0_53] : memref<49x16x256xf32, #tpu.memory_space<vmem>>, vector<1x16x256xf32>
      %119 = vector.shape_cast %118 : vector<1x16x256xf32> to vector<16x256xf32>
      %120 = arith.mulf %117, %119 : vector<16x256xf32>
      %121 = arith.addf %116, %120 : vector<16x256xf32>
      %122 = vector.extract_strided_slice %11 {offsets = [0, 126], sizes = [16, 256], strides = [1, 1]} : vector<16x512xf32> to vector<16x256xf32>
      %c22 = arith.constant 22 : index
      %c0_54 = arith.constant 0 : index
      %c0_55 = arith.constant 0 : index
      %123 = vector.load %arg8[%c22, %c0_54, %c0_55] : memref<49x16x256xf32, #tpu.memory_space<vmem>>, vector<1x16x256xf32>
      %124 = vector.shape_cast %123 : vector<1x16x256xf32> to vector<16x256xf32>
      %125 = arith.mulf %122, %124 : vector<16x256xf32>
      %126 = arith.addf %121, %125 : vector<16x256xf32>
      %127 = vector.extract_strided_slice %11 {offsets = [0, 127], sizes = [16, 256], strides = [1, 1]} : vector<16x512xf32> to vector<16x256xf32>
      %c23 = arith.constant 23 : index
      %c0_56 = arith.constant 0 : index
      %c0_57 = arith.constant 0 : index
      %128 = vector.load %arg8[%c23, %c0_56, %c0_57] : memref<49x16x256xf32, #tpu.memory_space<vmem>>, vector<1x16x256xf32>
      %129 = vector.shape_cast %128 : vector<1x16x256xf32> to vector<16x256xf32>
      %130 = arith.mulf %127, %129 : vector<16x256xf32>
      %131 = arith.addf %126, %130 : vector<16x256xf32>
      %132 = vector.extract_strided_slice %11 {offsets = [0, 128], sizes = [16, 256], strides = [1, 1]} : vector<16x512xf32> to vector<16x256xf32>
      %c24 = arith.constant 24 : index
      %c0_58 = arith.constant 0 : index
      %c0_59 = arith.constant 0 : index
      %133 = vector.load %arg8[%c24, %c0_58, %c0_59] : memref<49x16x256xf32, #tpu.memory_space<vmem>>, vector<1x16x256xf32>
      %134 = vector.shape_cast %133 : vector<1x16x256xf32> to vector<16x256xf32>
      %135 = arith.mulf %132, %134 : vector<16x256xf32>
      %136 = arith.addf %131, %135 : vector<16x256xf32>
      %137 = vector.extract_strided_slice %11 {offsets = [0, 129], sizes = [16, 256], strides = [1, 1]} : vector<16x512xf32> to vector<16x256xf32>
      %c25 = arith.constant 25 : index
      %c0_60 = arith.constant 0 : index
      %c0_61 = arith.constant 0 : index
      %138 = vector.load %arg8[%c25, %c0_60, %c0_61] : memref<49x16x256xf32, #tpu.memory_space<vmem>>, vector<1x16x256xf32>
      %139 = vector.shape_cast %138 : vector<1x16x256xf32> to vector<16x256xf32>
      %140 = arith.mulf %137, %139 : vector<16x256xf32>
      %141 = arith.addf %136, %140 : vector<16x256xf32>
      %142 = vector.extract_strided_slice %11 {offsets = [0, 130], sizes = [16, 256], strides = [1, 1]} : vector<16x512xf32> to vector<16x256xf32>
      %c26 = arith.constant 26 : index
      %c0_62 = arith.constant 0 : index
      %c0_63 = arith.constant 0 : index
      %143 = vector.load %arg8[%c26, %c0_62, %c0_63] : memref<49x16x256xf32, #tpu.memory_space<vmem>>, vector<1x16x256xf32>
      %144 = vector.shape_cast %143 : vector<1x16x256xf32> to vector<16x256xf32>
      %145 = arith.mulf %142, %144 : vector<16x256xf32>
      %146 = arith.addf %141, %145 : vector<16x256xf32>
      %147 = vector.extract_strided_slice %11 {offsets = [0, 131], sizes = [16, 256], strides = [1, 1]} : vector<16x512xf32> to vector<16x256xf32>
      %c27 = arith.constant 27 : index
      %c0_64 = arith.constant 0 : index
      %c0_65 = arith.constant 0 : index
      %148 = vector.load %arg8[%c27, %c0_64, %c0_65] : memref<49x16x256xf32, #tpu.memory_space<vmem>>, vector<1x16x256xf32>
      %149 = vector.shape_cast %148 : vector<1x16x256xf32> to vector<16x256xf32>
      %150 = arith.mulf %147, %149 : vector<16x256xf32>
      %151 = arith.addf %146, %150 : vector<16x256xf32>
      %152 = vector.extract_strided_slice %11 {offsets = [0, 141], sizes = [16, 256], strides = [1, 1]} : vector<16x512xf32> to vector<16x256xf32>
      %c28 = arith.constant 28 : index
      %c0_66 = arith.constant 0 : index
      %c0_67 = arith.constant 0 : index
      %153 = vector.load %arg8[%c28, %c0_66, %c0_67] : memref<49x16x256xf32, #tpu.memory_space<vmem>>, vector<1x16x256xf32>
      %154 = vector.shape_cast %153 : vector<1x16x256xf32> to vector<16x256xf32>
      %155 = arith.mulf %152, %154 : vector<16x256xf32>
      %156 = arith.addf %151, %155 : vector<16x256xf32>
      %157 = vector.extract_strided_slice %11 {offsets = [0, 142], sizes = [16, 256], strides = [1, 1]} : vector<16x512xf32> to vector<16x256xf32>
      %c29 = arith.constant 29 : index
      %c0_68 = arith.constant 0 : index
      %c0_69 = arith.constant 0 : index
      %158 = vector.load %arg8[%c29, %c0_68, %c0_69] : memref<49x16x256xf32, #tpu.memory_space<vmem>>, vector<1x16x256xf32>
      %159 = vector.shape_cast %158 : vector<1x16x256xf32> to vector<16x256xf32>
      %160 = arith.mulf %157, %159 : vector<16x256xf32>
      %161 = arith.addf %156, %160 : vector<16x256xf32>
      %162 = vector.extract_strided_slice %11 {offsets = [0, 143], sizes = [16, 256], strides = [1, 1]} : vector<16x512xf32> to vector<16x256xf32>
      %c30 = arith.constant 30 : index
      %c0_70 = arith.constant 0 : index
      %c0_71 = arith.constant 0 : index
      %163 = vector.load %arg8[%c30, %c0_70, %c0_71] : memref<49x16x256xf32, #tpu.memory_space<vmem>>, vector<1x16x256xf32>
      %164 = vector.shape_cast %163 : vector<1x16x256xf32> to vector<16x256xf32>
      %165 = arith.mulf %162, %164 : vector<16x256xf32>
      %166 = arith.addf %161, %165 : vector<16x256xf32>
      %167 = vector.extract_strided_slice %11 {offsets = [0, 144], sizes = [16, 256], strides = [1, 1]} : vector<16x512xf32> to vector<16x256xf32>
      %c31 = arith.constant 31 : index
      %c0_72 = arith.constant 0 : index
      %c0_73 = arith.constant 0 : index
      %168 = vector.load %arg8[%c31, %c0_72, %c0_73] : memref<49x16x256xf32, #tpu.memory_space<vmem>>, vector<1x16x256xf32>
      %169 = vector.shape_cast %168 : vector<1x16x256xf32> to vector<16x256xf32>
      %170 = arith.mulf %167, %169 : vector<16x256xf32>
      %171 = arith.addf %166, %170 : vector<16x256xf32>
      %172 = vector.extract_strided_slice %11 {offsets = [0, 145], sizes = [16, 256], strides = [1, 1]} : vector<16x512xf32> to vector<16x256xf32>
      %c32 = arith.constant 32 : index
      %c0_74 = arith.constant 0 : index
      %c0_75 = arith.constant 0 : index
      %173 = vector.load %arg8[%c32, %c0_74, %c0_75] : memref<49x16x256xf32, #tpu.memory_space<vmem>>, vector<1x16x256xf32>
      %174 = vector.shape_cast %173 : vector<1x16x256xf32> to vector<16x256xf32>
      %175 = arith.mulf %172, %174 : vector<16x256xf32>
      %176 = arith.addf %171, %175 : vector<16x256xf32>
      %177 = vector.extract_strided_slice %11 {offsets = [0, 146], sizes = [16, 256], strides = [1, 1]} : vector<16x512xf32> to vector<16x256xf32>
      %c33 = arith.constant 33 : index
      %c0_76 = arith.constant 0 : index
      %c0_77 = arith.constant 0 : index
      %178 = vector.load %arg8[%c33, %c0_76, %c0_77] : memref<49x16x256xf32, #tpu.memory_space<vmem>>, vector<1x16x256xf32>
      %179 = vector.shape_cast %178 : vector<1x16x256xf32> to vector<16x256xf32>
      %180 = arith.mulf %177, %179 : vector<16x256xf32>
      %181 = arith.addf %176, %180 : vector<16x256xf32>
      %182 = vector.extract_strided_slice %11 {offsets = [0, 147], sizes = [16, 256], strides = [1, 1]} : vector<16x512xf32> to vector<16x256xf32>
      %c34 = arith.constant 34 : index
      %c0_78 = arith.constant 0 : index
      %c0_79 = arith.constant 0 : index
      %183 = vector.load %arg8[%c34, %c0_78, %c0_79] : memref<49x16x256xf32, #tpu.memory_space<vmem>>, vector<1x16x256xf32>
      %184 = vector.shape_cast %183 : vector<1x16x256xf32> to vector<16x256xf32>
      %185 = arith.mulf %182, %184 : vector<16x256xf32>
      %186 = arith.addf %181, %185 : vector<16x256xf32>
      %187 = vector.extract_strided_slice %11 {offsets = [0, 157], sizes = [16, 256], strides = [1, 1]} : vector<16x512xf32> to vector<16x256xf32>
      %c35 = arith.constant 35 : index
      %c0_80 = arith.constant 0 : index
      %c0_81 = arith.constant 0 : index
      %188 = vector.load %arg8[%c35, %c0_80, %c0_81] : memref<49x16x256xf32, #tpu.memory_space<vmem>>, vector<1x16x256xf32>
      %189 = vector.shape_cast %188 : vector<1x16x256xf32> to vector<16x256xf32>
      %190 = arith.mulf %187, %189 : vector<16x256xf32>
      %191 = arith.addf %186, %190 : vector<16x256xf32>
      %192 = vector.extract_strided_slice %11 {offsets = [0, 158], sizes = [16, 256], strides = [1, 1]} : vector<16x512xf32> to vector<16x256xf32>
      %c36 = arith.constant 36 : index
      %c0_82 = arith.constant 0 : index
      %c0_83 = arith.constant 0 : index
      %193 = vector.load %arg8[%c36, %c0_82, %c0_83] : memref<49x16x256xf32, #tpu.memory_space<vmem>>, vector<1x16x256xf32>
      %194 = vector.shape_cast %193 : vector<1x16x256xf32> to vector<16x256xf32>
      %195 = arith.mulf %192, %194 : vector<16x256xf32>
      %196 = arith.addf %191, %195 : vector<16x256xf32>
      %197 = vector.extract_strided_slice %11 {offsets = [0, 159], sizes = [16, 256], strides = [1, 1]} : vector<16x512xf32> to vector<16x256xf32>
      %c37 = arith.constant 37 : index
      %c0_84 = arith.constant 0 : index
      %c0_85 = arith.constant 0 : index
      %198 = vector.load %arg8[%c37, %c0_84, %c0_85] : memref<49x16x256xf32, #tpu.memory_space<vmem>>, vector<1x16x256xf32>
      %199 = vector.shape_cast %198 : vector<1x16x256xf32> to vector<16x256xf32>
      %200 = arith.mulf %197, %199 : vector<16x256xf32>
      %201 = arith.addf %196, %200 : vector<16x256xf32>
      %202 = vector.extract_strided_slice %11 {offsets = [0, 160], sizes = [16, 256], strides = [1, 1]} : vector<16x512xf32> to vector<16x256xf32>
      %c38 = arith.constant 38 : index
      %c0_86 = arith.constant 0 : index
      %c0_87 = arith.constant 0 : index
      %203 = vector.load %arg8[%c38, %c0_86, %c0_87] : memref<49x16x256xf32, #tpu.memory_space<vmem>>, vector<1x16x256xf32>
      %204 = vector.shape_cast %203 : vector<1x16x256xf32> to vector<16x256xf32>
      %205 = arith.mulf %202, %204 : vector<16x256xf32>
      %206 = arith.addf %201, %205 : vector<16x256xf32>
      %207 = vector.extract_strided_slice %11 {offsets = [0, 161], sizes = [16, 256], strides = [1, 1]} : vector<16x512xf32> to vector<16x256xf32>
      %c39 = arith.constant 39 : index
      %c0_88 = arith.constant 0 : index
      %c0_89 = arith.constant 0 : index
      %208 = vector.load %arg8[%c39, %c0_88, %c0_89] : memref<49x16x256xf32, #tpu.memory_space<vmem>>, vector<1x16x256xf32>
      %209 = vector.shape_cast %208 : vector<1x16x256xf32> to vector<16x256xf32>
      %210 = arith.mulf %207, %209 : vector<16x256xf32>
      %211 = arith.addf %206, %210 : vector<16x256xf32>
      %212 = vector.extract_strided_slice %11 {offsets = [0, 162], sizes = [16, 256], strides = [1, 1]} : vector<16x512xf32> to vector<16x256xf32>
      %c40 = arith.constant 40 : index
      %c0_90 = arith.constant 0 : index
      %c0_91 = arith.constant 0 : index
      %213 = vector.load %arg8[%c40, %c0_90, %c0_91] : memref<49x16x256xf32, #tpu.memory_space<vmem>>, vector<1x16x256xf32>
      %214 = vector.shape_cast %213 : vector<1x16x256xf32> to vector<16x256xf32>
      %215 = arith.mulf %212, %214 : vector<16x256xf32>
      %216 = arith.addf %211, %215 : vector<16x256xf32>
      %217 = vector.extract_strided_slice %11 {offsets = [0, 163], sizes = [16, 256], strides = [1, 1]} : vector<16x512xf32> to vector<16x256xf32>
      %c41 = arith.constant 41 : index
      %c0_92 = arith.constant 0 : index
      %c0_93 = arith.constant 0 : index
      %218 = vector.load %arg8[%c41, %c0_92, %c0_93] : memref<49x16x256xf32, #tpu.memory_space<vmem>>, vector<1x16x256xf32>
      %219 = vector.shape_cast %218 : vector<1x16x256xf32> to vector<16x256xf32>
      %220 = arith.mulf %217, %219 : vector<16x256xf32>
      %221 = arith.addf %216, %220 : vector<16x256xf32>
      %222 = vector.extract_strided_slice %11 {offsets = [0, 173], sizes = [16, 256], strides = [1, 1]} : vector<16x512xf32> to vector<16x256xf32>
      %c42 = arith.constant 42 : index
      %c0_94 = arith.constant 0 : index
      %c0_95 = arith.constant 0 : index
      %223 = vector.load %arg8[%c42, %c0_94, %c0_95] : memref<49x16x256xf32, #tpu.memory_space<vmem>>, vector<1x16x256xf32>
      %224 = vector.shape_cast %223 : vector<1x16x256xf32> to vector<16x256xf32>
      %225 = arith.mulf %222, %224 : vector<16x256xf32>
      %226 = arith.addf %221, %225 : vector<16x256xf32>
      %227 = vector.extract_strided_slice %11 {offsets = [0, 174], sizes = [16, 256], strides = [1, 1]} : vector<16x512xf32> to vector<16x256xf32>
      %c43 = arith.constant 43 : index
      %c0_96 = arith.constant 0 : index
      %c0_97 = arith.constant 0 : index
      %228 = vector.load %arg8[%c43, %c0_96, %c0_97] : memref<49x16x256xf32, #tpu.memory_space<vmem>>, vector<1x16x256xf32>
      %229 = vector.shape_cast %228 : vector<1x16x256xf32> to vector<16x256xf32>
      %230 = arith.mulf %227, %229 : vector<16x256xf32>
      %231 = arith.addf %226, %230 : vector<16x256xf32>
      %232 = vector.extract_strided_slice %11 {offsets = [0, 175], sizes = [16, 256], strides = [1, 1]} : vector<16x512xf32> to vector<16x256xf32>
      %c44 = arith.constant 44 : index
      %c0_98 = arith.constant 0 : index
      %c0_99 = arith.constant 0 : index
      %233 = vector.load %arg8[%c44, %c0_98, %c0_99] : memref<49x16x256xf32, #tpu.memory_space<vmem>>, vector<1x16x256xf32>
      %234 = vector.shape_cast %233 : vector<1x16x256xf32> to vector<16x256xf32>
      %235 = arith.mulf %232, %234 : vector<16x256xf32>
      %236 = arith.addf %231, %235 : vector<16x256xf32>
      %237 = vector.extract_strided_slice %11 {offsets = [0, 176], sizes = [16, 256], strides = [1, 1]} : vector<16x512xf32> to vector<16x256xf32>
      %c45 = arith.constant 45 : index
      %c0_100 = arith.constant 0 : index
      %c0_101 = arith.constant 0 : index
      %238 = vector.load %arg8[%c45, %c0_100, %c0_101] : memref<49x16x256xf32, #tpu.memory_space<vmem>>, vector<1x16x256xf32>
      %239 = vector.shape_cast %238 : vector<1x16x256xf32> to vector<16x256xf32>
      %240 = arith.mulf %237, %239 : vector<16x256xf32>
      %241 = arith.addf %236, %240 : vector<16x256xf32>
      %242 = vector.extract_strided_slice %11 {offsets = [0, 177], sizes = [16, 256], strides = [1, 1]} : vector<16x512xf32> to vector<16x256xf32>
      %c46 = arith.constant 46 : index
      %c0_102 = arith.constant 0 : index
      %c0_103 = arith.constant 0 : index
      %243 = vector.load %arg8[%c46, %c0_102, %c0_103] : memref<49x16x256xf32, #tpu.memory_space<vmem>>, vector<1x16x256xf32>
      %244 = vector.shape_cast %243 : vector<1x16x256xf32> to vector<16x256xf32>
      %245 = arith.mulf %242, %244 : vector<16x256xf32>
      %246 = arith.addf %241, %245 : vector<16x256xf32>
      %247 = vector.extract_strided_slice %11 {offsets = [0, 178], sizes = [16, 256], strides = [1, 1]} : vector<16x512xf32> to vector<16x256xf32>
      %c47 = arith.constant 47 : index
      %c0_104 = arith.constant 0 : index
      %c0_105 = arith.constant 0 : index
      %248 = vector.load %arg8[%c47, %c0_104, %c0_105] : memref<49x16x256xf32, #tpu.memory_space<vmem>>, vector<1x16x256xf32>
      %249 = vector.shape_cast %248 : vector<1x16x256xf32> to vector<16x256xf32>
      %250 = arith.mulf %247, %249 : vector<16x256xf32>
      %251 = arith.addf %246, %250 : vector<16x256xf32>
      %252 = vector.extract_strided_slice %11 {offsets = [0, 179], sizes = [16, 256], strides = [1, 1]} : vector<16x512xf32> to vector<16x256xf32>
      %c48 = arith.constant 48 : index
      %c0_106 = arith.constant 0 : index
      %c0_107 = arith.constant 0 : index
      %253 = vector.load %arg8[%c48, %c0_106, %c0_107] : memref<49x16x256xf32, #tpu.memory_space<vmem>>, vector<1x16x256xf32>
      %254 = vector.shape_cast %253 : vector<1x16x256xf32> to vector<16x256xf32>
      %255 = arith.mulf %252, %254 : vector<16x256xf32>
      %256 = arith.addf %251, %255 : vector<16x256xf32>
      %257 = arith.index_cast %arg9 : i32 to index
      %c0_108 = arith.constant 0 : index
      %c0_109 = arith.constant 0 : index
      %258 = vector.load %arg6[%257, %c0_108, %c0_109] : memref<2x16x256xf32, #tpu.memory_space<vmem>>, vector<1x16x256xf32>
      %259 = vector.shape_cast %258 : vector<1x16x256xf32> to vector<16x256xf32>
      %260 = vector.shape_cast %256 : vector<16x256xf32> to vector<1x16x256xf32>
      tpu.vector_store %arg6[%257, %c0_108, %c0_109], %260 {strides = array<i32>} : memref<2x16x256xf32, #tpu.memory_space<vmem>>, vector<1x16x256xf32>,
    }
    %c2_i32_3 = arith.constant 2 : i32
    return
  }
  func.func @transform_0(%arg0: i32, %arg1: i32) -> (i32, i32, i32) {
    %c0_i32 = arith.constant 0 : i32
    %c0_i32_0 = arith.constant 0 : i32
    return %arg1, %arg0, %c0_i32 : i32, i32, i32
  }
  func.func @transform_1(%arg0: i32, %arg1: i32) -> (i32, i32) {
    %c0_i32 = arith.constant 0 : i32
    %c0_i32_0 = arith.constant 0 : i32
    return %arg0, %c0_i32 : i32, i32
  }
  func.func @transform_2(%arg0: i32, %arg1: i32) -> (i32, i32) {
    %c0_i32 = arith.constant 0 : i32
    %c0_i32_0 = arith.constant 0 : i32
    return %arg0, %c0_i32 : i32, i32
  }
  func.func @transform_3(%arg0: i32, %arg1: i32) -> (i32, i32) {
    %c0_i32 = arith.constant 0 : i32
    %c0_i32_0 = arith.constant 0 : i32
    %c0_i32_1 = arith.constant 0 : i32
    return %c0_i32, %c0_i32_0 : i32, i32
  }
  func.func @transform_4(%arg0: i32, %arg1: i32) -> (i32, i32, i32) {
    %c0_i32 = arith.constant 0 : i32
    %c0_i32_0 = arith.constant 0 : i32
    return %arg1, %arg0, %c0_i32 : i32, i32, i32
  }
}

</mosaic_0001>

<llo_original>
// kernel: repcpe_forward.1
$region0: #{repcpe_forward.1}
  #allocation0 [shape = 'u32[]', space=smem, size = 0x4, offset = 0x4, fixed_abs, tag = 'smem constant byte address 0x4 - core index']
  #allocation1 [shape = 'u32[72,128]{1,0:T(1,128)}', space=vmem, size = 0x9000, scoped, tag = 'internal scratch']
  #allocation2 [shape = 'f32[16,512]{1,0:T(8,128)}', space=vmem, size = 0x8000, scoped, tag = 'scratch operand']
  #allocation3 [shape = 'f32[49,16,256]{2,1,0:T(8,128)}', space=vmem, size = 0xc4000, scoped, tag = 'scratch operand']
  %s0 = inlined_call_operand.vmem [shape: f32[2,32,256], index: 0, kind: input, shape index: {}]
  %s1 = inlined_call_operand.vmem [shape: f32[32,49], index: 1, kind: input, shape index: {}]
  %s2 = inlined_call_operand.vmem [shape: f32[32,1], index: 2, kind: input, shape index: {}]
  %s3 = inlined_call_operand.vmem [shape: f32[49,256], index: 3, kind: input, shape index: {}]
  %s4 = inlined_call_operand.vmem [shape: f32[2,32,256], index: 4, kind: output, shape index: {}]
  %s5 = sld [smem:[#allocation0]]
  $region102: #{repcpe_forward.1} parent=0
    _
  %s7 = ssub.s32 1, %s5
  %s8 = scalar_select 0, %s7, %s5
  $region1: #{repcpe_forward.1} parent=0
    #allocation4 [shape = 'u8[65536]{0}', space=vmem, size = 0x10000, scoped, tag = 'input window, operand 0']
    #allocation5 [shape = 'u8[65536]{0}', space=vmem, size = 0x10000, scoped, tag = 'output window, operand 0']
    loop: start=0, step=1, limit=4
    $region2: #{repcpe_forward.1} parent=1 // loop_pre_header
      _
    $region3: #{repcpe_forward.1} parent=1 // loop_header
      %s10 = sphi 0, %s14
      %p11 = scmp.ge.s32.totalorder %s10, 4
      %s17 = sphi 0, %s29
      %s18 = sphi 0, %s25
      %s19 = sphi 0, %s17
      %s20 = sphi 0, %s18
      %s21 = sphi 0, %s19
      %s22 = sphi 0, %s20
      %s34 = sphi 0, %s36
      %s37 = sphi 0, %s34
      %s38 = sphi 0, %s37
      %s54 = sphi 0, %s38
      %s60 = sphi 0, %s62
      %s63 = sphi 0, %s60
      %s64 = sphi 0, %s63
      %s80 = sphi 0, %s64
      %s86 = sphi 0, %s88
      %s89 = sphi 0, %s86
      %s90 = sphi 0, %s89
      %s106 = sphi 0, %s90
      %s110 = sphi 0, %s110
      %s112 = sphi 0, %s110
      %s113 = sphi 0, %s112
      %s127 = sphi 0, %s113
      %s135 = sphi 0, %s137
      %s138 = sphi 0, %s135
      %s139 = sphi 0, %s138
      %s155 = sphi 0, %s139
    $region4: #{repcpe_forward.1} parent=1 // loop_header_branch
      %13 = sbr.rel (%p11) target = $region8
    $region5: #{repcpe_forward.1} parent=1 // loop_body
      %s15 = ssub.s32 %s10, 1
      %s16 = ssub.s32 %s10, 2
      %s23 = sadd.s32 1, %s18
      %p24 = scmp.ge.s32.totalorder %s23, 1
      %s25 = scalar_select %p24, 0, %s23
      %s26 = sadd.s32 1, %s17
      %s27 = scalar_select %p24, %s26, %s17
      %p28 = scmp.ge.s32.totalorder %s27, 2
      %s29 = scalar_select %p28, 0, %s27
      %s30 = ssub.s32 %s18, %s25
      %s31 = ssub.s32 %s17, %s29
      %s32 = sor.u32 %s30, %s31
      %p33 = scmp.eq.s32.totalorder %s32, 0
      %s35 = sadd.s32 %s34, 1
      %s36 = scalar_select %p33, %s34, %s35
      %p39 = pneg %p33
      %p40 = scmp.eq.s32.totalorder %s10, 1
      %p41 = por %p39, %p40
      %p42 = scmp.ne.s32.totalorder %s34, %s37
      %p43 = scmp.eq.s32.totalorder %s10, 0
      %p44 = por %p42, %p43
      %p45 = scmp.ne.s32.totalorder %s34, %s37
      %p46 = scmp.eq.s32.totalorder %s15, 1
      %p47 = por %p45, %p46
      %p48 = scmp.ne.s32.totalorder %s37, %s38
      %p49 = scmp.eq.s32.totalorder %s15, 0
      %p50 = por %p48, %p49
      %p51 = scmp.ne.s32.totalorder %s37, %s38
      %p52 = scmp.eq.s32.totalorder %s16, 1
      %p53 = por %p51, %p52
      %p55 = scmp.ne.s32.totalorder %s38, %s54
      %p56 = scmp.eq.s32.totalorder %s16, 0
      %p57 = por %p55, %p56
      %s58 = ssub.s32 %s17, %s29
      %p59 = scmp.eq.s32.totalorder %s58, 0
      %s61 = sadd.s32 %s60, 1
      %s62 = scalar_select %p59, %s60, %s61
      %p65 = pneg %p59
      %p66 = scmp.eq.s32.totalorder %s10, 1
      %p67 = por %p65, %p66
      %p68 = scmp.ne.s32.totalorder %s60, %s63
      %p69 = scmp.eq.s32.totalorder %s10, 0
      %p70 = por %p68, %p69
      %p71 = scmp.ne.s32.totalorder %s60, %s63
      %p72 = scmp.eq.s32.totalorder %s15, 1
      %p73 = por %p71, %p72
      %p74 = scmp.ne.s32.totalorder %s63, %s64
      %p75 = scmp.eq.s32.totalorder %s15, 0
      %p76 = por %p74, %p75
      %p77 = scmp.ne.s32.totalorder %s63, %s64
      %p78 = scmp.eq.s32.totalorder %s16, 1
      %p79 = por %p77, %p78
      %p81 = scmp.ne.s32.totalorder %s64, %s80
      %p82 = scmp.eq.s32.totalorder %s16, 0
      %p83 = por %p81, %p82
      %s84 = ssub.s32 %s17, %s29
      %p85 = scmp.eq.s32.totalorder %s84, 0
      %s87 = sadd.s32 %s86, 1
      %s88 = scalar_select %p85, %s86, %s87
      %p91 = pneg %p85
      %p92 = scmp.eq.s32.totalorder %s10, 1
      %p93 = por %p91, %p92
      %p94 = scmp.ne.s32.totalorder %s86, %s89
      %p95 = scmp.eq.s32.totalorder %s10, 0
      %p96 = por %p94, %p95
      %p97 = scmp.ne.s32.totalorder %s86, %s89
      %p98 = scmp.eq.s32.totalorder %s15, 1
      %p99 = por %p97, %p98
      %p100 = scmp.ne.s32.totalorder %s89, %s90
      %p101 = scmp.eq.s32.totalorder %s15, 0
      %p102 = por %p100, %p101
      %p103 = scmp.ne.s32.totalorder %s89, %s90
      %p104 = scmp.eq.s32.totalorder %s16, 1
      %p105 = por %p103, %p104
      %p107 = scmp.ne.s32.totalorder %s90, %s106
      %p108 = scmp.eq.s32.totalorder %s16, 0
      %p109 = por %p107, %p108
      %s111 = sadd.s32 %s110, 1
      %p114 = scmp.eq.s32.totalorder %s10, 1
      %p115 = scmp.ne.s32.totalorder %s110, %s112
      %p116 = scmp.eq.s32.totalorder %s10, 0
      %p117 = por %p115, %p116
      %p118 = scmp.ne.s32.totalorder %s110, %s112
      %p119 = scmp.eq.s32.totalorder %s15, 1
      %p120 = por %p118, %p119
      %p121 = scmp.ne.s32.totalorder %s112, %s113
      %p122 = scmp.eq.s32.totalorder %s15, 0
      %p123 = por %p121, %p122
      %p124 = scmp.ne.s32.totalorder %s112, %s113
      %p125 = scmp.eq.s32.totalorder %s16, 1
      %p126 = por %p124, %p125
      %p128 = scmp.ne.s32.totalorder %s113, %s127
      %p129 = scmp.eq.s32.totalorder %s16, 0
      %p130 = por %p128, %p129
      %s131 = ssub.s32 %s18, %s25
      %s132 = ssub.s32 %s17, %s29
      %s133 = sor.u32 %s131, %s132
      %p134 = scmp.eq.s32.totalorder %s133, 0
      %s136 = sadd.s32 %s135, 1
      %s137 = scalar_select %p134, %s135, %s136
      %p140 = pneg %p134
      %p141 = scmp.eq.s32.totalorder %s10, 1
      %p142 = por %p140, %p141
      %p143 = scmp.ne.s32.totalorder %s135, %s138
      %p144 = scmp.eq.s32.totalorder %s10, 0
      %p145 = por %p143, %p144
      %p146 = scmp.ne.s32.totalorder %s135, %s138
      %p147 = scmp.eq.s32.totalorder %s15, 1
      %p148 = por %p146, %p147
      %p149 = scmp.ne.s32.totalorder %s138, %s139
      %p150 = scmp.eq.s32.totalorder %s15, 0
      %p151 = por %p149, %p150
      %p152 = scmp.ne.s32.totalorder %s138, %s139
      %p153 = scmp.eq.s32.totalorder %s16, 1
      %p154 = por %p152, %p153
      %p156 = scmp.ne.s32.totalorder %s139, %s155
      %p157 = scmp.eq.s32.totalorder %s16, 0
      %p158 = por %p156, %p157
      %p159 = scmp.le.s32.totalorder 1, %s10
      %p160 = scmp.lt.s32.totalorder %s10, 3
      %p161 = pnand %p159, %p160
      %p162 = pneg %p161
      // Predicated region
      $region9: #{repcpe_forward.1} parent=5 // pred_check
        _
      $region10: #{repcpe_forward.1} parent=5 // pred_check_branch
        %164 = sbr.rel (%p161) target = $region12
      $region11: #{repcpe_forward.1} parent=5 // pred_region
        %s165 = ssub.s32 %s10, 1
        // Predicated region
        $region13: #{repcpe_forward.1} parent=11 // pred_check
          %p166 = pneg %p123
        $region14: #{repcpe_forward.1} parent=11 // pred_check_branch
          %168 = sbr.rel (%p166) target = $region16
        $region15: #{repcpe_forward.1} parent=11 // pred_region
          _
        $region16: #{repcpe_forward.1} parent=11 // pred_fallthru
          _
      $region12: #{repcpe_forward.1} parent=5 // pred_fallthru
        _
      %p169 = scmp.lt.s32.totalorder %s10, 2
      // Predicated region
      $region17: #{repcpe_forward.1} parent=5 // pred_check
        %p170 = pneg %p169
      $region18: #{repcpe_forward.1} parent=5 // pred_check_branch
        %172 = sbr.rel (%p170) target = $region20
      $region19: #{repcpe_forward.1} parent=5 // pred_region
        // Predicated region
        $region21: #{repcpe_forward.1} parent=19 // pred_check
          %p173 = pneg %p44
        $region22: #{repcpe_forward.1} parent=19 // pred_check_branch
          %175 = sbr.rel (%p173) target = $region24
        $region23: #{repcpe_forward.1} parent=19 // pred_region
          %s176 = sand.u32 %s34, 1
          %s177 = sand.u32 %s34, 1
          %s178 = smul.addr %s177, 64
          %s179 = scalar_lea.vmem [#allocation4], %s178
          %s180 = smul.u32 2, %s18
          %s181 = smul.u32 2, %s17
          %s182 = smul.addr %s181, 2
          %s183 = smul.addr %s180, 8
          %s184 = sadd.s32 %s182, %s183
          %s185 = smul.addr %s184, 8
          %s186 = scalar_lea.vmem %s0, %s185
          // Predicated region
          $region25: #{repcpe_forward.1} parent=23 // pred_check
            _
          $region26: #{repcpe_forward.1} parent=23 // pred_check_branch
            %188 = sbr.rel (0) target = $region28
          $region27: #{repcpe_forward.1} parent=23 // pred_region
            // Predicated region
            $region29: #{repcpe_forward.1} parent=27 // pred_check
              _
            $region30: #{repcpe_forward.1} parent=27 // pred_check_branch
              %190 = sbr.rel (0) target = $region32
            $region31: #{repcpe_forward.1} parent=27 // pred_region
              loop: start=0, step=1, limit=1
              $region33: #{repcpe_forward.1} parent=31 // loop_pre_header
                _
              $region34: #{repcpe_forward.1} parent=31 // loop_header
                %s192 = sphi 0, %s196
                %p193 = scmp.ge.s32.totalorder %s192, 1
                %s197 = sphi %s186, %s186
                %s198 = sphi %s179, %s179
              $region35: #{repcpe_forward.1} parent=31 // loop_header_branch
                %195 = sbr.rel (%p193) target = $region39
              $region36: #{repcpe_forward.1} parent=31 // loop_body
                %v199 = vld [vmem:[%s197] sm:$0xff]
                %200 = vst [vmem:[%s198] sm:$0xff] %v199
                %v201 = vld [vmem:[%s197 + $0x8] sm:$0xff]
                %202 = vst [vmem:[%s198 + $0x8] sm:$0xff] %v201
                %v203 = vld [vmem:[%s197 + $0x10] sm:$0xff]
                %204 = vst [vmem:[%s198 + $0x10] sm:$0xff] %v203
                %v205 = vld [vmem:[%s197 + $0x18] sm:$0xff]
                %206 = vst [vmem:[%s198 + $0x18] sm:$0xff] %v205
                %v207 = vld [vmem:[%s197 + $0x40] sm:$0xff]
                %208 = vst [vmem:[%s198 + $0x20] sm:$0xff] %v207
                %v209 = vld [vmem:[%s197 + $0x48] sm:$0xff]
                %210 = vst [vmem:[%s198 + $0x28] sm:$0xff] %v209
                %v211 = vld [vmem:[%s197 + $0x50] sm:$0xff]
                %212 = vst [vmem:[%s198 + $0x30] sm:$0xff] %v211
                %v213 = vld [vmem:[%s197 + $0x58] sm:$0xff]
                %214 = vst [vmem:[%s198 + $0x38] sm:$0xff] %v213
              $region37: #{repcpe_forward.1} parent=31 // loop_footer
                %s196 = sadd.s32 1, %s192
              $region38: #{repcpe_forward.1} parent=31 // loop_footer_branch
                %191 = sbr.rel target = $region34
              $region39: #{repcpe_forward.1} parent=31 // loop_exit
                _
            $region32: #{repcpe_forward.1} parent=27 // pred_fallthru
              _
            // Predicated region
            $region40: #{repcpe_forward.1} parent=27 // pred_check
              _
            $region41: #{repcpe_forward.1} parent=27 // pred_check_branch
              %216 = sbr.rel target = $region43
            $region42: #{repcpe_forward.1} parent=27 // pred_region
              _
            $region43: #{repcpe_forward.1} parent=27 // pred_fallthru
              _
          $region28: #{repcpe_forward.1} parent=23 // pred_fallthru
            _
          %217 = vnop
        $region24: #{repcpe_forward.1} parent=19 // pred_fallthru
          _
        // Predicated region
        $region44: #{repcpe_forward.1} parent=19 // pred_check
          %p218 = pneg %p70
        $region45: #{repcpe_forward.1} parent=19 // pred_check_branch
          %220 = sbr.rel (%p218) target = $region47
        $region46: #{repcpe_forward.1} parent=19 // pred_region
          %s221 = smul.u32 2, %s17
          %p222 = scmp.lt.s32.totalorder %s221, 3
          %s223 = scalar_select %p222, %s221, 3
          %s224 = smul.addr %s223, 8
          %s225 = scalar_lea.vmem %s1, %s224
          %s226 = smul.u32 2, %s17
        $region47: #{repcpe_forward.1} parent=19 // pred_fallthru
          _
        // Predicated region
        $region48: #{repcpe_forward.1} parent=19 // pred_check
          %p227 = pneg %p96
        $region49: #{repcpe_forward.1} parent=19 // pred_check_branch
          %229 = sbr.rel (%p227) target = $region51
        $region50: #{repcpe_forward.1} parent=19 // pred_region
          %s230 = smul.u32 2, %s17
          %p231 = scmp.lt.s32.totalorder %s230, 3
          %s232 = scalar_select %p231, %s230, 3
          %s233 = smul.addr %s232, 8
          %s234 = scalar_lea.vmem %s2, %s233
          %s235 = smul.u32 2, %s17
        $region51: #{repcpe_forward.1} parent=19 // pred_fallthru
          _
      $region20: #{repcpe_forward.1} parent=5 // pred_fallthru
        _
      %p236 = scmp.le.s32.totalorder 1, %s10
      %p237 = scmp.lt.s32.totalorder %s10, 3
      %p238 = pnand %p236, %p237
      %p239 = pneg %p238
      // Predicated region
      $region52: #{repcpe_forward.1} parent=5 // pred_check
        _
      $region53: #{repcpe_forward.1} parent=5 // pred_check_branch
        %241 = sbr.rel (%p238) target = $region55
      $region54: #{repcpe_forward.1} parent=5 // pred_region
        %s242 = ssub.s32 %s10, 1
        %s243 = sand.u32 %s37, 1
        %s244 = sand.u32 %s37, 1
        %s245 = smul.addr %s244, 64
        %s246 = scalar_lea.vmem [#allocation4], %s245
        // Predicated region
        $region56: #{repcpe_forward.1} parent=54 // pred_check
          %p247 = pneg %p50
        $region57: #{repcpe_forward.1} parent=54 // pred_check_branch
          %249 = sbr.rel (%p247) target = $region59
        $region58: #{repcpe_forward.1} parent=54 // pred_region
          _
        $region59: #{repcpe_forward.1} parent=54 // pred_fallthru
          _
        %s250 = sand.u32 %s37, 1
        %s251 = sand.u32 %s37, 1
        %s252 = smul.addr %s251, 64
        %s253 = scalar_lea.vmem [#allocation4], %s252
        %p254 = pneg %p50
        %p255 = pneg %p47
        %s256 = smul.u32 2, %s19
        %p257 = scmp.lt.s32.totalorder %s256, 3
        %s258 = scalar_select %p257, %s256, 3
        %s259 = smul.addr %s258, 8
        %s260 = scalar_lea.vmem %s1, %s259
        %p261 = pneg %p76
        %p262 = pneg %p73
        %s263 = smul.u32 2, %s19
        %p264 = scmp.lt.s32.totalorder %s263, 3
        %s265 = scalar_select %p264, %s263, 3
        %s266 = smul.addr %s265, 8
        %s267 = scalar_lea.vmem %s2, %s266
        %p268 = pneg %p102
        %p269 = pneg %p99
        %p270 = pneg %p123
        %p271 = pneg %p120
        %p272 = pneg %p151
        %p273 = pneg %p148
        %s274 = sand.u32 %s138, 1
        %s275 = sand.u32 %s138, 1
        %s276 = smul.addr %s275, 64
        %s277 = scalar_lea.vmem [#allocation5], %s276
        %s278 = smul.u32 2, %s20
        %s279 = smul.u32 2, %s19
        %s280 = smul.u32 2, %s19
        %p281 = scmp.lt.s32.totalorder %s280, 3
        %s282 = scalar_select %p281, %s280, 3
        %s283 = smul.addr %s282, 8
        %s284 = scalar_lea.vmem %s1, %s283
        %s285 = smul.u32 2, %s19
        %s286 = smul.u32 2, %s19
        %p287 = scmp.lt.s32.totalorder %s286, 3
        %s288 = scalar_select %p287, %s286, 3
        %s289 = smul.addr %s288, 8
        %s290 = scalar_lea.vmem %s2, %s289
        %s291 = smul.u32 2, %s19
        %s292 = smul.u32 2, %s20
        %s293 = smul.u32 2, %s19
        %p294 = scmp.eq.s32.totalorder %s20, 0
        // Predicated region
        $region60: #{repcpe_forward.1} parent=54 // pred_check
          %p295 = pneg %p294
        $region61: #{repcpe_forward.1} parent=54 // pred_check_branch
          %297 = sbr.rel (%p295) target = $region63
        $region62: #{repcpe_forward.1} parent=54 // pred_region
          %298 = vst [vmem:[#allocation2] sm:$0xff] 0.0
          %299 = vst [vmem:[#allocation2 + $0x20] sm:$0xff] 0.0
          %300 = vst [vmem:[#allocation2 + $0x18] sm:$0xff] 0.0
          %301 = vst [vmem:[#allocation2 + $0x38] sm:$0xff] 0.0
          %v302 = vld [vmem:[%s284] sm:$0xff]
          %v303 = vld [vmem:[%s284 + $0x8] sm:$0xff]
          %v304 = vld [vmem:[%s3] ss:$8 sm:$0x3]
          %306 = vset.pattern.permute.xlu0 0
          %307 = vperm.xlu0 %306, %v302
          %v308 = vpop.permute.xlu0 %307
          %311 = vset.pattern.permute.xlu0 0
          %312 = vperm.xlu0 %311, %v303
          %v313 = vpop.permute.xlu0 %312
          %v316 = vperm.slane %v304, 0
          %v317 = vperm.slane %v304, 1
          %v320 = vmul.f32 %v308, %v316
          %v321 = vmul.f32 %v308, %v317
          %v322 = vmul.f32 %v313, %v316
          %v323 = vmul.f32 %v313, %v317
          %324 = vst [vmem:[#allocation3] sm:$0xff] %v320
          %325 = vst [vmem:[#allocation3 + $0x8] sm:$0xff] %v321
          %326 = vst [vmem:[#allocation3 + $0x10] sm:$0xff] %v322
          %327 = vst [vmem:[#allocation3 + $0x18] sm:$0xff] %v323
          %v328 = vld [vmem:[%s284] sm:$0xff]
          %v329 = vld [vmem:[%s284 + $0x8] sm:$0xff]
          %s330 = scalar_lea.vmem %s3, 1
          %v331 = vld [vmem:[%s330] ss:$8 sm:$0x3]
          %333 = vset.pattern.permute.xlu0 1
          %334 = vperm.xlu0 %333, %v328
          %v335 = vpop.permute.xlu0 %334
          %338 = vset.pattern.permute.xlu0 1
          %339 = vperm.xlu0 %338, %v329
          %v340 = vpop.permute.xlu0 %339
          %v343 = vperm.slane %v331, 0
          %v344 = vperm.slane %v331, 1
          %v347 = vmul.f32 %v335, %v343
          %v348 = vmul.f32 %v335, %v344
          %v349 = vmul.f32 %v340, %v343
          %v350 = vmul.f32 %v340, %v344
          %s351 = scalar_lea.vmem [#allocation3], 32
          %352 = vst [vmem:[%s351] sm:$0xff] %v347
          %353 = vst [vmem:[%s351 + $0x8] sm:$0xff] %v348
          %354 = vst [vmem:[%s351 + $0x10] sm:$0xff] %v349
          %355 = vst [vmem:[%s351 + $0x18] sm:$0xff] %v350
          %v356 = vld [vmem:[%s284] sm:$0xff]
          %v357 = vld [vmem:[%s284 + $0x8] sm:$0xff]
          %s358 = scalar_lea.vmem %s3, 2
          %v359 = vld [vmem:[%s358] ss:$8 sm:$0x3]
          %361 = vset.pattern.permute.xlu0 2
          %362 = vperm.xlu0 %361, %v356
          %v363 = vpop.permute.xlu0 %362
          %366 = vset.pattern.permute.xlu0 2
          %367 = vperm.xlu0 %366, %v357
          %v368 = vpop.permute.xlu0 %367
          %v371 = vperm.slane %v359, 0
          %v372 = vperm.slane %v359, 1
          %v375 = vmul.f32 %v363, %v371
          %v376 = vmul.f32 %v363, %v372
          %v377 = vmul.f32 %v368, %v371
          %v378 = vmul.f32 %v368, %v372
          %s379 = scalar_lea.vmem [#allocation3], 64
          %380 = vst [vmem:[%s379] sm:$0xff] %v375
          %381 = vst [vmem:[%s379 + $0x8] sm:$0xff] %v376
          %382 = vst [vmem:[%s379 + $0x10] sm:$0xff] %v377
          %383 = vst [vmem:[%s379 + $0x18] sm:$0xff] %v378
          %v384 = vld [vmem:[%s284] sm:$0xff]
          %v385 = vld [vmem:[%s284 + $0x8] sm:$0xff]
          %s386 = scalar_lea.vmem %s3, 3
          %v387 = vld [vmem:[%s386] ss:$8 sm:$0x3]
          %389 = vset.pattern.permute.xlu0 3
          %390 = vperm.xlu0 %389, %v384
          %v391 = vpop.permute.xlu0 %390
          %394 = vset.pattern.permute.xlu0 3
          %395 = vperm.xlu0 %394, %v385
          %v396 = vpop.permute.xlu0 %395
          %v399 = vperm.slane %v387, 0
          %v400 = vperm.slane %v387, 1
          %v403 = vmul.f32 %v391, %v399
          %v404 = vmul.f32 %v391, %v400
          %v405 = vmul.f32 %v396, %v399
          %v406 = vmul.f32 %v396, %v400
          %s407 = scalar_lea.vmem [#allocation3], 96
          %408 = vst [vmem:[%s407] sm:$0xff] %v403
          %409 = vst [vmem:[%s407 + $0x8] sm:$0xff] %v404
          %410 = vst [vmem:[%s407 + $0x10] sm:$0xff] %v405
          %411 = vst [vmem:[%s407 + $0x18] sm:$0xff] %v406
          %v412 = vld [vmem:[%s284] sm:$0xff]
          %v413 = vld [vmem:[%s284 + $0x8] sm:$0xff]
          %s414 = scalar_lea.vmem %s3, 4
          %v415 = vld [vmem:[%s414] ss:$8 sm:$0x3]
          %417 = vset.pattern.permute.xlu0 4
          %418 = vperm.xlu0 %417, %v412
          %v419 = vpop.permute.xlu0 %418
          %422 = vset.pattern.permute.xlu0 4
          %423 = vperm.xlu0 %422, %v413
          %v424 = vpop.permute.xlu0 %423
          %v427 = vperm.slane %v415, 0
          %v428 = vperm.slane %v415, 1
          %v431 = vmul.f32 %v419, %v427
          %v432 = vmul.f32 %v419, %v428
          %v433 = vmul.f32 %v424, %v427
          %v434 = vmul.f32 %v424, %v428
          %s435 = scalar_lea.vmem [#allocation3], 128
          %436 = vst [vmem:[%s435] sm:$0xff] %v431
          %437 = vst [vmem:[%s435 + $0x8] sm:$0xff] %v432
          %438 = vst [vmem:[%s435 + $0x10] sm:$0xff] %v433
          %439 = vst [vmem:[%s435 + $0x18] sm:$0xff] %v434
          %v440 = vld [vmem:[%s284] sm:$0xff]
          %v441 = vld [vmem:[%s284 + $0x8] sm:$0xff]
          %s442 = scalar_lea.vmem %s3, 5
          %v443 = vld [vmem:[%s442] ss:$8 sm:$0x3]
          %445 = vset.pattern.permute.xlu0 5
          %446 = vperm.xlu0 %445, %v440
          %v447 = vpop.permute.xlu0 %446
          %450 = vset.pattern.permute.xlu0 5
          %451 = vperm.xlu0 %450, %v441
          %v452 = vpop.permute.xlu0 %451
          %v455 = vperm.slane %v443, 0
          %v456 = vperm.slane %v443, 1
          %v459 = vmul.f32 %v447, %v455
          %v460 = vmul.f32 %v447, %v456
          %v461 = vmul.f32 %v452, %v455
          %v462 = vmul.f32 %v452, %v456
          %s463 = scalar_lea.vmem [#allocation3], 160
          %464 = vst [vmem:[%s463] sm:$0xff] %v459
          %465 = vst [vmem:[%s463 + $0x8] sm:$0xff] %v460
          %466 = vst [vmem:[%s463 + $0x10] sm:$0xff] %v461
          %467 = vst [vmem:[%s463 + $0x18] sm:$0xff] %v462
          %v468 = vld [vmem:[%s284] sm:$0xff]
          %v469 = vld [vmem:[%s284 + $0x8] sm:$0xff]
          %s470 = scalar_lea.vmem %s3, 6
          %v471 = vld [vmem:[%s470] ss:$8 sm:$0x3]
          %473 = vset.pattern.permute.xlu0 6
          %474 = vperm.xlu0 %473, %v468
          %v475 = vpop.permute.xlu0 %474
          %478 = vset.pattern.permute.xlu0 6
          %479 = vperm.xlu0 %478, %v469
          %v480 = vpop.permute.xlu0 %479
          %v483 = vperm.slane %v471, 0
          %v484 = vperm.slane %v471, 1
          %v487 = vmul.f32 %v475, %v483
          %v488 = vmul.f32 %v475, %v484
          %v489 = vmul.f32 %v480, %v483
          %v490 = vmul.f32 %v480, %v484
          %s491 = scalar_lea.vmem [#allocation3], 192
          %492 = vst [vmem:[%s491] sm:$0xff] %v487
          %493 = vst [vmem:[%s491 + $0x8] sm:$0xff] %v488
          %494 = vst [vmem:[%s491 + $0x10] sm:$0xff] %v489
          %495 = vst [vmem:[%s491 + $0x18] sm:$0xff] %v490
          %v496 = vld [vmem:[%s284] sm:$0xff]
          %v497 = vld [vmem:[%s284 + $0x8] sm:$0xff]
          %s498 = scalar_lea.vmem %s3, 7
          %v499 = vld [vmem:[%s498] ss:$8 sm:$0x3]
          %501 = vset.pattern.permute.xlu0 7
          %502 = vperm.xlu0 %501, %v496
          %v503 = vpop.permute.xlu0 %502
          %506 = vset.pattern.permute.xlu0 7
          %507 = vperm.xlu0 %506, %v497
          %v508 = vpop.permute.xlu0 %507
          %v511 = vperm.slane %v499, 0
          %v512 = vperm.slane %v499, 1
          %v515 = vmul.f32 %v503, %v511
          %v516 = vmul.f32 %v503, %v512
          %v517 = vmul.f32 %v508, %v511
          %v518 = vmul.f32 %v508, %v512
          %s519 = scalar_lea.vmem [#allocation3], 224
          %520 = vst [vmem:[%s519] sm:$0xff] %v515
          %521 = vst [vmem:[%s519 + $0x8] sm:$0xff] %v516
          %522 = vst [vmem:[%s519 + $0x10] sm:$0xff] %v517
          %523 = vst [vmem:[%s519 + $0x18] sm:$0xff] %v518
          %v524 = vld [vmem:[%s284] sm:$0xff]
          %v525 = vld [vmem:[%s284 + $0x8] sm:$0xff]
          %s526 = scalar_lea.vmem %s3, 16
          %v527 = vld [vmem:[%s526] ss:$8 sm:$0x3]
          %529 = vset.pattern.permute.xlu0 8
          %530 = vperm.xlu0 %529, %v524
          %v531 = vpop.permute.xlu0 %530
          %534 = vset.pattern.permute.xlu0 8
          %535 = vperm.xlu0 %534, %v525
          %v536 = vpop.permute.xlu0 %535
          %v539 = vperm.slane %v527, 0
          %v540 = vperm.slane %v527, 1
          %v543 = vmul.f32 %v531, %v539
          %v544 = vmul.f32 %v531, %v540
          %v545 = vmul.f32 %v536, %v539
          %v546 = vmul.f32 %v536, %v540
          %s547 = scalar_lea.vmem [#allocation3], 256
          %548 = vst [vmem:[%s547] sm:$0xff] %v543
          %549 = vst [vmem:[%s547 + $0x8] sm:$0xff] %v544
          %550 = vst [vmem:[%s547 + $0x10] sm:$0xff] %v545
          %551 = vst [vmem:[%s547 + $0x18] sm:$0xff] %v546
          %v552 = vld [vmem:[%s284] sm:$0xff]
          %v553 = vld [vmem:[%s284 + $0x8] sm:$0xff]
          %s554 = scalar_lea.vmem %s3, 17
          %v555 = vld [vmem:[%s554] ss:$8 sm:$0x3]
          %557 = vset.pattern.permute.xlu0 9
          %558 = vperm.xlu0 %557, %v552
          %v559 = vpop.permute.xlu0 %558
          %562 = vset.pattern.permute.xlu0 9
          %563 = vperm.xlu0 %562, %v553
          %v564 = vpop.permute.xlu0 %563
          %v567 = vperm.slane %v555, 0
          %v568 = vperm.slane %v555, 1
          %v571 = vmul.f32 %v559, %v567
          %v572 = vmul.f32 %v559, %v568
          %v573 = vmul.f32 %v564, %v567
          %v574 = vmul.f32 %v564, %v568
          %s575 = scalar_lea.vmem [#allocation3], 288
          %576 = vst [vmem:[%s575] sm:$0xff] %v571
          %577 = vst [vmem:[%s575 + $0x8] sm:$0xff] %v572
          %578 = vst [vmem:[%s575 + $0x10] sm:$0xff] %v573
          %579 = vst [vmem:[%s575 + $0x18] sm:$0xff] %v574
          %v580 = vld [vmem:[%s284] sm:$0xff]
          %v581 = vld [vmem:[%s284 + $0x8] sm:$0xff]
          %s582 = scalar_lea.vmem %s3, 18
          %v583 = vld [vmem:[%s582] ss:$8 sm:$0x3]
          %585 = vset.pattern.permute.xlu0 10
          %586 = vperm.xlu0 %585, %v580
          %v587 = vpop.permute.xlu0 %586
          %590 = vset.pattern.permute.xlu0 10
          %591 = vperm.xlu0 %590, %v581
          %v592 = vpop.permute.xlu0 %591
          %v595 = vperm.slane %v583, 0
          %v596 = vperm.slane %v583, 1
          %v599 = vmul.f32 %v587, %v595
          %v600 = vmul.f32 %v587, %v596
          %v601 = vmul.f32 %v592, %v595
          %v602 = vmul.f32 %v592, %v596
          %s603 = scalar_lea.vmem [#allocation3], 320
          %604 = vst [vmem:[%s603] sm:$0xff] %v599
          %605 = vst [vmem:[%s603 + $0x8] sm:$0xff] %v600
          %606 = vst [vmem:[%s603 + $0x10] sm:$0xff] %v601
          %607 = vst [vmem:[%s603 + $0x18] sm:$0xff] %v602
          %v608 = vld [vmem:[%s284] sm:$0xff]
          %v609 = vld [vmem:[%s284 + $0x8] sm:$0xff]
          %s610 = scalar_lea.vmem %s3, 19
          %v611 = vld [vmem:[%s610] ss:$8 sm:$0x3]
          %613 = vset.pattern.permute.xlu0 11
          %614 = vperm.xlu0 %613, %v608
          %v615 = vpop.permute.xlu0 %614
          %618 = vset.pattern.permute.xlu0 11
          %619 = vperm.xlu0 %618, %v609
          %v620 = vpop.permute.xlu0 %619
          %v623 = vperm.slane %v611, 0
          %v624 = vperm.slane %v611, 1
          %v627 = vmul.f32 %v615, %v623
          %v628 = vmul.f32 %v615, %v624
          %v629 = vmul.f32 %v620, %v623
          %v630 = vmul.f32 %v620, %v624
          %s631 = scalar_lea.vmem [#allocation3], 352
          %632 = vst [vmem:[%s631] sm:$0xff] %v627
          %633 = vst [vmem:[%s631 + $0x8] sm:$0xff] %v628
          %634 = vst [vmem:[%s631 + $0x10] sm:$0xff] %v629
          %635 = vst [vmem:[%s631 + $0x18] sm:$0xff] %v630
          %v636 = vld [vmem:[%s284] sm:$0xff]
          %v637 = vld [vmem:[%s284 + $0x8] sm:$0xff]
          %s638 = scalar_lea.vmem %s3, 20
          %v639 = vld [vmem:[%s638] ss:$8 sm:$0x3]
          %641 = vset.pattern.permute.xlu0 12
          %642 = vperm.xlu0 %641, %v636
          %v643 = vpop.permute.xlu0 %642
          %646 = vset.pattern.permute.xlu0 12
          %647 = vperm.xlu0 %646, %v637
          %v648 = vpop.permute.xlu0 %647
          %v651 = vperm.slane %v639, 0
          %v652 = vperm.slane %v639, 1
          %v655 = vmul.f32 %v643, %v651
          %v656 = vmul.f32 %v643, %v652
          %v657 = vmul.f32 %v648, %v651
          %v658 = vmul.f32 %v648, %v652
          %s659 = scalar_lea.vmem [#allocation3], 384
          %660 = vst [vmem:[%s659] sm:$0xff] %v655
          %661 = vst [vmem:[%s659 + $0x8] sm:$0xff] %v656
          %662 = vst [vmem:[%s659 + $0x10] sm:$0xff] %v657
          %663 = vst [vmem:[%s659 + $0x18] sm:$0xff] %v658
          %v664 = vld [vmem:[%s284] sm:$0xff]
          %v665 = vld [vmem:[%s284 + $0x8] sm:$0xff]
          %s666 = scalar_lea.vmem %s3, 21
          %v667 = vld [vmem:[%s666] ss:$8 sm:$0x3]
          %669 = vset.pattern.permute.xlu0 13
          %670 = vperm.xlu0 %669, %v664
          %v671 = vpop.permute.xlu0 %670
          %674 = vset.pattern.permute.xlu0 13
          %675 = vperm.xlu0 %674, %v665
          %v676 = vpop.permute.xlu0 %675
          %v679 = vperm.slane %v667, 0
          %v680 = vperm.slane %v667, 1
          %v683 = vmul.f32 %v671, %v679
          %v684 = vmul.f32 %v671, %v680
          %v685 = vmul.f32 %v676, %v679
          %v686 = vmul.f32 %v676, %v680
          %s687 = scalar_lea.vmem [#allocation3], 416
          %688 = vst [vmem:[%s687] sm:$0xff] %v683
          %689 = vst [vmem:[%s687 + $0x8] sm:$0xff] %v684
          %690 = vst [vmem:[%s687 + $0x10] sm:$0xff] %v685
          %691 = vst [vmem:[%s687 + $0x18] sm:$0xff] %v686
          %v692 = vld [vmem:[%s284] sm:$0xff]
          %v693 = vld [vmem:[%s284 + $0x8] sm:$0xff]
          %s694 = scalar_lea.vmem %s3, 22
          %v695 = vld [vmem:[%s694] ss:$8 sm:$0x3]
          %697 = vset.pattern.permute.xlu0 14
          %698 = vperm.xlu0 %697, %v692
          %v699 = vpop.permute.xlu0 %698
          %702 = vset.pattern.permute.xlu0 14
          %703 = vperm.xlu0 %702, %v693
          %v704 = vpop.permute.xlu0 %703
          %v707 = vperm.slane %v695, 0
          %v708 = vperm.slane %v695, 1
          %v711 = vmul.f32 %v699, %v707
          %v712 = vmul.f32 %v699, %v708
          %v713 = vmul.f32 %v704, %v707
          %v714 = vmul.f32 %v704, %v708
          %s715 = scalar_lea.vmem [#allocation3], 448
          %716 = vst [vmem:[%s715] sm:$0xff] %v711
          %717 = vst [vmem:[%s715 + $0x8] sm:$0xff] %v712
          %718 = vst [vmem:[%s715 + $0x10] sm:$0xff] %v713
          %719 = vst [vmem:[%s715 + $0x18] sm:$0xff] %v714
          %v720 = vld [vmem:[%s284] sm:$0xff]
          %v721 = vld [vmem:[%s284 + $0x8] sm:$0xff]
          %s722 = scalar_lea.vmem %s3, 23
          %v723 = vld [vmem:[%s722] ss:$8 sm:$0x3]
          %725 = vset.pattern.permute.xlu0 15
          %726 = vperm.xlu0 %725, %v720
          %v727 = vpop.permute.xlu0 %726
          %730 = vset.pattern.permute.xlu0 15
          %731 = vperm.xlu0 %730, %v721
          %v732 = vpop.permute.xlu0 %731
          %v735 = vperm.slane %v723, 0
          %v736 = vperm.slane %v723, 1
          %v739 = vmul.f32 %v727, %v735
          %v740 = vmul.f32 %v727, %v736
          %v741 = vmul.f32 %v732, %v735
          %v742 = vmul.f32 %v732, %v736
          %s743 = scalar_lea.vmem [#allocation3], 480
          %744 = vst [vmem:[%s743] sm:$0xff] %v739
          %745 = vst [vmem:[%s743 + $0x8] sm:$0xff] %v740
          %746 = vst [vmem:[%s743 + $0x10] sm:$0xff] %v741
          %747 = vst [vmem:[%s743 + $0x18] sm:$0xff] %v742
          %v748 = vld [vmem:[%s284] sm:$0xff]
          %v749 = vld [vmem:[%s284 + $0x8] sm:$0xff]
          %s750 = scalar_lea.vmem %s3, 32
          %v751 = vld [vmem:[%s750] ss:$8 sm:$0x3]
          %753 = vset.pattern.permute.xlu0 16
          %754 = vperm.xlu0 %753, %v748
          %v755 = vpop.permute.xlu0 %754
          %758 = vset.pattern.permute.xlu0 16
          %759 = vperm.xlu0 %758, %v749
          %v760 = vpop.permute.xlu0 %759
          %v763 = vperm.slane %v751, 0
          %v764 = vperm.slane %v751, 1
          %v767 = vmul.f32 %v755, %v763
          %v768 = vmul.f32 %v755, %v764
          %v769 = vmul.f32 %v760, %v763
          %v770 = vmul.f32 %v760, %v764
          %s771 = scalar_lea.vmem [#allocation3], 512
          %772 = vst [vmem:[%s771] sm:$0xff] %v767
          %773 = vst [vmem:[%s771 + $0x8] sm:$0xff] %v768
          %774 = vst [vmem:[%s771 + $0x10] sm:$0xff] %v769
          %775 = vst [vmem:[%s771 + $0x18] sm:$0xff] %v770
          %v776 = vld [vmem:[%s284] sm:$0xff]
          %v777 = vld [vmem:[%s284 + $0x8] sm:$0xff]
          %s778 = scalar_lea.vmem %s3, 33
          %v779 = vld [vmem:[%s778] ss:$8 sm:$0x3]
          %781 = vset.pattern.permute.xlu0 17
          %782 = vperm.xlu0 %781, %v776
          %v783 = vpop.permute.xlu0 %782
          %786 = vset.pattern.permute.xlu0 17
          %787 = vperm.xlu0 %786, %v777
          %v788 = vpop.permute.xlu0 %787
          %v791 = vperm.slane %v779, 0
          %v792 = vperm.slane %v779, 1
          %v795 = vmul.f32 %v783, %v791
          %v796 = vmul.f32 %v783, %v792
          %v797 = vmul.f32 %v788, %v791
          %v798 = vmul.f32 %v788, %v792
          %s799 = scalar_lea.vmem [#allocation3], 544
          %800 = vst [vmem:[%s799] sm:$0xff] %v795
          %801 = vst [vmem:[%s799 + $0x8] sm:$0xff] %v796
          %802 = vst [vmem:[%s799 + $0x10] sm:$0xff] %v797
          %803 = vst [vmem:[%s799 + $0x18] sm:$0xff] %v798
          %v804 = vld [vmem:[%s284] sm:$0xff]
          %v805 = vld [vmem:[%s284 + $0x8] sm:$0xff]
          %s806 = scalar_lea.vmem %s3, 34
          %v807 = vld [vmem:[%s806] ss:$8 sm:$0x3]
          %809 = vset.pattern.permute.xlu0 18
          %810 = vperm.xlu0 %809, %v804
          %v811 = vpop.permute.xlu0 %810
          %814 = vset.pattern.permute.xlu0 18
          %815 = vperm.xlu0 %814, %v805
          %v816 = vpop.permute.xlu0 %815
          %v819 = vperm.slane %v807, 0
          %v820 = vperm.slane %v807, 1
          %v823 = vmul.f32 %v811, %v819
          %v824 = vmul.f32 %v811, %v820
          %v825 = vmul.f32 %v816, %v819
          %v826 = vmul.f32 %v816, %v820
          %s827 = scalar_lea.vmem [#allocation3], 576
          %828 = vst [vmem:[%s827] sm:$0xff] %v823
          %829 = vst [vmem:[%s827 + $0x8] sm:$0xff] %v824
          %830 = vst [vmem:[%s827 + $0x10] sm:$0xff] %v825
          %831 = vst [vmem:[%s827 + $0x18] sm:$0xff] %v826
          %v832 = vld [vmem:[%s284] sm:$0xff]
          %v833 = vld [vmem:[%s284 + $0x8] sm:$0xff]
          %s834 = scalar_lea.vmem %s3, 35
          %v835 = vld [vmem:[%s834] ss:$8 sm:$0x3]
          %837 = vset.pattern.permute.xlu0 19
          %838 = vperm.xlu0 %837, %v832
          %v839 = vpop.permute.xlu0 %838
          %842 = vset.pattern.permute.xlu0 19
          %843 = vperm.xlu0 %842, %v833
          %v844 = vpop.permute.xlu0 %843
          %v847 = vperm.slane %v835, 0
          %v848 = vperm.slane %v835, 1
          %v851 = vmul.f32 %v839, %v847
          %v852 = vmul.f32 %v839, %v848
          %v853 = vmul.f32 %v844, %v847
          %v854 = vmul.f32 %v844, %v848
          %s855 = scalar_lea.vmem [#allocation3], 608
          %856 = vst [vmem:[%s855] sm:$0xff] %v851
          %857 = vst [vmem:[%s855 + $0x8] sm:$0xff] %v852
          %858 = vst [vmem:[%s855 + $0x10] sm:$0xff] %v853
          %859 = vst [vmem:[%s855 + $0x18] sm:$0xff] %v854
          %v860 = vld [vmem:[%s284] sm:$0xff]
          %v861 = vld [vmem:[%s284 + $0x8] sm:$0xff]
          %s862 = scalar_lea.vmem %s3, 36
          %v863 = vld [vmem:[%s862] ss:$8 sm:$0x3]
          %865 = vset.pattern.permute.xlu0 20
          %866 = vperm.xlu0 %865, %v860
          %v867 = vpop.permute.xlu0 %866
          %870 = vset.pattern.permute.xlu0 20
          %871 = vperm.xlu0 %870, %v861
          %v872 = vpop.permute.xlu0 %871
          %v875 = vperm.slane %v863, 0
          %v876 = vperm.slane %v863, 1
          %v879 = vmul.f32 %v867, %v875
          %v880 = vmul.f32 %v867, %v876
          %v881 = vmul.f32 %v872, %v875
          %v882 = vmul.f32 %v872, %v876
          %s883 = scalar_lea.vmem [#allocation3], 640
          %884 = vst [vmem:[%s883] sm:$0xff] %v879
          %885 = vst [vmem:[%s883 + $0x8] sm:$0xff] %v880
          %886 = vst [vmem:[%s883 + $0x10] sm:$0xff] %v881
          %887 = vst [vmem:[%s883 + $0x18] sm:$0xff] %v882
          %v888 = vld [vmem:[%s284] sm:$0xff]
          %v889 = vld [vmem:[%s284 + $0x8] sm:$0xff]
          %s890 = scalar_lea.vmem %s3, 37
          %v891 = vld [vmem:[%s890] ss:$8 sm:$0x3]
          %893 = vset.pattern.permute.xlu0 21
          %894 = vperm.xlu0 %893, %v888
          %v895 = vpop.permute.xlu0 %894
          %898 = vset.pattern.permute.xlu0 21
          %899 = vperm.xlu0 %898, %v889
          %v900 = vpop.permute.xlu0 %899
          %v903 = vperm.slane %v891, 0
          %v904 = vperm.slane %v891, 1
          %v907 = vmul.f32 %v895, %v903
          %v908 = vmul.f32 %v895, %v904
          %v909 = vmul.f32 %v900, %v903
          %v910 = vmul.f32 %v900, %v904
          %s911 = scalar_lea.vmem [#allocation3], 672
          %912 = vst [vmem:[%s911] sm:$0xff] %v907
          %913 = vst [vmem:[%s911 + $0x8] sm:$0xff] %v908
          %914 = vst [vmem:[%s911 + $0x10] sm:$0xff] %v909
          %915 = vst [vmem:[%s911 + $0x18] sm:$0xff] %v910
          %v916 = vld [vmem:[%s284] sm:$0xff]
          %v917 = vld [vmem:[%s284 + $0x8] sm:$0xff]
          %s918 = scalar_lea.vmem %s3, 38
          %v919 = vld [vmem:[%s918] ss:$8 sm:$0x3]
          %921 = vset.pattern.permute.xlu0 22
          %922 = vperm.xlu0 %921, %v916
          %v923 = vpop.permute.xlu0 %922
          %926 = vset.pattern.permute.xlu0 22
          %927 = vperm.xlu0 %926, %v917
          %v928 = vpop.permute.xlu0 %927
          %v931 = vperm.slane %v919, 0
          %v932 = vperm.slane %v919, 1
          %v935 = vmul.f32 %v923, %v931
          %v936 = vmul.f32 %v923, %v932
          %v937 = vmul.f32 %v928, %v931
          %v938 = vmul.f32 %v928, %v932
          %s939 = scalar_lea.vmem [#allocation3], 704
          %940 = vst [vmem:[%s939] sm:$0xff] %v935
          %941 = vst [vmem:[%s939 + $0x8] sm:$0xff] %v936
          %942 = vst [vmem:[%s939 + $0x10] sm:$0xff] %v937
          %943 = vst [vmem:[%s939 + $0x18] sm:$0xff] %v938
          %v944 = vld [vmem:[%s284] sm:$0xff]
          %v945 = vld [vmem:[%s284 + $0x8] sm:$0xff]
          %s946 = scalar_lea.vmem %s3, 39
          %v947 = vld [vmem:[%s946] ss:$8 sm:$0x3]
          %949 = vset.pattern.permute.xlu0 23
          %950 = vperm.xlu0 %949, %v944
          %v951 = vpop.permute.xlu0 %950
          %954 = vset.pattern.permute.xlu0 23
          %955 = vperm.xlu0 %954, %v945
          %v956 = vpop.permute.xlu0 %955
          %v959 = vperm.slane %v947, 0
          %v960 = vperm.slane %v947, 1
          %v963 = vmul.f32 %v951, %v959
          %v964 = vmul.f32 %v951, %v960
          %v965 = vmul.f32 %v956, %v959
          %v966 = vmul.f32 %v956, %v960
          %s967 = scalar_lea.vmem [#allocation3], 736
          %968 = vst [vmem:[%s967] sm:$0xff] %v963
          %969 = vst [vmem:[%s967 + $0x8] sm:$0xff] %v964
          %970 = vst [vmem:[%s967 + $0x10] sm:$0xff] %v965
          %971 = vst [vmem:[%s967 + $0x18] sm:$0xff] %v966
          %v972 = vld [vmem:[%s284] sm:$0xff]
          %v973 = vld [vmem:[%s284 + $0x8] sm:$0xff]
          %s974 = scalar_lea.vmem %s3, 48
          %v975 = vld [vmem:[%s974] ss:$8 sm:$0x3]
          %977 = vset.pattern.permute.xlu0 24
          %978 = vperm.xlu0 %977, %v972
          %v979 = vpop.permute.xlu0 %978
          %982 = vset.pattern.permute.xlu0 24
          %983 = vperm.xlu0 %982, %v973
          %v984 = vpop.permute.xlu0 %983
          %v987 = vperm.slane %v975, 0
          %v988 = vperm.slane %v975, 1
          %v991 = vmul.f32 %v979, %v987
          %v992 = vmul.f32 %v979, %v988
          %v993 = vmul.f32 %v984, %v987
          %v994 = vmul.f32 %v984, %v988
          %s995 = scalar_lea.vmem [#allocation3], 768
          %996 = vst [vmem:[%s995] sm:$0xff] %v991
          %997 = vst [vmem:[%s995 + $0x8] sm:$0xff] %v992
          %998 = vst [vmem:[%s995 + $0x10] sm:$0xff] %v993
          %999 = vst [vmem:[%s995 + $0x18] sm:$0xff] %v994
          %v1000 = vld [vmem:[%s284] sm:$0xff]
          %v1001 = vld [vmem:[%s284 + $0x8] sm:$0xff]
          %s1002 = scalar_lea.vmem %s3, 49
          %v1003 = vld [vmem:[%s1002] ss:$8 sm:$0x3]
          %1005 = vset.pattern.permute.xlu0 25
          %1006 = vperm.xlu0 %1005, %v1000
          %v1007 = vpop.permute.xlu0 %1006
          %1010 = vset.pattern.permute.xlu0 25
          %1011 = vperm.xlu0 %1010, %v1001
          %v1012 = vpop.permute.xlu0 %1011
          %v1015 = vperm.slane %v1003, 0
          %v1016 = vperm.slane %v1003, 1
          %v1019 = vmul.f32 %v1007, %v1015
          %v1020 = vmul.f32 %v1007, %v1016
          %v1021 = vmul.f32 %v1012, %v1015
          %v1022 = vmul.f32 %v1012, %v1016
          %s1023 = scalar_lea.vmem [#allocation3], 800
          %1024 = vst [vmem:[%s1023] sm:$0xff] %v1019
          %1025 = vst [vmem:[%s1023 + $0x8] sm:$0xff] %v1020
          %1026 = vst [vmem:[%s1023 + $0x10] sm:$0xff] %v1021
          %1027 = vst [vmem:[%s1023 + $0x18] sm:$0xff] %v1022
          %v1028 = vld [vmem:[%s284] sm:$0xff]
          %v1029 = vld [vmem:[%s284 + $0x8] sm:$0xff]
          %s1030 = scalar_lea.vmem %s3, 50
          %v1031 = vld [vmem:[%s1030] ss:$8 sm:$0x3]
          %1033 = vset.pattern.permute.xlu0 26
          %1034 = vperm.xlu0 %1033, %v1028
          %v1035 = vpop.permute.xlu0 %1034
          %1038 = vset.pattern.permute.xlu0 26
          %1039 = vperm.xlu0 %1038, %v1029
          %v1040 = vpop.permute.xlu0 %1039
          %v1043 = vperm.slane %v1031, 0
          %v1044 = vperm.slane %v1031, 1
          %v1047 = vmul.f32 %v1035, %v1043
          %v1048 = vmul.f32 %v1035, %v1044
          %v1049 = vmul.f32 %v1040, %v1043
          %v1050 = vmul.f32 %v1040, %v1044
          %s1051 = scalar_lea.vmem [#allocation3], 832
          %1052 = vst [vmem:[%s1051] sm:$0xff] %v1047
          %1053 = vst [vmem:[%s1051 + $0x8] sm:$0xff] %v1048
          %1054 = vst [vmem:[%s1051 + $0x10] sm:$0xff] %v1049
          %1055 = vst [vmem:[%s1051 + $0x18] sm:$0xff] %v1050
          %v1056 = vld [vmem:[%s284] sm:$0xff]
          %v1057 = vld [vmem:[%s284 + $0x8] sm:$0xff]
          %s1058 = scalar_lea.vmem %s3, 51
          %v1059 = vld [vmem:[%s1058] ss:$8 sm:$0x3]
          %1061 = vset.pattern.permute.xlu0 27
          %1062 = vperm.xlu0 %1061, %v1056
          %v1063 = vpop.permute.xlu0 %1062
          %1066 = vset.pattern.permute.xlu0 27
          %1067 = vperm.xlu0 %1066, %v1057
          %v1068 = vpop.permute.xlu0 %1067
          %v1071 = vperm.slane %v1059, 0
          %v1072 = vperm.slane %v1059, 1
          %v1075 = vmul.f32 %v1063, %v1071
          %v1076 = vmul.f32 %v1063, %v1072
          %v1077 = vmul.f32 %v1068, %v1071
          %v1078 = vmul.f32 %v1068, %v1072
          %s1079 = scalar_lea.vmem [#allocation3], 864
          %1080 = vst [vmem:[%s1079] sm:$0xff] %v1075
          %1081 = vst [vmem:[%s1079 + $0x8] sm:$0xff] %v1076
          %1082 = vst [vmem:[%s1079 + $0x10] sm:$0xff] %v1077
          %1083 = vst [vmem:[%s1079 + $0x18] sm:$0xff] %v1078
          %v1084 = vld [vmem:[%s284] sm:$0xff]
          %v1085 = vld [vmem:[%s284 + $0x8] sm:$0xff]
          %s1086 = scalar_lea.vmem %s3, 52
          %v1087 = vld [vmem:[%s1086] ss:$8 sm:$0x3]
          %1089 = vset.pattern.permute.xlu0 28
          %1090 = vperm.xlu0 %1089, %v1084
          %v1091 = vpop.permute.xlu0 %1090
          %1094 = vset.pattern.permute.xlu0 28
          %1095 = vperm.xlu0 %1094, %v1085
          %v1096 = vpop.permute.xlu0 %1095
          %v1099 = vperm.slane %v1087, 0
          %v1100 = vperm.slane %v1087, 1
          %v1103 = vmul.f32 %v1091, %v1099
          %v1104 = vmul.f32 %v1091, %v1100
          %v1105 = vmul.f32 %v1096, %v1099
          %v1106 = vmul.f32 %v1096, %v1100
          %s1107 = scalar_lea.vmem [#allocation3], 896
          %1108 = vst [vmem:[%s1107] sm:$0xff] %v1103
          %1109 = vst [vmem:[%s1107 + $0x8] sm:$0xff] %v1104
          %1110 = vst [vmem:[%s1107 + $0x10] sm:$0xff] %v1105
          %1111 = vst [vmem:[%s1107 + $0x18] sm:$0xff] %v1106
          %v1112 = vld [vmem:[%s284] sm:$0xff]
          %v1113 = vld [vmem:[%s284 + $0x8] sm:$0xff]
          %s1114 = scalar_lea.vmem %s3, 53
          %v1115 = vld [vmem:[%s1114] ss:$8 sm:$0x3]
          %1117 = vset.pattern.permute.xlu0 29
          %1118 = vperm.xlu0 %1117, %v1112
          %v1119 = vpop.permute.xlu0 %1118
          %1122 = vset.pattern.permute.xlu0 29
          %1123 = vperm.xlu0 %1122, %v1113
          %v1124 = vpop.permute.xlu0 %1123
          %v1127 = vperm.slane %v1115, 0
          %v1128 = vperm.slane %v1115, 1
          %v1131 = vmul.f32 %v1119, %v1127
          %v1132 = vmul.f32 %v1119, %v1128
          %v1133 = vmul.f32 %v1124, %v1127
          %v1134 = vmul.f32 %v1124, %v1128
          %s1135 = scalar_lea.vmem [#allocation3], 928
          %1136 = vst [vmem:[%s1135] sm:$0xff] %v1131
          %1137 = vst [vmem:[%s1135 + $0x8] sm:$0xff] %v1132
          %1138 = vst [vmem:[%s1135 + $0x10] sm:$0xff] %v1133
          %1139 = vst [vmem:[%s1135 + $0x18] sm:$0xff] %v1134
          %v1140 = vld [vmem:[%s284] sm:$0xff]
          %v1141 = vld [vmem:[%s284 + $0x8] sm:$0xff]
          %s1142 = scalar_lea.vmem %s3, 54
          %v1143 = vld [vmem:[%s1142] ss:$8 sm:$0x3]
          %1145 = vset.pattern.permute.xlu0 30
          %1146 = vperm.xlu0 %1145, %v1140
          %v1147 = vpop.permute.xlu0 %1146
          %1150 = vset.pattern.permute.xlu0 30
          %1151 = vperm.xlu0 %1150, %v1141
          %v1152 = vpop.permute.xlu0 %1151
          %v1155 = vperm.slane %v1143, 0
          %v1156 = vperm.slane %v1143, 1
          %v1159 = vmul.f32 %v1147, %v1155
          %v1160 = vmul.f32 %v1147, %v1156
          %v1161 = vmul.f32 %v1152, %v1155
          %v1162 = vmul.f32 %v1152, %v1156
          %s1163 = scalar_lea.vmem [#allocation3], 960
          %1164 = vst [vmem:[%s1163] sm:$0xff] %v1159
          %1165 = vst [vmem:[%s1163 + $0x8] sm:$0xff] %v1160
          %1166 = vst [vmem:[%s1163 + $0x10] sm:$0xff] %v1161
          %1167 = vst [vmem:[%s1163 + $0x18] sm:$0xff] %v1162
          %v1168 = vld [vmem:[%s284] sm:$0xff]
          %v1169 = vld [vmem:[%s284 + $0x8] sm:$0xff]
          %s1170 = scalar_lea.vmem %s3, 55
          %v1171 = vld [vmem:[%s1170] ss:$8 sm:$0x3]
          %1173 = vset.pattern.permute.xlu0 31
          %1174 = vperm.xlu0 %1173, %v1168
          %v1175 = vpop.permute.xlu0 %1174
          %1178 = vset.pattern.permute.xlu0 31
          %1179 = vperm.xlu0 %1178, %v1169
          %v1180 = vpop.permute.xlu0 %1179
          %v1183 = vperm.slane %v1171, 0
          %v1184 = vperm.slane %v1171, 1
          %v1187 = vmul.f32 %v1175, %v1183
          %v1188 = vmul.f32 %v1175, %v1184
          %v1189 = vmul.f32 %v1180, %v1183
          %v1190 = vmul.f32 %v1180, %v1184
          %s1191 = scalar_lea.vmem [#allocation3], 992
          %1192 = vst [vmem:[%s1191] sm:$0xff] %v1187
          %1193 = vst [vmem:[%s1191 + $0x8] sm:$0xff] %v1188
          %1194 = vst [vmem:[%s1191 + $0x10] sm:$0xff] %v1189
          %1195 = vst [vmem:[%s1191 + $0x18] sm:$0xff] %v1190
          %v1196 = vld [vmem:[%s284] sm:$0xff]
          %v1197 = vld [vmem:[%s284 + $0x8] sm:$0xff]
          %s1198 = scalar_lea.vmem %s3, 64
          %v1199 = vld [vmem:[%s1198] ss:$8 sm:$0x3]
          %1201 = vset.pattern.permute.xlu0 32
          %1202 = vperm.xlu0 %1201, %v1196
          %v1203 = vpop.permute.xlu0 %1202
          %1206 = vset.pattern.permute.xlu0 32
          %1207 = vperm.xlu0 %1206, %v1197
          %v1208 = vpop.permute.xlu0 %1207
          %v1211 = vperm.slane %v1199, 0
          %v1212 = vperm.slane %v1199, 1
          %v1215 = vmul.f32 %v1203, %v1211
          %v1216 = vmul.f32 %v1203, %v1212
          %v1217 = vmul.f32 %v1208, %v1211
          %v1218 = vmul.f32 %v1208, %v1212
          %s1219 = scalar_lea.vmem [#allocation3], 1024
          %1220 = vst [vmem:[%s1219] sm:$0xff] %v1215
          %1221 = vst [vmem:[%s1219 + $0x8] sm:$0xff] %v1216
          %1222 = vst [vmem:[%s1219 + $0x10] sm:$0xff] %v1217
          %1223 = vst [vmem:[%s1219 + $0x18] sm:$0xff] %v1218
          %v1224 = vld [vmem:[%s284] sm:$0xff]
          %v1225 = vld [vmem:[%s284 + $0x8] sm:$0xff]
          %s1226 = scalar_lea.vmem %s3, 65
          %v1227 = vld [vmem:[%s1226] ss:$8 sm:$0x3]
          %1229 = vset.pattern.permute.xlu0 33
          %1230 = vperm.xlu0 %1229, %v1224
          %v1231 = vpop.permute.xlu0 %1230
          %1234 = vset.pattern.permute.xlu0 33
          %1235 = vperm.xlu0 %1234, %v1225
          %v1236 = vpop.permute.xlu0 %1235
          %v1239 = vperm.slane %v1227, 0
          %v1240 = vperm.slane %v1227, 1
          %v1243 = vmul.f32 %v1231, %v1239
          %v1244 = vmul.f32 %v1231, %v1240
          %v1245 = vmul.f32 %v1236, %v1239
          %v1246 = vmul.f32 %v1236, %v1240
          %s1247 = scalar_lea.vmem [#allocation3], 1056
          %1248 = vst [vmem:[%s1247] sm:$0xff] %v1243
          %1249 = vst [vmem:[%s1247 + $0x8] sm:$0xff] %v1244
          %1250 = vst [vmem:[%s1247 + $0x10] sm:$0xff] %v1245
          %1251 = vst [vmem:[%s1247 + $0x18] sm:$0xff] %v1246
          %v1252 = vld [vmem:[%s284] sm:$0xff]
          %v1253 = vld [vmem:[%s284 + $0x8] sm:$0xff]
          %s1254 = scalar_lea.vmem %s3, 66
          %v1255 = vld [vmem:[%s1254] ss:$8 sm:$0x3]
          %1257 = vset.pattern.permute.xlu0 34
          %1258 = vperm.xlu0 %1257, %v1252
          %v1259 = vpop.permute.xlu0 %1258
          %1262 = vset.pattern.permute.xlu0 34
          %1263 = vperm.xlu0 %1262, %v1253
          %v1264 = vpop.permute.xlu0 %1263
          %v1267 = vperm.slane %v1255, 0
          %v1268 = vperm.slane %v1255, 1
          %v1271 = vmul.f32 %v1259, %v1267
          %v1272 = vmul.f32 %v1259, %v1268
          %v1273 = vmul.f32 %v1264, %v1267
          %v1274 = vmul.f32 %v1264, %v1268
          %s1275 = scalar_lea.vmem [#allocation3], 1088
          %1276 = vst [vmem:[%s1275] sm:$0xff] %v1271
          %1277 = vst [vmem:[%s1275 + $0x8] sm:$0xff] %v1272
          %1278 = vst [vmem:[%s1275 + $0x10] sm:$0xff] %v1273
          %1279 = vst [vmem:[%s1275 + $0x18] sm:$0xff] %v1274
          %v1280 = vld [vmem:[%s284] sm:$0xff]
          %v1281 = vld [vmem:[%s284 + $0x8] sm:$0xff]
          %s1282 = scalar_lea.vmem %s3, 67
          %v1283 = vld [vmem:[%s1282] ss:$8 sm:$0x3]
          %1285 = vset.pattern.permute.xlu0 35
          %1286 = vperm.xlu0 %1285, %v1280
          %v1287 = vpop.permute.xlu0 %1286
          %1290 = vset.pattern.permute.xlu0 35
          %1291 = vperm.xlu0 %1290, %v1281
          %v1292 = vpop.permute.xlu0 %1291
          %v1295 = vperm.slane %v1283, 0
          %v1296 = vperm.slane %v1283, 1
          %v1299 = vmul.f32 %v1287, %v1295
          %v1300 = vmul.f32 %v1287, %v1296
          %v1301 = vmul.f32 %v1292, %v1295
          %v1302 = vmul.f32 %v1292, %v1296
          %s1303 = scalar_lea.vmem [#allocation3], 1120
          %1304 = vst [vmem:[%s1303] sm:$0xff] %v1299
          %1305 = vst [vmem:[%s1303 + $0x8] sm:$0xff] %v1300
          %1306 = vst [vmem:[%s1303 + $0x10] sm:$0xff] %v1301
          %1307 = vst [vmem:[%s1303 + $0x18] sm:$0xff] %v1302
          %v1308 = vld [vmem:[%s284] sm:$0xff]
          %v1309 = vld [vmem:[%s284 + $0x8] sm:$0xff]
          %s1310 = scalar_lea.vmem %s3, 68
          %v1311 = vld [vmem:[%s1310] ss:$8 sm:$0x3]
          %1313 = vset.pattern.permute.xlu0 36
          %1314 = vperm.xlu0 %1313, %v1308
          %v1315 = vpop.permute.xlu0 %1314
          %1318 = vset.pattern.permute.xlu0 36
          %1319 = vperm.xlu0 %1318, %v1309
          %v1320 = vpop.permute.xlu0 %1319
          %v1323 = vperm.slane %v1311, 0
          %v1324 = vperm.slane %v1311, 1
          %v1327 = vmul.f32 %v1315, %v1323
          %v1328 = vmul.f32 %v1315, %v1324
          %v1329 = vmul.f32 %v1320, %v1323
          %v1330 = vmul.f32 %v1320, %v1324
          %s1331 = scalar_lea.vmem [#allocation3], 1152
          %1332 = vst [vmem:[%s1331] sm:$0xff] %v1327
          %1333 = vst [vmem:[%s1331 + $0x8] sm:$0xff] %v1328
          %1334 = vst [vmem:[%s1331 + $0x10] sm:$0xff] %v1329
          %1335 = vst [vmem:[%s1331 + $0x18] sm:$0xff] %v1330
          %v1336 = vld [vmem:[%s284] sm:$0xff]
          %v1337 = vld [vmem:[%s284 + $0x8] sm:$0xff]
          %s1338 = scalar_lea.vmem %s3, 69
          %v1339 = vld [vmem:[%s1338] ss:$8 sm:$0x3]
          %1341 = vset.pattern.permute.xlu0 37
          %1342 = vperm.xlu0 %1341, %v1336
          %v1343 = vpop.permute.xlu0 %1342
          %1346 = vset.pattern.permute.xlu0 37
          %1347 = vperm.xlu0 %1346, %v1337
          %v1348 = vpop.permute.xlu0 %1347
          %v1351 = vperm.slane %v1339, 0
          %v1352 = vperm.slane %v1339, 1
          %v1355 = vmul.f32 %v1343, %v1351
          %v1356 = vmul.f32 %v1343, %v1352
          %v1357 = vmul.f32 %v1348, %v1351
          %v1358 = vmul.f32 %v1348, %v1352
          %s1359 = scalar_lea.vmem [#allocation3], 1184
          %1360 = vst [vmem:[%s1359] sm:$0xff] %v1355
          %1361 = vst [vmem:[%s1359 + $0x8] sm:$0xff] %v1356
          %1362 = vst [vmem:[%s1359 + $0x10] sm:$0xff] %v1357
          %1363 = vst [vmem:[%s1359 + $0x18] sm:$0xff] %v1358
          %v1364 = vld [vmem:[%s284] sm:$0xff]
          %v1365 = vld [vmem:[%s284 + $0x8] sm:$0xff]
          %s1366 = scalar_lea.vmem %s3, 70
          %v1367 = vld [vmem:[%s1366] ss:$8 sm:$0x3]
          %1369 = vset.pattern.permute.xlu0 38
          %1370 = vperm.xlu0 %1369, %v1364
          %v1371 = vpop.permute.xlu0 %1370
          %1374 = vset.pattern.permute.xlu0 38
          %1375 = vperm.xlu0 %1374, %v1365
          %v1376 = vpop.permute.xlu0 %1375
          %v1379 = vperm.slane %v1367, 0
          %v1380 = vperm.slane %v1367, 1
          %v1383 = vmul.f32 %v1371, %v1379
          %v1384 = vmul.f32 %v1371, %v1380
          %v1385 = vmul.f32 %v1376, %v1379
          %v1386 = vmul.f32 %v1376, %v1380
          %s1387 = scalar_lea.vmem [#allocation3], 1216
          %1388 = vst [vmem:[%s1387] sm:$0xff] %v1383
          %1389 = vst [vmem:[%s1387 + $0x8] sm:$0xff] %v1384
          %1390 = vst [vmem:[%s1387 + $0x10] sm:$0xff] %v1385
          %1391 = vst [vmem:[%s1387 + $0x18] sm:$0xff] %v1386
          %v1392 = vld [vmem:[%s284] sm:$0xff]
          %v1393 = vld [vmem:[%s284 + $0x8] sm:$0xff]
          %s1394 = scalar_lea.vmem %s3, 71
          %v1395 = vld [vmem:[%s1394] ss:$8 sm:$0x3]
          %1397 = vset.pattern.permute.xlu0 39
          %1398 = vperm.xlu0 %1397, %v1392
          %v1399 = vpop.permute.xlu0 %1398
          %1402 = vset.pattern.permute.xlu0 39
          %1403 = vperm.xlu0 %1402, %v1393
          %v1404 = vpop.permute.xlu0 %1403
          %v1407 = vperm.slane %v1395, 0
          %v1408 = vperm.slane %v1395, 1
          %v1411 = vmul.f32 %v1399, %v1407
          %v1412 = vmul.f32 %v1399, %v1408
          %v1413 = vmul.f32 %v1404, %v1407
          %v1414 = vmul.f32 %v1404, %v1408
          %s1415 = scalar_lea.vmem [#allocation3], 1248
          %1416 = vst [vmem:[%s1415] sm:$0xff] %v1411
          %1417 = vst [vmem:[%s1415 + $0x8] sm:$0xff] %v1412
          %1418 = vst [vmem:[%s1415 + $0x10] sm:$0xff] %v1413
          %1419 = vst [vmem:[%s1415 + $0x18] sm:$0xff] %v1414
          %v1420 = vld [vmem:[%s284] sm:$0xff]
          %v1421 = vld [vmem:[%s284 + $0x8] sm:$0xff]
          %s1422 = scalar_lea.vmem %s3, 80
          %v1423 = vld [vmem:[%s1422] ss:$8 sm:$0x3]
          %1425 = vset.pattern.permute.xlu0 40
          %1426 = vperm.xlu0 %1425, %v1420
          %v1427 = vpop.permute.xlu0 %1426
          %1430 = vset.pattern.permute.xlu0 40
          %1431 = vperm.xlu0 %1430, %v1421
          %v1432 = vpop.permute.xlu0 %1431
          %v1435 = vperm.slane %v1423, 0
          %v1436 = vperm.slane %v1423, 1
          %v1439 = vmul.f32 %v1427, %v1435
          %v1440 = vmul.f32 %v1427, %v1436
          %v1441 = vmul.f32 %v1432, %v1435
          %v1442 = vmul.f32 %v1432, %v1436
          %s1443 = scalar_lea.vmem [#allocation3], 1280
          %1444 = vst [vmem:[%s1443] sm:$0xff] %v1439
          %1445 = vst [vmem:[%s1443 + $0x8] sm:$0xff] %v1440
          %1446 = vst [vmem:[%s1443 + $0x10] sm:$0xff] %v1441
          %1447 = vst [vmem:[%s1443 + $0x18] sm:$0xff] %v1442
          %v1448 = vld [vmem:[%s284] sm:$0xff]
          %v1449 = vld [vmem:[%s284 + $0x8] sm:$0xff]
          %s1450 = scalar_lea.vmem %s3, 81
          %v1451 = vld [vmem:[%s1450] ss:$8 sm:$0x3]
          %1453 = vset.pattern.permute.xlu0 41
          %1454 = vperm.xlu0 %1453, %v1448
          %v1455 = vpop.permute.xlu0 %1454
          %1458 = vset.pattern.permute.xlu0 41
          %1459 = vperm.xlu0 %1458, %v1449
          %v1460 = vpop.permute.xlu0 %1459
          %v1463 = vperm.slane %v1451, 0
          %v1464 = vperm.slane %v1451, 1
          %v1467 = vmul.f32 %v1455, %v1463
          %v1468 = vmul.f32 %v1455, %v1464
          %v1469 = vmul.f32 %v1460, %v1463
          %v1470 = vmul.f32 %v1460, %v1464
          %s1471 = scalar_lea.vmem [#allocation3], 1312
          %1472 = vst [vmem:[%s1471] sm:$0xff] %v1467
          %1473 = vst [vmem:[%s1471 + $0x8] sm:$0xff] %v1468
          %1474 = vst [vmem:[%s1471 + $0x10] sm:$0xff] %v1469
          %1475 = vst [vmem:[%s1471 + $0x18] sm:$0xff] %v1470
          %v1476 = vld [vmem:[%s284] sm:$0xff]
          %v1477 = vld [vmem:[%s284 + $0x8] sm:$0xff]
          %s1478 = scalar_lea.vmem %s3, 82
          %v1479 = vld [vmem:[%s1478] ss:$8 sm:$0x3]
          %1481 = vset.pattern.permute.xlu0 42
          %1482 = vperm.xlu0 %1481, %v1476
          %v1483 = vpop.permute.xlu0 %1482
          %1486 = vset.pattern.permute.xlu0 42
          %1487 = vperm.xlu0 %1486, %v1477
          %v1488 = vpop.permute.xlu0 %1487
          %v1491 = vperm.slane %v1479, 0
          %v1492 = vperm.slane %v1479, 1
          %v1495 = vmul.f32 %v1483, %v1491
          %v1496 = vmul.f32 %v1483, %v1492
          %v1497 = vmul.f32 %v1488, %v1491
          %v1498 = vmul.f32 %v1488, %v1492
          %s1499 = scalar_lea.vmem [#allocation3], 1344
          %1500 = vst [vmem:[%s1499] sm:$0xff] %v1495
          %1501 = vst [vmem:[%s1499 + $0x8] sm:$0xff] %v1496
          %1502 = vst [vmem:[%s1499 + $0x10] sm:$0xff] %v1497
          %1503 = vst [vmem:[%s1499 + $0x18] sm:$0xff] %v1498
          %v1504 = vld [vmem:[%s284] sm:$0xff]
          %v1505 = vld [vmem:[%s284 + $0x8] sm:$0xff]
          %s1506 = scalar_lea.vmem %s3, 83
          %v1507 = vld [vmem:[%s1506] ss:$8 sm:$0x3]
          %1509 = vset.pattern.permute.xlu0 43
          %1510 = vperm.xlu0 %1509, %v1504
          %v1511 = vpop.permute.xlu0 %1510
          %1514 = vset.pattern.permute.xlu0 43
          %1515 = vperm.xlu0 %1514, %v1505
          %v1516 = vpop.permute.xlu0 %1515
          %v1519 = vperm.slane %v1507, 0
          %v1520 = vperm.slane %v1507, 1
          %v1523 = vmul.f32 %v1511, %v1519
          %v1524 = vmul.f32 %v1511, %v1520
          %v1525 = vmul.f32 %v1516, %v1519
          %v1526 = vmul.f32 %v1516, %v1520
          %s1527 = scalar_lea.vmem [#allocation3], 1376
          %1528 = vst [vmem:[%s1527] sm:$0xff] %v1523
          %1529 = vst [vmem:[%s1527 + $0x8] sm:$0xff] %v1524
          %1530 = vst [vmem:[%s1527 + $0x10] sm:$0xff] %v1525
          %1531 = vst [vmem:[%s1527 + $0x18] sm:$0xff] %v1526
          %v1532 = vld [vmem:[%s284] sm:$0xff]
          %v1533 = vld [vmem:[%s284 + $0x8] sm:$0xff]
          %s1534 = scalar_lea.vmem %s3, 84
          %v1535 = vld [vmem:[%s1534] ss:$8 sm:$0x3]
          %1537 = vset.pattern.permute.xlu0 44
          %1538 = vperm.xlu0 %1537, %v1532
          %v1539 = vpop.permute.xlu0 %1538
          %1542 = vset.pattern.permute.xlu0 44
          %1543 = vperm.xlu0 %1542, %v1533
          %v1544 = vpop.permute.xlu0 %1543
          %v1547 = vperm.slane %v1535, 0
          %v1548 = vperm.slane %v1535, 1
          %v1551 = vmul.f32 %v1539, %v1547
          %v1552 = vmul.f32 %v1539, %v1548
          %v1553 = vmul.f32 %v1544, %v1547
          %v1554 = vmul.f32 %v1544, %v1548
          %s1555 = scalar_lea.vmem [#allocation3], 1408
          %1556 = vst [vmem:[%s1555] sm:$0xff] %v1551
          %1557 = vst [vmem:[%s1555 + $0x8] sm:$0xff] %v1552
          %1558 = vst [vmem:[%s1555 + $0x10] sm:$0xff] %v1553
          %1559 = vst [vmem:[%s1555 + $0x18] sm:$0xff] %v1554
          %v1560 = vld [vmem:[%s284] sm:$0xff]
          %v1561 = vld [vmem:[%s284 + $0x8] sm:$0xff]
          %s1562 = scalar_lea.vmem %s3, 85
          %v1563 = vld [vmem:[%s1562] ss:$8 sm:$0x3]
          %1565 = vset.pattern.permute.xlu0 45
          %1566 = vperm.xlu0 %1565, %v1560
          %v1567 = vpop.permute.xlu0 %1566
          %1570 = vset.pattern.permute.xlu0 45
          %1571 = vperm.xlu0 %1570, %v1561
          %v1572 = vpop.permute.xlu0 %1571
          %v1575 = vperm.slane %v1563, 0
          %v1576 = vperm.slane %v1563, 1
          %v1579 = vmul.f32 %v1567, %v1575
          %v1580 = vmul.f32 %v1567, %v1576
          %v1581 = vmul.f32 %v1572, %v1575
          %v1582 = vmul.f32 %v1572, %v1576
          %s1583 = scalar_lea.vmem [#allocation3], 1440
          %1584 = vst [vmem:[%s1583] sm:$0xff] %v1579
          %1585 = vst [vmem:[%s1583 + $0x8] sm:$0xff] %v1580
          %1586 = vst [vmem:[%s1583 + $0x10] sm:$0xff] %v1581
          %1587 = vst [vmem:[%s1583 + $0x18] sm:$0xff] %v1582
          %v1588 = vld [vmem:[%s284] sm:$0xff]
          %v1589 = vld [vmem:[%s284 + $0x8] sm:$0xff]
          %s1590 = scalar_lea.vmem %s3, 86
          %v1591 = vld [vmem:[%s1590] ss:$8 sm:$0x3]
          %1593 = vset.pattern.permute.xlu0 46
          %1594 = vperm.xlu0 %1593, %v1588
          %v1595 = vpop.permute.xlu0 %1594
          %1598 = vset.pattern.permute.xlu0 46
          %1599 = vperm.xlu0 %1598, %v1589
          %v1600 = vpop.permute.xlu0 %1599
          %v1603 = vperm.slane %v1591, 0
          %v1604 = vperm.slane %v1591, 1
          %v1607 = vmul.f32 %v1595, %v1603
          %v1608 = vmul.f32 %v1595, %v1604
          %v1609 = vmul.f32 %v1600, %v1603
          %v1610 = vmul.f32 %v1600, %v1604
          %s1611 = scalar_lea.vmem [#allocation3], 1472
          %1612 = vst [vmem:[%s1611] sm:$0xff] %v1607
          %1613 = vst [vmem:[%s1611 + $0x8] sm:$0xff] %v1608
          %1614 = vst [vmem:[%s1611 + $0x10] sm:$0xff] %v1609
          %1615 = vst [vmem:[%s1611 + $0x18] sm:$0xff] %v1610
          %v1616 = vld [vmem:[%s284] sm:$0xff]
          %v1617 = vld [vmem:[%s284 + $0x8] sm:$0xff]
          %s1618 = scalar_lea.vmem %s3, 87
          %v1619 = vld [vmem:[%s1618] ss:$8 sm:$0x3]
          %1621 = vset.pattern.permute.xlu0 47
          %1622 = vperm.xlu0 %1621, %v1616
          %v1623 = vpop.permute.xlu0 %1622
          %1626 = vset.pattern.permute.xlu0 47
          %1627 = vperm.xlu0 %1626, %v1617
          %v1628 = vpop.permute.xlu0 %1627
          %v1631 = vperm.slane %v1619, 0
          %v1632 = vperm.slane %v1619, 1
          %v1635 = vmul.f32 %v1623, %v1631
          %v1636 = vmul.f32 %v1623, %v1632
          %v1637 = vmul.f32 %v1628, %v1631
          %v1638 = vmul.f32 %v1628, %v1632
          %s1639 = scalar_lea.vmem [#allocation3], 1504
          %1640 = vst [vmem:[%s1639] sm:$0xff] %v1635
          %1641 = vst [vmem:[%s1639 + $0x8] sm:$0xff] %v1636
          %1642 = vst [vmem:[%s1639 + $0x10] sm:$0xff] %v1637
          %1643 = vst [vmem:[%s1639 + $0x18] sm:$0xff] %v1638
          %v1644 = vld [vmem:[%s284] sm:$0xff]
          %v1645 = vld [vmem:[%s284 + $0x8] sm:$0xff]
          %s1646 = scalar_lea.vmem %s3, 96
          %v1647 = vld [vmem:[%s1646] ss:$8 sm:$0x3]
          %1649 = vset.pattern.permute.xlu0 48
          %1650 = vperm.xlu0 %1649, %v1644
          %v1651 = vpop.permute.xlu0 %1650
          %1654 = vset.pattern.permute.xlu0 48
          %1655 = vperm.xlu0 %1654, %v1645
          %v1656 = vpop.permute.xlu0 %1655
          %v1659 = vperm.slane %v1647, 0
          %v1660 = vperm.slane %v1647, 1
          %v1663 = vmul.f32 %v1651, %v1659
          %v1664 = vmul.f32 %v1651, %v1660
          %v1665 = vmul.f32 %v1656, %v1659
          %v1666 = vmul.f32 %v1656, %v1660
          %s1667 = scalar_lea.vmem [#allocation3], 1536
          %1668 = vst [vmem:[%s1667] sm:$0xff] %v1663
          %1669 = vst [vmem:[%s1667 + $0x8] sm:$0xff] %v1664
          %1670 = vst [vmem:[%s1667 + $0x10] sm:$0xff] %v1665
          %1671 = vst [vmem:[%s1667 + $0x18] sm:$0xff] %v1666
        $region63: #{repcpe_forward.1} parent=54 // pred_fallthru
          _
        %v1672 = vld [vmem:[%s290] sm:$0xff]
        %v1673 = vld [vmem:[%s290 + $0x8] sm:$0xff]
        %1675 = vset.pattern.permute.xlu0 0
        %1676 = vperm.xlu0 %1675, %v1672
        %v1677 = vpop.permute.xlu0 %1676
        %1680 = vset.pattern.permute.xlu0 0
        %1681 = vperm.xlu0 %1680, %v1673
        %v1682 = vpop.permute.xlu0 %1681
        loop: start=0, step=1, limit=2
        $region64: #{repcpe_forward.1} parent=54 // loop_pre_header
          _
        $region65: #{repcpe_forward.1} parent=54 // loop_header
          %s1685 = sphi 0, %s1689
          %p1686 = scmp.ge.s32.totalorder %s1685, 2
        $region66: #{repcpe_forward.1} parent=54 // loop_header_branch
          %1688 = sbr.rel (%p1686) target = $region70
        $region67: #{repcpe_forward.1} parent=54 // loop_body
          %s1690 = smul.u32 %s1685, 4
          %s1691 = smul.addr %s1690, 8
          %s1692 = scalar_lea.vmem %s246, %s1691 [#allocation4]
          %v1693 = vld [vmem:[%s1692] sm:$0xff]
          %v1694 = vld [vmem:[%s1692 + $0x8] sm:$0xff]
          %v1695 = vld [vmem:[%s1692 + $0x10] sm:$0xff]
          %v1696 = vld [vmem:[%s1692 + $0x18] sm:$0xff]
          %1697 = vst [vmem:[#allocation2 + $0x8] sm:$0xff] %v1693
          %1698 = vst [vmem:[#allocation2 + $0x10] sm:$0xff] %v1694
          %1699 = vst [vmem:[#allocation2 + $0x28] sm:$0xff] %v1695
          %1700 = vst [vmem:[#allocation2 + $0x30] sm:$0xff] %v1696
          %v1701 = vld [vmem:[#allocation2] sm:$0xff]
          %v1702 = vld [vmem:[#allocation2 + $0x8] sm:$0xff]
          %v1703 = vld [vmem:[#allocation2 + $0x10] sm:$0xff]
          %v1704 = vld [vmem:[#allocation2 + $0x18] sm:$0xff]
          %v1705 = vld [vmem:[#allocation2 + $0x20] sm:$0xff]
          %v1706 = vld [vmem:[#allocation2 + $0x28] sm:$0xff]
          %v1707 = vld [vmem:[#allocation2 + $0x30] sm:$0xff]
          %v1708 = vld [vmem:[#allocation2 + $0x38] sm:$0xff]
          %v1709 = vld [vmem:[#allocation3] sm:$0xff]
          %v1710 = vld [vmem:[#allocation3 + $0x8] sm:$0xff]
          %v1711 = vld [vmem:[#allocation3 + $0x10] sm:$0xff]
          %v1712 = vld [vmem:[#allocation3 + $0x18] sm:$0xff]
          %1717 = vrot.lane.b32.xlu0 %v1709, 77
          %v1718 = vpop.permute.xlu0 %1717
          %1719 = vrot.lane.b32.xlu0 %v1710, 77
          %v1720 = vpop.permute.xlu0 %1719
          %1721 = vrot.lane.b32.xlu0 %v1711, 77
          %v1722 = vpop.permute.xlu0 %1721
          %1723 = vrot.lane.b32.xlu0 %v1712, 77
          %v1724 = vpop.permute.xlu0 %1723
          %vm1725 = vcmask 629760
          %v1726 = vsel %vm1725, %v1718, %v1720
          %v1727 = vsel %vm1725, %v1722, %v1724
          %v1734 = vmul.f32 %v1701, %v1718
          %v1735 = vmul.f32 %v1702, %v1726
          %v1736 = vmul.f32 %v1703, %v1720
          %v1737 = vmul.f32 %v1705, %v1722
          %v1738 = vmul.f32 %v1706, %v1727
          %v1739 = vmul.f32 %v1707, %v1724
          %v1740 = vadd.f32 %v1677, %v1734
          %v1741 = vadd.f32 %v1677, %v1735
          %v1742 = vadd.f32 %v1677, %v1736
          %v1743 = vadd.f32 %v1682, %v1737
          %v1744 = vadd.f32 %v1682, %v1738
          %v1745 = vadd.f32 %v1682, %v1739
          %s1746 = scalar_lea.vmem [#allocation3], 32
          %v1747 = vld [vmem:[%s1746] sm:$0xff]
          %v1748 = vld [vmem:[%s1746 + $0x8] sm:$0xff]
          %v1749 = vld [vmem:[%s1746 + $0x10] sm:$0xff]
          %v1750 = vld [vmem:[%s1746 + $0x18] sm:$0xff]
          %1755 = vrot.lane.b32.xlu0 %v1747, 78
          %v1756 = vpop.permute.xlu0 %1755
          %1757 = vrot.lane.b32.xlu0 %v1748, 78
          %v1758 = vpop.permute.xlu0 %1757
          %1759 = vrot.lane.b32.xlu0 %v1749, 78
          %v1760 = vpop.permute.xlu0 %1759
          %1761 = vrot.lane.b32.xlu0 %v1750, 78
          %v1762 = vpop.permute.xlu0 %1761
          %vm1763 = vcmask 637952
          %v1764 = vsel %vm1763, %v1756, %v1758
          %v1765 = vsel %vm1763, %v1760, %v1762
          %v1772 = vmul.f32 %v1701, %v1756
          %v1773 = vmul.f32 %v1702, %v1764
          %v1774 = vmul.f32 %v1703, %v1758
          %v1775 = vmul.f32 %v1705, %v1760
          %v1776 = vmul.f32 %v1706, %v1765
          %v1777 = vmul.f32 %v1707, %v1762
          %1784 = vrot.lane.b32.xlu0 %v1772, 127
          %v1785 = vpop.permute.xlu0 %1784
          %1786 = vrot.lane.b32.xlu0 %v1773, 127
          %v1787 = vpop.permute.xlu0 %1786
          %1788 = vrot.lane.b32.xlu0 %v1774, 127
          %v1789 = vpop.permute.xlu0 %1788
          %1790 = vrot.lane.b32.xlu0 %v1775, 127
          %v1791 = vpop.permute.xlu0 %1790
          %1792 = vrot.lane.b32.xlu0 %v1776, 127
          %v1793 = vpop.permute.xlu0 %1792
          %1794 = vrot.lane.b32.xlu0 %v1777, 127
          %v1795 = vpop.permute.xlu0 %1794
          %vm1796 = vcmask 1039360
          %v1797 = vsel %vm1796, %v1785, %v1787
          %v1798 = vsel %vm1796, %v1787, %v1789
          %v1799 = vsel %vm1796, %v1791, %v1793
          %v1800 = vsel %vm1796, %v1793, %v1795
          %v1807 = vadd.f32 %v1740, %v1797
          %v1808 = vadd.f32 %v1741, %v1798
          %v1809 = vadd.f32 %v1742, %v1789
          %v1810 = vadd.f32 %v1743, %v1799
          %v1811 = vadd.f32 %v1744, %v1800
          %v1812 = vadd.f32 %v1745, %v1795
          %s1813 = scalar_lea.vmem [#allocation3], 64
          %v1814 = vld [vmem:[%s1813] sm:$0xff]
          %v1815 = vld [vmem:[%s1813 + $0x8] sm:$0xff]
          %v1816 = vld [vmem:[%s1813 + $0x10] sm:$0xff]
          %v1817 = vld [vmem:[%s1813 + $0x18] sm:$0xff]
          %1822 = vrot.lane.b32.xlu0 %v1814, 79
          %v1823 = vpop.permute.xlu0 %1822
          %1824 = vrot.lane.b32.xlu0 %v1815, 79
          %v1825 = vpop.permute.xlu0 %1824
          %1826 = vrot.lane.b32.xlu0 %v1816, 79
          %v1827 = vpop.permute.xlu0 %1826
          %1828 = vrot.lane.b32.xlu0 %v1817, 79
          %v1829 = vpop.permute.xlu0 %1828
          %vm1830 = vcmask 646144
          %v1831 = vsel %vm1830, %v1823, %v1825
          %v1832 = vsel %vm1830, %v1827, %v1829
          %v1839 = vmul.f32 %v1701, %v1823
          %v1840 = vmul.f32 %v1702, %v1831
          %v1841 = vmul.f32 %v1703, %v1825
          %v1842 = vmul.f32 %v1705, %v1827
          %v1843 = vmul.f32 %v1706, %v1832
          %v1844 = vmul.f32 %v1707, %v1829
          %1851 = vrot.lane.b32.xlu0 %v1839, 126
          %v1852 = vpop.permute.xlu0 %1851
          %1853 = vrot.lane.b32.xlu0 %v1840, 126
          %v1854 = vpop.permute.xlu0 %1853
          %1855 = vrot.lane.b32.xlu0 %v1841, 126
          %v1856 = vpop.permute.xlu0 %1855
          %1857 = vrot.lane.b32.xlu0 %v1842, 126
          %v1858 = vpop.permute.xlu0 %1857
          %1859 = vrot.lane.b32.xlu0 %v1843, 126
          %v1860 = vpop.permute.xlu0 %1859
          %1861 = vrot.lane.b32.xlu0 %v1844, 126
          %v1862 = vpop.permute.xlu0 %1861
          %vm1863 = vcmask 1031168
          %v1864 = vsel %vm1863, %v1852, %v1854
          %v1865 = vsel %vm1863, %v1854, %v1856
          %v1866 = vsel %vm1863, %v1858, %v1860
          %v1867 = vsel %vm1863, %v1860, %v1862
          %v1874 = vadd.f32 %v1807, %v1864
          %v1875 = vadd.f32 %v1808, %v1865
          %v1876 = vadd.f32 %v1809, %v1856
          %v1877 = vadd.f32 %v1810, %v1866
          %v1878 = vadd.f32 %v1811, %v1867
          %v1879 = vadd.f32 %v1812, %v1862
          %s1880 = scalar_lea.vmem [#allocation3], 96
          %v1881 = vld [vmem:[%s1880] sm:$0xff]
          %v1882 = vld [vmem:[%s1880 + $0x8] sm:$0xff]
          %v1883 = vld [vmem:[%s1880 + $0x10] sm:$0xff]
          %v1884 = vld [vmem:[%s1880 + $0x18] sm:$0xff]
          %1889 = vrot.lane.b32.xlu0 %v1881, 80
          %v1890 = vpop.permute.xlu0 %1889
          %1891 = vrot.lane.b32.xlu0 %v1882, 80
          %v1892 = vpop.permute.xlu0 %1891
          %1893 = vrot.lane.b32.xlu0 %v1883, 80
          %v1894 = vpop.permute.xlu0 %1893
          %1895 = vrot.lane.b32.xlu0 %v1884, 80
          %v1896 = vpop.permute.xlu0 %1895
          %vm1897 = vcmask 654336
          %v1898 = vsel %vm1897, %v1890, %v1892
          %v1899 = vsel %vm1897, %v1894, %v1896
          %v1906 = vmul.f32 %v1701, %v1890
          %v1907 = vmul.f32 %v1702, %v1898
          %v1908 = vmul.f32 %v1703, %v1892
          %v1909 = vmul.f32 %v1705, %v1894
          %v1910 = vmul.f32 %v1706, %v1899
          %v1911 = vmul.f32 %v1707, %v1896
          %1918 = vrot.lane.b32.xlu0 %v1906, 125
          %v1919 = vpop.permute.xlu0 %1918
          %1920 = vrot.lane.b32.xlu0 %v1907, 125
          %v1921 = vpop.permute.xlu0 %1920
          %1922 = vrot.lane.b32.xlu0 %v1908, 125
          %v1923 = vpop.permute.xlu0 %1922
          %1924 = vrot.lane.b32.xlu0 %v1909, 125
          %v1925 = vpop.permute.xlu0 %1924
          %1926 = vrot.lane.b32.xlu0 %v1910, 125
          %v1927 = vpop.permute.xlu0 %1926
          %1928 = vrot.lane.b32.xlu0 %v1911, 125
          %v1929 = vpop.permute.xlu0 %1928
          %vm1930 = vcmask 1022976
          %v1931 = vsel %vm1930, %v1919, %v1921
          %v1932 = vsel %vm1930, %v1921, %v1923
          %v1933 = vsel %vm1930, %v1925, %v1927
          %v1934 = vsel %vm1930, %v1927, %v1929
          %v1941 = vadd.f32 %v1874, %v1931
          %v1942 = vadd.f32 %v1875, %v1932
          %v1943 = vadd.f32 %v1876, %v1923
          %v1944 = vadd.f32 %v1877, %v1933
          %v1945 = vadd.f32 %v1878, %v1934
          %v1946 = vadd.f32 %v1879, %v1929
          %s1947 = scalar_lea.vmem [#allocation3], 128
          %v1948 = vld [vmem:[%s1947] sm:$0xff]
          %v1949 = vld [vmem:[%s1947 + $0x8] sm:$0xff]
          %v1950 = vld [vmem:[%s1947 + $0x10] sm:$0xff]
          %v1951 = vld [vmem:[%s1947 + $0x18] sm:$0xff]
          %1956 = vrot.lane.b32.xlu0 %v1948, 81
          %v1957 = vpop.permute.xlu0 %1956
          %1958 = vrot.lane.b32.xlu0 %v1949, 81
          %v1959 = vpop.permute.xlu0 %1958
          %1960 = vrot.lane.b32.xlu0 %v1950, 81
          %v1961 = vpop.permute.xlu0 %1960
          %1962 = vrot.lane.b32.xlu0 %v1951, 81
          %v1963 = vpop.permute.xlu0 %1962
          %vm1964 = vcmask 662528
          %v1965 = vsel %vm1964, %v1957, %v1959
          %v1966 = vsel %vm1964, %v1961, %v1963
          %v1973 = vmul.f32 %v1701, %v1957
          %v1974 = vmul.f32 %v1702, %v1965
          %v1975 = vmul.f32 %v1703, %v1959
          %v1976 = vmul.f32 %v1705, %v1961
          %v1977 = vmul.f32 %v1706, %v1966
          %v1978 = vmul.f32 %v1707, %v1963
          %1985 = vrot.lane.b32.xlu0 %v1973, 124
          %v1986 = vpop.permute.xlu0 %1985
          %1987 = vrot.lane.b32.xlu0 %v1974, 124
          %v1988 = vpop.permute.xlu0 %1987
          %1989 = vrot.lane.b32.xlu0 %v1975, 124
          %v1990 = vpop.permute.xlu0 %1989
          %1991 = vrot.lane.b32.xlu0 %v1976, 124
          %v1992 = vpop.permute.xlu0 %1991
          %1993 = vrot.lane.b32.xlu0 %v1977, 124
          %v1994 = vpop.permute.xlu0 %1993
          %1995 = vrot.lane.b32.xlu0 %v1978, 124
          %v1996 = vpop.permute.xlu0 %1995
          %vm1997 = vcmask 1014784
          %v1998 = vsel %vm1997, %v1986, %v1988
          %v1999 = vsel %vm1997, %v1988, %v1990
          %v2000 = vsel %vm1997, %v1992, %v1994
          %v2001 = vsel %vm1997, %v1994, %v1996
          %v2008 = vadd.f32 %v1941, %v1998
          %v2009 = vadd.f32 %v1942, %v1999
          %v2010 = vadd.f32 %v1943, %v1990
          %v2011 = vadd.f32 %v1944, %v2000
          %v2012 = vadd.f32 %v1945, %v2001
          %v2013 = vadd.f32 %v1946, %v1996
          %s2014 = scalar_lea.vmem [#allocation3], 160
          %v2015 = vld [vmem:[%s2014] sm:$0xff]
          %v2016 = vld [vmem:[%s2014 + $0x8] sm:$0xff]
          %v2017 = vld [vmem:[%s2014 + $0x10] sm:$0xff]
          %v2018 = vld [vmem:[%s2014 + $0x18] sm:$0xff]
          %2023 = vrot.lane.b32.xlu0 %v2015, 82
          %v2024 = vpop.permute.xlu0 %2023
          %2025 = vrot.lane.b32.xlu0 %v2016, 82
          %v2026 = vpop.permute.xlu0 %2025
          %2027 = vrot.lane.b32.xlu0 %v2017, 82
          %v2028 = vpop.permute.xlu0 %2027
          %2029 = vrot.lane.b32.xlu0 %v2018, 82
          %v2030 = vpop.permute.xlu0 %2029
          %vm2031 = vcmask 670720
          %v2032 = vsel %vm2031, %v2024, %v2026
          %v2033 = vsel %vm2031, %v2028, %v2030
          %v2040 = vmul.f32 %v1701, %v2024
          %v2041 = vmul.f32 %v1702, %v2032
          %v2042 = vmul.f32 %v1703, %v2026
          %v2043 = vmul.f32 %v1705, %v2028
          %v2044 = vmul.f32 %v1706, %v2033
          %v2045 = vmul.f32 %v1707, %v2030
          %2052 = vrot.lane.b32.xlu0 %v2040, 123
          %v2053 = vpop.permute.xlu0 %2052
          %2054 = vrot.lane.b32.xlu0 %v2041, 123
          %v2055 = vpop.permute.xlu0 %2054
          %2056 = vrot.lane.b32.xlu0 %v2042, 123
          %v2057 = vpop.permute.xlu0 %2056
          %2058 = vrot.lane.b32.xlu0 %v2043, 123
          %v2059 = vpop.permute.xlu0 %2058
          %2060 = vrot.lane.b32.xlu0 %v2044, 123
          %v2061 = vpop.permute.xlu0 %2060
          %2062 = vrot.lane.b32.xlu0 %v2045, 123
          %v2063 = vpop.permute.xlu0 %2062
          %vm2064 = vcmask 1006592
          %v2065 = vsel %vm2064, %v2053, %v2055
          %v2066 = vsel %vm2064, %v2055, %v2057
          %v2067 = vsel %vm2064, %v2059, %v2061
          %v2068 = vsel %vm2064, %v2061, %v2063
          %v2075 = vadd.f32 %v2008, %v2065
          %v2076 = vadd.f32 %v2009, %v2066
          %v2077 = vadd.f32 %v2010, %v2057
          %v2078 = vadd.f32 %v2011, %v2067
          %v2079 = vadd.f32 %v2012, %v2068
          %v2080 = vadd.f32 %v2013, %v2063
          %s2081 = scalar_lea.vmem [#allocation3], 192
          %v2082 = vld [vmem:[%s2081] sm:$0xff]
          %v2083 = vld [vmem:[%s2081 + $0x8] sm:$0xff]
          %v2084 = vld [vmem:[%s2081 + $0x10] sm:$0xff]
          %v2085 = vld [vmem:[%s2081 + $0x18] sm:$0xff]
          %2090 = vrot.lane.b32.xlu0 %v2082, 83
          %v2091 = vpop.permute.xlu0 %2090
          %2092 = vrot.lane.b32.xlu0 %v2083, 83
          %v2093 = vpop.permute.xlu0 %2092
          %2094 = vrot.lane.b32.xlu0 %v2084, 83
          %v2095 = vpop.permute.xlu0 %2094
          %2096 = vrot.lane.b32.xlu0 %v2085, 83
          %v2097 = vpop.permute.xlu0 %2096
          %vm2098 = vcmask 678912
          %v2099 = vsel %vm2098, %v2091, %v2093
          %v2100 = vsel %vm2098, %v2095, %v2097
          %v2107 = vmul.f32 %v1701, %v2091
          %v2108 = vmul.f32 %v1702, %v2099
          %v2109 = vmul.f32 %v1703, %v2093
          %v2110 = vmul.f32 %v1705, %v2095
          %v2111 = vmul.f32 %v1706, %v2100
          %v2112 = vmul.f32 %v1707, %v2097
          %2119 = vrot.lane.b32.xlu0 %v2107, 122
          %v2120 = vpop.permute.xlu0 %2119
          %2121 = vrot.lane.b32.xlu0 %v2108, 122
          %v2122 = vpop.permute.xlu0 %2121
          %2123 = vrot.lane.b32.xlu0 %v2109, 122
          %v2124 = vpop.permute.xlu0 %2123
          %2125 = vrot.lane.b32.xlu0 %v2110, 122
          %v2126 = vpop.permute.xlu0 %2125
          %2127 = vrot.lane.b32.xlu0 %v2111, 122
          %v2128 = vpop.permute.xlu0 %2127
          %2129 = vrot.lane.b32.xlu0 %v2112, 122
          %v2130 = vpop.permute.xlu0 %2129
          %vm2131 = vcmask 998400
          %v2132 = vsel %vm2131, %v2120, %v2122
          %v2133 = vsel %vm2131, %v2122, %v2124
          %v2134 = vsel %vm2131, %v2126, %v2128
          %v2135 = vsel %vm2131, %v2128, %v2130
          %v2142 = vadd.f32 %v2075, %v2132
          %v2143 = vadd.f32 %v2076, %v2133
          %v2144 = vadd.f32 %v2077, %v2124
          %v2145 = vadd.f32 %v2078, %v2134
          %v2146 = vadd.f32 %v2079, %v2135
          %v2147 = vadd.f32 %v2080, %v2130
          %s2148 = scalar_lea.vmem [#allocation3], 224
          %v2149 = vld [vmem:[%s2148] sm:$0xff]
          %v2150 = vld [vmem:[%s2148 + $0x8] sm:$0xff]
          %v2151 = vld [vmem:[%s2148 + $0x10] sm:$0xff]
          %v2152 = vld [vmem:[%s2148 + $0x18] sm:$0xff]
          %2157 = vrot.lane.b32.xlu0 %v2149, 93
          %v2158 = vpop.permute.xlu0 %2157
          %2159 = vrot.lane.b32.xlu0 %v2150, 93
          %v2160 = vpop.permute.xlu0 %2159
          %2161 = vrot.lane.b32.xlu0 %v2151, 93
          %v2162 = vpop.permute.xlu0 %2161
          %2163 = vrot.lane.b32.xlu0 %v2152, 93
          %v2164 = vpop.permute.xlu0 %2163
          %vm2165 = vcmask 760832
          %v2166 = vsel %vm2165, %v2158, %v2160
          %v2167 = vsel %vm2165, %v2162, %v2164
          %v2174 = vmul.f32 %v1701, %v2158
          %v2175 = vmul.f32 %v1702, %v2166
          %v2176 = vmul.f32 %v1703, %v2160
          %v2177 = vmul.f32 %v1705, %v2162
          %v2178 = vmul.f32 %v1706, %v2167
          %v2179 = vmul.f32 %v1707, %v2164
          %2186 = vrot.lane.b32.xlu0 %v2174, 112
          %v2187 = vpop.permute.xlu0 %2186
          %2188 = vrot.lane.b32.xlu0 %v2175, 112
          %v2189 = vpop.permute.xlu0 %2188
          %2190 = vrot.lane.b32.xlu0 %v2176, 112
          %v2191 = vpop.permute.xlu0 %2190
          %2192 = vrot.lane.b32.xlu0 %v2177, 112
          %v2193 = vpop.permute.xlu0 %2192
          %2194 = vrot.lane.b32.xlu0 %v2178, 112
          %v2195 = vpop.permute.xlu0 %2194
          %2196 = vrot.lane.b32.xlu0 %v2179, 112
          %v2197 = vpop.permute.xlu0 %2196
          %vm2198 = vcmask 916480
          %v2199 = vsel %vm2198, %v2187, %v2189
          %v2200 = vsel %vm2198, %v2189, %v2191
          %v2201 = vsel %vm2198, %v2193, %v2195
          %v2202 = vsel %vm2198, %v2195, %v2197
          %v2209 = vadd.f32 %v2142, %v2199
          %v2210 = vadd.f32 %v2143, %v2200
          %v2211 = vadd.f32 %v2144, %v2191
          %v2212 = vadd.f32 %v2145, %v2201
          %v2213 = vadd.f32 %v2146, %v2202
          %v2214 = vadd.f32 %v2147, %v2197
          %s2215 = scalar_lea.vmem [#allocation3], 256
          %v2216 = vld [vmem:[%s2215] sm:$0xff]
          %v2217 = vld [vmem:[%s2215 + $0x8] sm:$0xff]
          %v2218 = vld [vmem:[%s2215 + $0x10] sm:$0xff]
          %v2219 = vld [vmem:[%s2215 + $0x18] sm:$0xff]
          %2224 = vrot.lane.b32.xlu0 %v2216, 94
          %v2225 = vpop.permute.xlu0 %2224
          %2226 = vrot.lane.b32.xlu0 %v2217, 94
          %v2227 = vpop.permute.xlu0 %2226
          %2228 = vrot.lane.b32.xlu0 %v2218, 94
          %v2229 = vpop.permute.xlu0 %2228
          %2230 = vrot.lane.b32.xlu0 %v2219, 94
          %v2231 = vpop.permute.xlu0 %2230
          %vm2232 = vcmask 769024
          %v2233 = vsel %vm2232, %v2225, %v2227
          %v2234 = vsel %vm2232, %v2229, %v2231
          %v2241 = vmul.f32 %v1701, %v2225
          %v2242 = vmul.f32 %v1702, %v2233
          %v2243 = vmul.f32 %v1703, %v2227
          %v2244 = vmul.f32 %v1705, %v2229
          %v2245 = vmul.f32 %v1706, %v2234
          %v2246 = vmul.f32 %v1707, %v2231
          %2253 = vrot.lane.b32.xlu0 %v2241, 111
          %v2254 = vpop.permute.xlu0 %2253
          %2255 = vrot.lane.b32.xlu0 %v2242, 111
          %v2256 = vpop.permute.xlu0 %2255
          %2257 = vrot.lane.b32.xlu0 %v2243, 111
          %v2258 = vpop.permute.xlu0 %2257
          %2259 = vrot.lane.b32.xlu0 %v2244, 111
          %v2260 = vpop.permute.xlu0 %2259
          %2261 = vrot.lane.b32.xlu0 %v2245, 111
          %v2262 = vpop.permute.xlu0 %2261
          %2263 = vrot.lane.b32.xlu0 %v2246, 111
          %v2264 = vpop.permute.xlu0 %2263
          %vm2265 = vcmask 908288
          %v2266 = vsel %vm2265, %v2254, %v2256
          %v2267 = vsel %vm2265, %v2256, %v2258
          %v2268 = vsel %vm2265, %v2260, %v2262
          %v2269 = vsel %vm2265, %v2262, %v2264
          %v2276 = vadd.f32 %v2209, %v2266
          %v2277 = vadd.f32 %v2210, %v2267
          %v2278 = vadd.f32 %v2211, %v2258
          %v2279 = vadd.f32 %v2212, %v2268
          %v2280 = vadd.f32 %v2213, %v2269
          %v2281 = vadd.f32 %v2214, %v2264
          %s2282 = scalar_lea.vmem [#allocation3], 288
          %v2283 = vld [vmem:[%s2282] sm:$0xff]
          %v2284 = vld [vmem:[%s2282 + $0x8] sm:$0xff]
          %v2285 = vld [vmem:[%s2282 + $0x10] sm:$0xff]
          %v2286 = vld [vmem:[%s2282 + $0x18] sm:$0xff]
          %2291 = vrot.lane.b32.xlu0 %v2283, 95
          %v2292 = vpop.permute.xlu0 %2291
          %2293 = vrot.lane.b32.xlu0 %v2284, 95
          %v2294 = vpop.permute.xlu0 %2293
          %2295 = vrot.lane.b32.xlu0 %v2285, 95
          %v2296 = vpop.permute.xlu0 %2295
          %2297 = vrot.lane.b32.xlu0 %v2286, 95
          %v2298 = vpop.permute.xlu0 %2297
          %vm2299 = vcmask 777216
          %v2300 = vsel %vm2299, %v2292, %v2294
          %v2301 = vsel %vm2299, %v2296, %v2298
          %v2308 = vmul.f32 %v1701, %v2292
          %v2309 = vmul.f32 %v1702, %v2300
          %v2310 = vmul.f32 %v1703, %v2294
          %v2311 = vmul.f32 %v1705, %v2296
          %v2312 = vmul.f32 %v1706, %v2301
          %v2313 = vmul.f32 %v1707, %v2298
          %2320 = vrot.lane.b32.xlu0 %v2308, 110
          %v2321 = vpop.permute.xlu0 %2320
          %2322 = vrot.lane.b32.xlu0 %v2309, 110
          %v2323 = vpop.permute.xlu0 %2322
          %2324 = vrot.lane.b32.xlu0 %v2310, 110
          %v2325 = vpop.permute.xlu0 %2324
          %2326 = vrot.lane.b32.xlu0 %v2311, 110
          %v2327 = vpop.permute.xlu0 %2326
          %2328 = vrot.lane.b32.xlu0 %v2312, 110
          %v2329 = vpop.permute.xlu0 %2328
          %2330 = vrot.lane.b32.xlu0 %v2313, 110
          %v2331 = vpop.permute.xlu0 %2330
          %vm2332 = vcmask 900096
          %v2333 = vsel %vm2332, %v2321, %v2323
          %v2334 = vsel %vm2332, %v2323, %v2325
          %v2335 = vsel %vm2332, %v2327, %v2329
          %v2336 = vsel %vm2332, %v2329, %v2331
          %v2343 = vadd.f32 %v2276, %v2333
          %v2344 = vadd.f32 %v2277, %v2334
          %v2345 = vadd.f32 %v2278, %v2325
          %v2346 = vadd.f32 %v2279, %v2335
          %v2347 = vadd.f32 %v2280, %v2336
          %v2348 = vadd.f32 %v2281, %v2331
          %s2349 = scalar_lea.vmem [#allocation3], 320
          %v2350 = vld [vmem:[%s2349] sm:$0xff]
          %v2351 = vld [vmem:[%s2349 + $0x8] sm:$0xff]
          %v2352 = vld [vmem:[%s2349 + $0x10] sm:$0xff]
          %v2353 = vld [vmem:[%s2349 + $0x18] sm:$0xff]
          %2358 = vrot.lane.b32.xlu0 %v2350, 96
          %v2359 = vpop.permute.xlu0 %2358
          %2360 = vrot.lane.b32.xlu0 %v2351, 96
          %v2361 = vpop.permute.xlu0 %2360
          %2362 = vrot.lane.b32.xlu0 %v2352, 96
          %v2363 = vpop.permute.xlu0 %2362
          %2364 = vrot.lane.b32.xlu0 %v2353, 96
          %v2365 = vpop.permute.xlu0 %2364
          %vm2366 = vcmask 785408
          %v2367 = vsel %vm2366, %v2359, %v2361
          %v2368 = vsel %vm2366, %v2363, %v2365
          %v2375 = vmul.f32 %v1701, %v2359
          %v2376 = vmul.f32 %v1702, %v2367
          %v2377 = vmul.f32 %v1703, %v2361
          %v2378 = vmul.f32 %v1705, %v2363
          %v2379 = vmul.f32 %v1706, %v2368
          %v2380 = vmul.f32 %v1707, %v2365
          %2387 = vrot.lane.b32.xlu0 %v2375, 109
          %v2388 = vpop.permute.xlu0 %2387
          %2389 = vrot.lane.b32.xlu0 %v2376, 109
          %v2390 = vpop.permute.xlu0 %2389
          %2391 = vrot.lane.b32.xlu0 %v2377, 109
          %v2392 = vpop.permute.xlu0 %2391
          %2393 = vrot.lane.b32.xlu0 %v2378, 109
          %v2394 = vpop.permute.xlu0 %2393
          %2395 = vrot.lane.b32.xlu0 %v2379, 109
          %v2396 = vpop.permute.xlu0 %2395
          %2397 = vrot.lane.b32.xlu0 %v2380, 109
          %v2398 = vpop.permute.xlu0 %2397
          %vm2399 = vcmask 891904
          %v2400 = vsel %vm2399, %v2388, %v2390
          %v2401 = vsel %vm2399, %v2390, %v2392
          %v2402 = vsel %vm2399, %v2394, %v2396
          %v2403 = vsel %vm2399, %v2396, %v2398
          %v2410 = vadd.f32 %v2343, %v2400
          %v2411 = vadd.f32 %v2344, %v2401
          %v2412 = vadd.f32 %v2345, %v2392
          %v2413 = vadd.f32 %v2346, %v2402
          %v2414 = vadd.f32 %v2347, %v2403
          %v2415 = vadd.f32 %v2348, %v2398
          %s2416 = scalar_lea.vmem [#allocation3], 352
          %v2417 = vld [vmem:[%s2416] sm:$0xff]
          %v2418 = vld [vmem:[%s2416 + $0x8] sm:$0xff]
          %v2419 = vld [vmem:[%s2416 + $0x10] sm:$0xff]
          %v2420 = vld [vmem:[%s2416 + $0x18] sm:$0xff]
          %2425 = vrot.lane.b32.xlu0 %v2417, 97
          %v2426 = vpop.permute.xlu0 %2425
          %2427 = vrot.lane.b32.xlu0 %v2418, 97
          %v2428 = vpop.permute.xlu0 %2427
          %2429 = vrot.lane.b32.xlu0 %v2419, 97
          %v2430 = vpop.permute.xlu0 %2429
          %2431 = vrot.lane.b32.xlu0 %v2420, 97
          %v2432 = vpop.permute.xlu0 %2431
          %vm2433 = vcmask 793600
          %v2434 = vsel %vm2433, %v2426, %v2428
          %v2435 = vsel %vm2433, %v2430, %v2432
          %v2442 = vmul.f32 %v1701, %v2426
          %v2443 = vmul.f32 %v1702, %v2434
          %v2444 = vmul.f32 %v1703, %v2428
          %v2445 = vmul.f32 %v1705, %v2430
          %v2446 = vmul.f32 %v1706, %v2435
          %v2447 = vmul.f32 %v1707, %v2432
          %2454 = vrot.lane.b32.xlu0 %v2442, 108
          %v2455 = vpop.permute.xlu0 %2454
          %2456 = vrot.lane.b32.xlu0 %v2443, 108
          %v2457 = vpop.permute.xlu0 %2456
          %2458 = vrot.lane.b32.xlu0 %v2444, 108
          %v2459 = vpop.permute.xlu0 %2458
          %2460 = vrot.lane.b32.xlu0 %v2445, 108
          %v2461 = vpop.permute.xlu0 %2460
          %2462 = vrot.lane.b32.xlu0 %v2446, 108
          %v2463 = vpop.permute.xlu0 %2462
          %2464 = vrot.lane.b32.xlu0 %v2447, 108
          %v2465 = vpop.permute.xlu0 %2464
          %vm2466 = vcmask 883712
          %v2467 = vsel %vm2466, %v2455, %v2457
          %v2468 = vsel %vm2466, %v2457, %v2459
          %v2469 = vsel %vm2466, %v2461, %v2463
          %v2470 = vsel %vm2466, %v2463, %v2465
          %v2477 = vadd.f32 %v2410, %v2467
          %v2478 = vadd.f32 %v2411, %v2468
          %v2479 = vadd.f32 %v2412, %v2459
          %v2480 = vadd.f32 %v2413, %v2469
          %v2481 = vadd.f32 %v2414, %v2470
          %v2482 = vadd.f32 %v2415, %v2465
          %s2483 = scalar_lea.vmem [#allocation3], 384
          %v2484 = vld [vmem:[%s2483] sm:$0xff]
          %v2485 = vld [vmem:[%s2483 + $0x8] sm:$0xff]
          %v2486 = vld [vmem:[%s2483 + $0x10] sm:$0xff]
          %v2487 = vld [vmem:[%s2483 + $0x18] sm:$0xff]
          %2492 = vrot.lane.b32.xlu0 %v2484, 98
          %v2493 = vpop.permute.xlu0 %2492
          %2494 = vrot.lane.b32.xlu0 %v2485, 98
          %v2495 = vpop.permute.xlu0 %2494
          %2496 = vrot.lane.b32.xlu0 %v2486, 98
          %v2497 = vpop.permute.xlu0 %2496
          %2498 = vrot.lane.b32.xlu0 %v2487, 98
          %v2499 = vpop.permute.xlu0 %2498
          %vm2500 = vcmask 801792
          %v2501 = vsel %vm2500, %v2493, %v2495
          %v2502 = vsel %vm2500, %v2497, %v2499
          %v2509 = vmul.f32 %v1701, %v2493
          %v2510 = vmul.f32 %v1702, %v2501
          %v2511 = vmul.f32 %v1703, %v2495
          %v2512 = vmul.f32 %v1705, %v2497
          %v2513 = vmul.f32 %v1706, %v2502
          %v2514 = vmul.f32 %v1707, %v2499
          %2521 = vrot.lane.b32.xlu0 %v2509, 107
          %v2522 = vpop.permute.xlu0 %2521
          %2523 = vrot.lane.b32.xlu0 %v2510, 107
          %v2524 = vpop.permute.xlu0 %2523
          %2525 = vrot.lane.b32.xlu0 %v2511, 107
          %v2526 = vpop.permute.xlu0 %2525
          %2527 = vrot.lane.b32.xlu0 %v2512, 107
          %v2528 = vpop.permute.xlu0 %2527
          %2529 = vrot.lane.b32.xlu0 %v2513, 107
          %v2530 = vpop.permute.xlu0 %2529
          %2531 = vrot.lane.b32.xlu0 %v2514, 107
          %v2532 = vpop.permute.xlu0 %2531
          %vm2533 = vcmask 875520
          %v2534 = vsel %vm2533, %v2522, %v2524
          %v2535 = vsel %vm2533, %v2524, %v2526
          %v2536 = vsel %vm2533, %v2528, %v2530
          %v2537 = vsel %vm2533, %v2530, %v2532
          %v2544 = vadd.f32 %v2477, %v2534
          %v2545 = vadd.f32 %v2478, %v2535
          %v2546 = vadd.f32 %v2479, %v2526
          %v2547 = vadd.f32 %v2480, %v2536
          %v2548 = vadd.f32 %v2481, %v2537
          %v2549 = vadd.f32 %v2482, %v2532
          %s2550 = scalar_lea.vmem [#allocation3], 416
          %v2551 = vld [vmem:[%s2550] sm:$0xff]
          %v2552 = vld [vmem:[%s2550 + $0x8] sm:$0xff]
          %v2553 = vld [vmem:[%s2550 + $0x10] sm:$0xff]
          %v2554 = vld [vmem:[%s2550 + $0x18] sm:$0xff]
          %2559 = vrot.lane.b32.xlu0 %v2551, 99
          %v2560 = vpop.permute.xlu0 %2559
          %2561 = vrot.lane.b32.xlu0 %v2552, 99
          %v2562 = vpop.permute.xlu0 %2561
          %2563 = vrot.lane.b32.xlu0 %v2553, 99
          %v2564 = vpop.permute.xlu0 %2563
          %2565 = vrot.lane.b32.xlu0 %v2554, 99
          %v2566 = vpop.permute.xlu0 %2565
          %vm2567 = vcmask 809984
          %v2568 = vsel %vm2567, %v2560, %v2562
          %v2569 = vsel %vm2567, %v2564, %v2566
          %v2576 = vmul.f32 %v1701, %v2560
          %v2577 = vmul.f32 %v1702, %v2568
          %v2578 = vmul.f32 %v1703, %v2562
          %v2579 = vmul.f32 %v1705, %v2564
          %v2580 = vmul.f32 %v1706, %v2569
          %v2581 = vmul.f32 %v1707, %v2566
          %2588 = vrot.lane.b32.xlu0 %v2576, 106
          %v2589 = vpop.permute.xlu0 %2588
          %2590 = vrot.lane.b32.xlu0 %v2577, 106
          %v2591 = vpop.permute.xlu0 %2590
          %2592 = vrot.lane.b32.xlu0 %v2578, 106
          %v2593 = vpop.permute.xlu0 %2592
          %2594 = vrot.lane.b32.xlu0 %v2579, 106
          %v2595 = vpop.permute.xlu0 %2594
          %2596 = vrot.lane.b32.xlu0 %v2580, 106
          %v2597 = vpop.permute.xlu0 %2596
          %2598 = vrot.lane.b32.xlu0 %v2581, 106
          %v2599 = vpop.permute.xlu0 %2598
          %vm2600 = vcmask 867328
          %v2601 = vsel %vm2600, %v2589, %v2591
          %v2602 = vsel %vm2600, %v2591, %v2593
          %v2603 = vsel %vm2600, %v2595, %v2597
          %v2604 = vsel %vm2600, %v2597, %v2599
          %v2611 = vadd.f32 %v2544, %v2601
          %v2612 = vadd.f32 %v2545, %v2602
          %v2613 = vadd.f32 %v2546, %v2593
          %v2614 = vadd.f32 %v2547, %v2603
          %v2615 = vadd.f32 %v2548, %v2604
          %v2616 = vadd.f32 %v2549, %v2599
          %s2617 = scalar_lea.vmem [#allocation3], 448
          %v2618 = vld [vmem:[%s2617] sm:$0xff]
          %v2619 = vld [vmem:[%s2617 + $0x8] sm:$0xff]
          %v2620 = vld [vmem:[%s2617 + $0x10] sm:$0xff]
          %v2621 = vld [vmem:[%s2617 + $0x18] sm:$0xff]
          %2626 = vrot.lane.b32.xlu0 %v2618, 109
          %v2627 = vpop.permute.xlu0 %2626
          %2628 = vrot.lane.b32.xlu0 %v2619, 109
          %v2629 = vpop.permute.xlu0 %2628
          %2630 = vrot.lane.b32.xlu0 %v2620, 109
          %v2631 = vpop.permute.xlu0 %2630
          %2632 = vrot.lane.b32.xlu0 %v2621, 109
          %v2633 = vpop.permute.xlu0 %2632
          %v2634 = vsel %vm2399, %v2627, %v2629
          %v2635 = vsel %vm2399, %v2631, %v2633
          %v2642 = vmul.f32 %v1701, %v2627
          %v2643 = vmul.f32 %v1702, %v2634
          %v2644 = vmul.f32 %v1703, %v2629
          %v2645 = vmul.f32 %v1705, %v2631
          %v2646 = vmul.f32 %v1706, %v2635
          %v2647 = vmul.f32 %v1707, %v2633
          %2654 = vrot.lane.b32.xlu0 %v2642, 96
          %v2655 = vpop.permute.xlu0 %2654
          %2656 = vrot.lane.b32.xlu0 %v2643, 96
          %v2657 = vpop.permute.xlu0 %2656
          %2658 = vrot.lane.b32.xlu0 %v2644, 96
          %v2659 = vpop.permute.xlu0 %2658
          %2660 = vrot.lane.b32.xlu0 %v2645, 96
          %v2661 = vpop.permute.xlu0 %2660
          %2662 = vrot.lane.b32.xlu0 %v2646, 96
          %v2663 = vpop.permute.xlu0 %2662
          %2664 = vrot.lane.b32.xlu0 %v2647, 96
          %v2665 = vpop.permute.xlu0 %2664
          %v2666 = vsel %vm2366, %v2655, %v2657
          %v2667 = vsel %vm2366, %v2657, %v2659
          %v2668 = vsel %vm2366, %v2661, %v2663
          %v2669 = vsel %vm2366, %v2663, %v2665
          %v2676 = vadd.f32 %v2611, %v2666
          %v2677 = vadd.f32 %v2612, %v2667
          %v2678 = vadd.f32 %v2613, %v2659
          %v2679 = vadd.f32 %v2614, %v2668
          %v2680 = vadd.f32 %v2615, %v2669
          %v2681 = vadd.f32 %v2616, %v2665
          %s2682 = scalar_lea.vmem [#allocation3], 480
          %v2683 = vld [vmem:[%s2682] sm:$0xff]
          %v2684 = vld [vmem:[%s2682 + $0x8] sm:$0xff]
          %v2685 = vld [vmem:[%s2682 + $0x10] sm:$0xff]
          %v2686 = vld [vmem:[%s2682 + $0x18] sm:$0xff]
          %2691 = vrot.lane.b32.xlu0 %v2683, 110
          %v2692 = vpop.permute.xlu0 %2691
          %2693 = vrot.lane.b32.xlu0 %v2684, 110
          %v2694 = vpop.permute.xlu0 %2693
          %2695 = vrot.lane.b32.xlu0 %v2685, 110
          %v2696 = vpop.permute.xlu0 %2695
          %2697 = vrot.lane.b32.xlu0 %v2686, 110
          %v2698 = vpop.permute.xlu0 %2697
          %v2699 = vsel %vm2332, %v2692, %v2694
          %v2700 = vsel %vm2332, %v2696, %v2698
          %v2707 = vmul.f32 %v1701, %v2692
          %v2708 = vmul.f32 %v1702, %v2699
          %v2709 = vmul.f32 %v1703, %v2694
          %v2710 = vmul.f32 %v1705, %v2696
          %v2711 = vmul.f32 %v1706, %v2700
          %v2712 = vmul.f32 %v1707, %v2698
          %2719 = vrot.lane.b32.xlu0 %v2707, 95
          %v2720 = vpop.permute.xlu0 %2719
          %2721 = vrot.lane.b32.xlu0 %v2708, 95
          %v2722 = vpop.permute.xlu0 %2721
          %2723 = vrot.lane.b32.xlu0 %v2709, 95
          %v2724 = vpop.permute.xlu0 %2723
          %2725 = vrot.lane.b32.xlu0 %v2710, 95
          %v2726 = vpop.permute.xlu0 %2725
          %2727 = vrot.lane.b32.xlu0 %v2711, 95
          %v2728 = vpop.permute.xlu0 %2727
          %2729 = vrot.lane.b32.xlu0 %v2712, 95
          %v2730 = vpop.permute.xlu0 %2729
          %v2731 = vsel %vm2299, %v2720, %v2722
          %v2732 = vsel %vm2299, %v2722, %v2724
          %v2733 = vsel %vm2299, %v2726, %v2728
          %v2734 = vsel %vm2299, %v2728, %v2730
          %v2741 = vadd.f32 %v2676, %v2731
          %v2742 = vadd.f32 %v2677, %v2732
          %v2743 = vadd.f32 %v2678, %v2724
          %v2744 = vadd.f32 %v2679, %v2733
          %v2745 = vadd.f32 %v2680, %v2734
          %v2746 = vadd.f32 %v2681, %v2730
          %s2747 = scalar_lea.vmem [#allocation3], 512
          %v2748 = vld [vmem:[%s2747] sm:$0xff]
          %v2749 = vld [vmem:[%s2747 + $0x8] sm:$0xff]
          %v2750 = vld [vmem:[%s2747 + $0x10] sm:$0xff]
          %v2751 = vld [vmem:[%s2747 + $0x18] sm:$0xff]
          %2756 = vrot.lane.b32.xlu0 %v2748, 111
          %v2757 = vpop.permute.xlu0 %2756
          %2758 = vrot.lane.b32.xlu0 %v2749, 111
          %v2759 = vpop.permute.xlu0 %2758
          %2760 = vrot.lane.b32.xlu0 %v2750, 111
          %v2761 = vpop.permute.xlu0 %2760
          %2762 = vrot.lane.b32.xlu0 %v2751, 111
          %v2763 = vpop.permute.xlu0 %2762
          %v2764 = vsel %vm2265, %v2757, %v2759
          %v2765 = vsel %vm2265, %v2761, %v2763
          %v2772 = vmul.f32 %v1701, %v2757
          %v2773 = vmul.f32 %v1702, %v2764
          %v2774 = vmul.f32 %v1703, %v2759
          %v2775 = vmul.f32 %v1705, %v2761
          %v2776 = vmul.f32 %v1706, %v2765
          %v2777 = vmul.f32 %v1707, %v2763
          %2784 = vrot.lane.b32.xlu0 %v2772, 94
          %v2785 = vpop.permute.xlu0 %2784
          %2786 = vrot.lane.b32.xlu0 %v2773, 94
          %v2787 = vpop.permute.xlu0 %2786
          %2788 = vrot.lane.b32.xlu0 %v2774, 94
          %v2789 = vpop.permute.xlu0 %2788
          %2790 = vrot.lane.b32.xlu0 %v2775, 94
          %v2791 = vpop.permute.xlu0 %2790
          %2792 = vrot.lane.b32.xlu0 %v2776, 94
          %v2793 = vpop.permute.xlu0 %2792
          %2794 = vrot.lane.b32.xlu0 %v2777, 94
          %v2795 = vpop.permute.xlu0 %2794
          %v2796 = vsel %vm2232, %v2785, %v2787
          %v2797 = vsel %vm2232, %v2787, %v2789
          %v2798 = vsel %vm2232, %v2791, %v2793
          %v2799 = vsel %vm2232, %v2793, %v2795
          %v2806 = vadd.f32 %v2741, %v2796
          %v2807 = vadd.f32 %v2742, %v2797
          %v2808 = vadd.f32 %v2743, %v2789
          %v2809 = vadd.f32 %v2744, %v2798
          %v2810 = vadd.f32 %v2745, %v2799
          %v2811 = vadd.f32 %v2746, %v2795
          %s2812 = scalar_lea.vmem [#allocation3], 544
          %v2813 = vld [vmem:[%s2812] sm:$0xff]
          %v2814 = vld [vmem:[%s2812 + $0x8] sm:$0xff]
          %v2815 = vld [vmem:[%s2812 + $0x10] sm:$0xff]
          %v2816 = vld [vmem:[%s2812 + $0x18] sm:$0xff]
          %2821 = vrot.lane.b32.xlu0 %v2813, 112
          %v2822 = vpop.permute.xlu0 %2821
          %2823 = vrot.lane.b32.xlu0 %v2814, 112
          %v2824 = vpop.permute.xlu0 %2823
          %2825 = vrot.lane.b32.xlu0 %v2815, 112
          %v2826 = vpop.permute.xlu0 %2825
          %2827 = vrot.lane.b32.xlu0 %v2816, 112
          %v2828 = vpop.permute.xlu0 %2827
          %v2829 = vsel %vm2198, %v2822, %v2824
          %v2830 = vsel %vm2198, %v2826, %v2828
          %v2837 = vmul.f32 %v1701, %v2822
          %v2838 = vmul.f32 %v1702, %v2829
          %v2839 = vmul.f32 %v1703, %v2824
          %v2840 = vmul.f32 %v1705, %v2826
          %v2841 = vmul.f32 %v1706, %v2830
          %v2842 = vmul.f32 %v1707, %v2828
          %2849 = vrot.lane.b32.xlu0 %v2837, 93
          %v2850 = vpop.permute.xlu0 %2849
          %2851 = vrot.lane.b32.xlu0 %v2838, 93
          %v2852 = vpop.permute.xlu0 %2851
          %2853 = vrot.lane.b32.xlu0 %v2839, 93
          %v2854 = vpop.permute.xlu0 %2853
          %2855 = vrot.lane.b32.xlu0 %v2840, 93
          %v2856 = vpop.permute.xlu0 %2855
          %2857 = vrot.lane.b32.xlu0 %v2841, 93
          %v2858 = vpop.permute.xlu0 %2857
          %2859 = vrot.lane.b32.xlu0 %v2842, 93
          %v2860 = vpop.permute.xlu0 %2859
          %v2861 = vsel %vm2165, %v2850, %v2852
          %v2862 = vsel %vm2165, %v2852, %v2854
          %v2863 = vsel %vm2165, %v2856, %v2858
          %v2864 = vsel %vm2165, %v2858, %v2860
          %v2871 = vadd.f32 %v2806, %v2861
          %v2872 = vadd.f32 %v2807, %v2862
          %v2873 = vadd.f32 %v2808, %v2854
          %v2874 = vadd.f32 %v2809, %v2863
          %v2875 = vadd.f32 %v2810, %v2864
          %v2876 = vadd.f32 %v2811, %v2860
          %s2877 = scalar_lea.vmem [#allocation3], 576
          %v2878 = vld [vmem:[%s2877] sm:$0xff]
          %v2879 = vld [vmem:[%s2877 + $0x8] sm:$0xff]
          %v2880 = vld [vmem:[%s2877 + $0x10] sm:$0xff]
          %v2881 = vld [vmem:[%s2877 + $0x18] sm:$0xff]
          %2886 = vrot.lane.b32.xlu0 %v2878, 113
          %v2887 = vpop.permute.xlu0 %2886
          %2888 = vrot.lane.b32.xlu0 %v2879, 113
          %v2889 = vpop.permute.xlu0 %2888
          %2890 = vrot.lane.b32.xlu0 %v2880, 113
          %v2891 = vpop.permute.xlu0 %2890
          %2892 = vrot.lane.b32.xlu0 %v2881, 113
          %v2893 = vpop.permute.xlu0 %2892
          %vm2894 = vcmask 924672
          %v2895 = vsel %vm2894, %v2887, %v2889
          %v2896 = vsel %vm2894, %v2891, %v2893
          %v2903 = vmul.f32 %v1701, %v2887
          %v2904 = vmul.f32 %v1702, %v2895
          %v2905 = vmul.f32 %v1703, %v2889
          %v2906 = vmul.f32 %v1705, %v2891
          %v2907 = vmul.f32 %v1706, %v2896
          %v2908 = vmul.f32 %v1707, %v2893
          %2915 = vrot.lane.b32.xlu0 %v2903, 92
          %v2916 = vpop.permute.xlu0 %2915
          %2917 = vrot.lane.b32.xlu0 %v2904, 92
          %v2918 = vpop.permute.xlu0 %2917
          %2919 = vrot.lane.b32.xlu0 %v2905, 92
          %v2920 = vpop.permute.xlu0 %2919
          %2921 = vrot.lane.b32.xlu0 %v2906, 92
          %v2922 = vpop.permute.xlu0 %2921
          %2923 = vrot.lane.b32.xlu0 %v2907, 92
          %v2924 = vpop.permute.xlu0 %2923
          %2925 = vrot.lane.b32.xlu0 %v2908, 92
          %v2926 = vpop.permute.xlu0 %2925
          %vm2927 = vcmask 752640
          %v2928 = vsel %vm2927, %v2916, %v2918
          %v2929 = vsel %vm2927, %v2918, %v2920
          %v2930 = vsel %vm2927, %v2922, %v2924
          %v2931 = vsel %vm2927, %v2924, %v2926
          %v2938 = vadd.f32 %v2871, %v2928
          %v2939 = vadd.f32 %v2872, %v2929
          %v2940 = vadd.f32 %v2873, %v2920
          %v2941 = vadd.f32 %v2874, %v2930
          %v2942 = vadd.f32 %v2875, %v2931
          %v2943 = vadd.f32 %v2876, %v2926
          %s2944 = scalar_lea.vmem [#allocation3], 608
          %v2945 = vld [vmem:[%s2944] sm:$0xff]
          %v2946 = vld [vmem:[%s2944 + $0x8] sm:$0xff]
          %v2947 = vld [vmem:[%s2944 + $0x10] sm:$0xff]
          %v2948 = vld [vmem:[%s2944 + $0x18] sm:$0xff]
          %2953 = vrot.lane.b32.xlu0 %v2945, 114
          %v2954 = vpop.permute.xlu0 %2953
          %2955 = vrot.lane.b32.xlu0 %v2946, 114
          %v2956 = vpop.permute.xlu0 %2955
          %2957 = vrot.lane.b32.xlu0 %v2947, 114
          %v2958 = vpop.permute.xlu0 %2957
          %2959 = vrot.lane.b32.xlu0 %v2948, 114
          %v2960 = vpop.permute.xlu0 %2959
          %vm2961 = vcmask 932864
          %v2962 = vsel %vm2961, %v2954, %v2956
          %v2963 = vsel %vm2961, %v2958, %v2960
          %v2970 = vmul.f32 %v1701, %v2954
          %v2971 = vmul.f32 %v1702, %v2962
          %v2972 = vmul.f32 %v1703, %v2956
          %v2973 = vmul.f32 %v1705, %v2958
          %v2974 = vmul.f32 %v1706, %v2963
          %v2975 = vmul.f32 %v1707, %v2960
          %2982 = vrot.lane.b32.xlu0 %v2970, 91
          %v2983 = vpop.permute.xlu0 %2982
          %2984 = vrot.lane.b32.xlu0 %v2971, 91
          %v2985 = vpop.permute.xlu0 %2984
          %2986 = vrot.lane.b32.xlu0 %v2972, 91
          %v2987 = vpop.permute.xlu0 %2986
          %2988 = vrot.lane.b32.xlu0 %v2973, 91
          %v2989 = vpop.permute.xlu0 %2988
          %2990 = vrot.lane.b32.xlu0 %v2974, 91
          %v2991 = vpop.permute.xlu0 %2990
          %2992 = vrot.lane.b32.xlu0 %v2975, 91
          %v2993 = vpop.permute.xlu0 %2992
          %vm2994 = vcmask 744448
          %v2995 = vsel %vm2994, %v2983, %v2985
          %v2996 = vsel %vm2994, %v2985, %v2987
          %v2997 = vsel %vm2994, %v2989, %v2991
          %v2998 = vsel %vm2994, %v2991, %v2993
          %v3005 = vadd.f32 %v2938, %v2995
          %v3006 = vadd.f32 %v2939, %v2996
          %v3007 = vadd.f32 %v2940, %v2987
          %v3008 = vadd.f32 %v2941, %v2997
          %v3009 = vadd.f32 %v2942, %v2998
          %v3010 = vadd.f32 %v2943, %v2993
          %s3011 = scalar_lea.vmem [#allocation3], 640
          %v3012 = vld [vmem:[%s3011] sm:$0xff]
          %v3013 = vld [vmem:[%s3011 + $0x8] sm:$0xff]
          %v3014 = vld [vmem:[%s3011 + $0x10] sm:$0xff]
          %v3015 = vld [vmem:[%s3011 + $0x18] sm:$0xff]
          %3020 = vrot.lane.b32.xlu0 %v3012, 115
          %v3021 = vpop.permute.xlu0 %3020
          %3022 = vrot.lane.b32.xlu0 %v3013, 115
          %v3023 = vpop.permute.xlu0 %3022
          %3024 = vrot.lane.b32.xlu0 %v3014, 115
          %v3025 = vpop.permute.xlu0 %3024
          %3026 = vrot.lane.b32.xlu0 %v3015, 115
          %v3027 = vpop.permute.xlu0 %3026
          %vm3028 = vcmask 941056
          %v3029 = vsel %vm3028, %v3021, %v3023
          %v3030 = vsel %vm3028, %v3025, %v3027
          %v3037 = vmul.f32 %v1701, %v3021
          %v3038 = vmul.f32 %v1702, %v3029
          %v3039 = vmul.f32 %v1703, %v3023
          %v3040 = vmul.f32 %v1705, %v3025
          %v3041 = vmul.f32 %v1706, %v3030
          %v3042 = vmul.f32 %v1707, %v3027
          %3049 = vrot.lane.b32.xlu0 %v3037, 90
          %v3050 = vpop.permute.xlu0 %3049
          %3051 = vrot.lane.b32.xlu0 %v3038, 90
          %v3052 = vpop.permute.xlu0 %3051
          %3053 = vrot.lane.b32.xlu0 %v3039, 90
          %v3054 = vpop.permute.xlu0 %3053
          %3055 = vrot.lane.b32.xlu0 %v3040, 90
          %v3056 = vpop.permute.xlu0 %3055
          %3057 = vrot.lane.b32.xlu0 %v3041, 90
          %v3058 = vpop.permute.xlu0 %3057
          %3059 = vrot.lane.b32.xlu0 %v3042, 90
          %v3060 = vpop.permute.xlu0 %3059
          %vm3061 = vcmask 736256
          %v3062 = vsel %vm3061, %v3050, %v3052
          %v3063 = vsel %vm3061, %v3052, %v3054
          %v3064 = vsel %vm3061, %v3056, %v3058
          %v3065 = vsel %vm3061, %v3058, %v3060
          %v3072 = vadd.f32 %v3005, %v3062
          %v3073 = vadd.f32 %v3006, %v3063
          %v3074 = vadd.f32 %v3007, %v3054
          %v3075 = vadd.f32 %v3008, %v3064
          %v3076 = vadd.f32 %v3009, %v3065
          %v3077 = vadd.f32 %v3010, %v3060
          %s3078 = scalar_lea.vmem [#allocation3], 672
          %v3079 = vld [vmem:[%s3078] sm:$0xff]
          %v3080 = vld [vmem:[%s3078 + $0x8] sm:$0xff]
          %v3081 = vld [vmem:[%s3078 + $0x10] sm:$0xff]
          %v3082 = vld [vmem:[%s3078 + $0x18] sm:$0xff]
          %3087 = vrot.lane.b32.xlu0 %v3079, 125
          %v3088 = vpop.permute.xlu0 %3087
          %3089 = vrot.lane.b32.xlu0 %v3080, 125
          %v3090 = vpop.permute.xlu0 %3089
          %3091 = vrot.lane.b32.xlu0 %v3081, 125
          %v3092 = vpop.permute.xlu0 %3091
          %3093 = vrot.lane.b32.xlu0 %v3082, 125
          %v3094 = vpop.permute.xlu0 %3093
          %v3095 = vsel %vm1930, %v3088, %v3090
          %v3096 = vsel %vm1930, %v3092, %v3094
          %v3103 = vmul.f32 %v1701, %v3088
          %v3104 = vmul.f32 %v1702, %v3095
          %v3105 = vmul.f32 %v1703, %v3090
          %v3106 = vmul.f32 %v1705, %v3092
          %v3107 = vmul.f32 %v1706, %v3096
          %v3108 = vmul.f32 %v1707, %v3094
          %3115 = vrot.lane.b32.xlu0 %v3103, 80
          %v3116 = vpop.permute.xlu0 %3115
          %3117 = vrot.lane.b32.xlu0 %v3104, 80
          %v3118 = vpop.permute.xlu0 %3117
          %3119 = vrot.lane.b32.xlu0 %v3105, 80
          %v3120 = vpop.permute.xlu0 %3119
          %3121 = vrot.lane.b32.xlu0 %v3106, 80
          %v3122 = vpop.permute.xlu0 %3121
          %3123 = vrot.lane.b32.xlu0 %v3107, 80
          %v3124 = vpop.permute.xlu0 %3123
          %3125 = vrot.lane.b32.xlu0 %v3108, 80
          %v3126 = vpop.permute.xlu0 %3125
          %v3127 = vsel %vm1897, %v3116, %v3118
          %v3128 = vsel %vm1897, %v3118, %v3120
          %v3129 = vsel %vm1897, %v3122, %v3124
          %v3130 = vsel %vm1897, %v3124, %v3126
          %v3137 = vadd.f32 %v3072, %v3127
          %v3138 = vadd.f32 %v3073, %v3128
          %v3139 = vadd.f32 %v3074, %v3120
          %v3140 = vadd.f32 %v3075, %v3129
          %v3141 = vadd.f32 %v3076, %v3130
          %v3142 = vadd.f32 %v3077, %v3126
          %s3143 = scalar_lea.vmem [#allocation3], 704
          %v3144 = vld [vmem:[%s3143] sm:$0xff]
          %v3145 = vld [vmem:[%s3143 + $0x8] sm:$0xff]
          %v3146 = vld [vmem:[%s3143 + $0x10] sm:$0xff]
          %v3147 = vld [vmem:[%s3143 + $0x18] sm:$0xff]
          %3152 = vrot.lane.b32.xlu0 %v3144, 126
          %v3153 = vpop.permute.xlu0 %3152
          %3154 = vrot.lane.b32.xlu0 %v3145, 126
          %v3155 = vpop.permute.xlu0 %3154
          %3156 = vrot.lane.b32.xlu0 %v3146, 126
          %v3157 = vpop.permute.xlu0 %3156
          %3158 = vrot.lane.b32.xlu0 %v3147, 126
          %v3159 = vpop.permute.xlu0 %3158
          %v3160 = vsel %vm1863, %v3153, %v3155
          %v3161 = vsel %vm1863, %v3157, %v3159
          %v3168 = vmul.f32 %v1701, %v3153
          %v3169 = vmul.f32 %v1702, %v3160
          %v3170 = vmul.f32 %v1703, %v3155
          %v3171 = vmul.f32 %v1705, %v3157
          %v3172 = vmul.f32 %v1706, %v3161
          %v3173 = vmul.f32 %v1707, %v3159
          %3180 = vrot.lane.b32.xlu0 %v3168, 79
          %v3181 = vpop.permute.xlu0 %3180
          %3182 = vrot.lane.b32.xlu0 %v3169, 79
          %v3183 = vpop.permute.xlu0 %3182
          %3184 = vrot.lane.b32.xlu0 %v3170, 79
          %v3185 = vpop.permute.xlu0 %3184
          %3186 = vrot.lane.b32.xlu0 %v3171, 79
          %v3187 = vpop.permute.xlu0 %3186
          %3188 = vrot.lane.b32.xlu0 %v3172, 79
          %v3189 = vpop.permute.xlu0 %3188
          %3190 = vrot.lane.b32.xlu0 %v3173, 79
          %v3191 = vpop.permute.xlu0 %3190
          %v3192 = vsel %vm1830, %v3181, %v3183
          %v3193 = vsel %vm1830, %v3183, %v3185
          %v3194 = vsel %vm1830, %v3187, %v3189
          %v3195 = vsel %vm1830, %v3189, %v3191
          %v3202 = vadd.f32 %v3137, %v3192
          %v3203 = vadd.f32 %v3138, %v3193
          %v3204 = vadd.f32 %v3139, %v3185
          %v3205 = vadd.f32 %v3140, %v3194
          %v3206 = vadd.f32 %v3141, %v3195
          %v3207 = vadd.f32 %v3142, %v3191
          %s3208 = scalar_lea.vmem [#allocation3], 736
          %v3209 = vld [vmem:[%s3208] sm:$0xff]
          %v3210 = vld [vmem:[%s3208 + $0x8] sm:$0xff]
          %v3211 = vld [vmem:[%s3208 + $0x10] sm:$0xff]
          %v3212 = vld [vmem:[%s3208 + $0x18] sm:$0xff]
          %3217 = vrot.lane.b32.xlu0 %v3209, 127
          %v3218 = vpop.permute.xlu0 %3217
          %3219 = vrot.lane.b32.xlu0 %v3210, 127
          %v3220 = vpop.permute.xlu0 %3219
          %3221 = vrot.lane.b32.xlu0 %v3211, 127
          %v3222 = vpop.permute.xlu0 %3221
          %3223 = vrot.lane.b32.xlu0 %v3212, 127
          %v3224 = vpop.permute.xlu0 %3223
          %v3225 = vsel %vm1796, %v3218, %v3220
          %v3226 = vsel %vm1796, %v3222, %v3224
          %v3233 = vmul.f32 %v1701, %v3218
          %v3234 = vmul.f32 %v1702, %v3225
          %v3235 = vmul.f32 %v1703, %v3220
          %v3236 = vmul.f32 %v1705, %v3222
          %v3237 = vmul.f32 %v1706, %v3226
          %v3238 = vmul.f32 %v1707, %v3224
          %3245 = vrot.lane.b32.xlu0 %v3233, 78
          %v3246 = vpop.permute.xlu0 %3245
          %3247 = vrot.lane.b32.xlu0 %v3234, 78
          %v3248 = vpop.permute.xlu0 %3247
          %3249 = vrot.lane.b32.xlu0 %v3235, 78
          %v3250 = vpop.permute.xlu0 %3249
          %3251 = vrot.lane.b32.xlu0 %v3236, 78
          %v3252 = vpop.permute.xlu0 %3251
          %3253 = vrot.lane.b32.xlu0 %v3237, 78
          %v3254 = vpop.permute.xlu0 %3253
          %3255 = vrot.lane.b32.xlu0 %v3238, 78
          %v3256 = vpop.permute.xlu0 %3255
          %v3257 = vsel %vm1763, %v3246, %v3248
          %v3258 = vsel %vm1763, %v3248, %v3250
          %v3259 = vsel %vm1763, %v3252, %v3254
          %v3260 = vsel %vm1763, %v3254, %v3256
          %v3267 = vadd.f32 %v3202, %v3257
          %v3268 = vadd.f32 %v3203, %v3258
          %v3269 = vadd.f32 %v3204, %v3250
          %v3270 = vadd.f32 %v3205, %v3259
          %v3271 = vadd.f32 %v3206, %v3260
          %v3272 = vadd.f32 %v3207, %v3256
          %s3273 = scalar_lea.vmem [#allocation3], 768
          %v3274 = vld [vmem:[%s3273] sm:$0xff]
          %v3275 = vld [vmem:[%s3273 + $0x8] sm:$0xff]
          %v3276 = vld [vmem:[%s3273 + $0x10] sm:$0xff]
          %v3277 = vld [vmem:[%s3273 + $0x18] sm:$0xff]
          %v3278 = vmul.f32 %v1702, %v3274
          %v3279 = vmul.f32 %v1703, %v3275
          %v3280 = vmul.f32 %v1706, %v3276
          %v3281 = vmul.f32 %v1707, %v3277
          %3286 = vrot.lane.b32.xlu0 %v3278, 77
          %v3287 = vpop.permute.xlu0 %3286
          %3288 = vrot.lane.b32.xlu0 %v3279, 77
          %v3289 = vpop.permute.xlu0 %3288
          %3290 = vrot.lane.b32.xlu0 %v3280, 77
          %v3291 = vpop.permute.xlu0 %3290
          %3292 = vrot.lane.b32.xlu0 %v3281, 77
          %v3293 = vpop.permute.xlu0 %3292
          %v3294 = vsel %vm1725, %v3287, %v3289
          %v3295 = vsel %vm1725, %v3291, %v3293
          %v3302 = vadd.f32 %v3267, %v3287
          %v3303 = vadd.f32 %v3268, %v3294
          %v3304 = vadd.f32 %v3269, %v3289
          %v3305 = vadd.f32 %v3270, %v3291
          %v3306 = vadd.f32 %v3271, %v3295
          %v3307 = vadd.f32 %v3272, %v3293
          %s3308 = scalar_lea.vmem [#allocation3], 800
          %v3309 = vld [vmem:[%s3308] sm:$0xff]
          %v3310 = vld [vmem:[%s3308 + $0x8] sm:$0xff]
          %v3311 = vld [vmem:[%s3308 + $0x10] sm:$0xff]
          %v3312 = vld [vmem:[%s3308 + $0x18] sm:$0xff]
          %3317 = vrot.lane.b32.xlu0 %v3309, 1
          %v3318 = vpop.permute.xlu0 %3317
          %3319 = vrot.lane.b32.xlu0 %v3310, 1
          %v3320 = vpop.permute.xlu0 %3319
          %3321 = vrot.lane.b32.xlu0 %v3311, 1
          %v3322 = vpop.permute.xlu0 %3321
          %3323 = vrot.lane.b32.xlu0 %v3312, 1
          %v3324 = vpop.permute.xlu0 %3323
          %vm3325 = vcmask 7168
          %v3326 = vsel %vm3325, %v3318, %v3320
          %v3327 = vsel %vm3325, %v3322, %v3324
          %v3334 = vmul.f32 %v1702, %v3318
          %v3335 = vmul.f32 %v1703, %v3326
          %v3336 = vmul.f32 %v1704, %v3320
          %v3337 = vmul.f32 %v1706, %v3322
          %v3338 = vmul.f32 %v1707, %v3327
          %v3339 = vmul.f32 %v1708, %v3324
          %3346 = vrot.lane.b32.xlu0 %v3334, 76
          %v3347 = vpop.permute.xlu0 %3346
          %3348 = vrot.lane.b32.xlu0 %v3335, 76
          %v3349 = vpop.permute.xlu0 %3348
          %3350 = vrot.lane.b32.xlu0 %v3336, 76
          %v3351 = vpop.permute.xlu0 %3350
          %3352 = vrot.lane.b32.xlu0 %v3337, 76
          %v3353 = vpop.permute.xlu0 %3352
          %3354 = vrot.lane.b32.xlu0 %v3338, 76
          %v3355 = vpop.permute.xlu0 %3354
          %3356 = vrot.lane.b32.xlu0 %v3339, 76
          %v3357 = vpop.permute.xlu0 %3356
          %vm3358 = vcmask 621568
          %v3359 = vsel %vm3358, %v3347, %v3349
          %v3360 = vsel %vm3358, %v3349, %v3351
          %v3361 = vsel %vm3358, %v3353, %v3355
          %v3362 = vsel %vm3358, %v3355, %v3357
          %v3369 = vadd.f32 %v3302, %v3347
          %v3370 = vadd.f32 %v3303, %v3359
          %v3371 = vadd.f32 %v3304, %v3360
          %v3372 = vadd.f32 %v3305, %v3353
          %v3373 = vadd.f32 %v3306, %v3361
          %v3374 = vadd.f32 %v3307, %v3362
          %s3375 = scalar_lea.vmem [#allocation3], 832
          %v3376 = vld [vmem:[%s3375] sm:$0xff]
          %v3377 = vld [vmem:[%s3375 + $0x8] sm:$0xff]
          %v3378 = vld [vmem:[%s3375 + $0x10] sm:$0xff]
          %v3379 = vld [vmem:[%s3375 + $0x18] sm:$0xff]
          %3384 = vrot.lane.b32.xlu0 %v3376, 2
          %v3385 = vpop.permute.xlu0 %3384
          %3386 = vrot.lane.b32.xlu0 %v3377, 2
          %v3387 = vpop.permute.xlu0 %3386
          %3388 = vrot.lane.b32.xlu0 %v3378, 2
          %v3389 = vpop.permute.xlu0 %3388
          %3390 = vrot.lane.b32.xlu0 %v3379, 2
          %v3391 = vpop.permute.xlu0 %3390
          %vm3392 = vcmask 15360
          %v3393 = vsel %vm3392, %v3385, %v3387
          %v3394 = vsel %vm3392, %v3389, %v3391
          %v3401 = vmul.f32 %v1702, %v3385
          %v3402 = vmul.f32 %v1703, %v3393
          %v3403 = vmul.f32 %v1704, %v3387
          %v3404 = vmul.f32 %v1706, %v3389
          %v3405 = vmul.f32 %v1707, %v3394
          %v3406 = vmul.f32 %v1708, %v3391
          %3413 = vrot.lane.b32.xlu0 %v3401, 75
          %v3414 = vpop.permute.xlu0 %3413
          %3415 = vrot.lane.b32.xlu0 %v3402, 75
          %v3416 = vpop.permute.xlu0 %3415
          %3417 = vrot.lane.b32.xlu0 %v3403, 75
          %v3418 = vpop.permute.xlu0 %3417
          %3419 = vrot.lane.b32.xlu0 %v3404, 75
          %v3420 = vpop.permute.xlu0 %3419
          %3421 = vrot.lane.b32.xlu0 %v3405, 75
          %v3422 = vpop.permute.xlu0 %3421
          %3423 = vrot.lane.b32.xlu0 %v3406, 75
          %v3424 = vpop.permute.xlu0 %3423
          %vm3425 = vcmask 613376
          %v3426 = vsel %vm3425, %v3414, %v3416
          %v3427 = vsel %vm3425, %v3416, %v3418
          %v3428 = vsel %vm3425, %v3420, %v3422
          %v3429 = vsel %vm3425, %v3422, %v3424
          %v3436 = vadd.f32 %v3369, %v3414
          %v3437 = vadd.f32 %v3370, %v3426
          %v3438 = vadd.f32 %v3371, %v3427
          %v3439 = vadd.f32 %v3372, %v3420
          %v3440 = vadd.f32 %v3373, %v3428
          %v3441 = vadd.f32 %v3374, %v3429
          %s3442 = scalar_lea.vmem [#allocation3], 864
          %v3443 = vld [vmem:[%s3442] sm:$0xff]
          %v3444 = vld [vmem:[%s3442 + $0x8] sm:$0xff]
          %v3445 = vld [vmem:[%s3442 + $0x10] sm:$0xff]
          %v3446 = vld [vmem:[%s3442 + $0x18] sm:$0xff]
          %3451 = vrot.lane.b32.xlu0 %v3443, 3
          %v3452 = vpop.permute.xlu0 %3451
          %3453 = vrot.lane.b32.xlu0 %v3444, 3
          %v3454 = vpop.permute.xlu0 %3453
          %3455 = vrot.lane.b32.xlu0 %v3445, 3
          %v3456 = vpop.permute.xlu0 %3455
          %3457 = vrot.lane.b32.xlu0 %v3446, 3
          %v3458 = vpop.permute.xlu0 %3457
          %vm3459 = vcmask 23552
          %v3460 = vsel %vm3459, %v3452, %v3454
          %v3461 = vsel %vm3459, %v3456, %v3458
          %v3468 = vmul.f32 %v1702, %v3452
          %v3469 = vmul.f32 %v1703, %v3460
          %v3470 = vmul.f32 %v1704, %v3454
          %v3471 = vmul.f32 %v1706, %v3456
          %v3472 = vmul.f32 %v1707, %v3461
          %v3473 = vmul.f32 %v1708, %v3458
          %3480 = vrot.lane.b32.xlu0 %v3468, 74
          %v3481 = vpop.permute.xlu0 %3480
          %3482 = vrot.lane.b32.xlu0 %v3469, 74
          %v3483 = vpop.permute.xlu0 %3482
          %3484 = vrot.lane.b32.xlu0 %v3470, 74
          %v3485 = vpop.permute.xlu0 %3484
          %3486 = vrot.lane.b32.xlu0 %v3471, 74
          %v3487 = vpop.permute.xlu0 %3486
          %3488 = vrot.lane.b32.xlu0 %v3472, 74
          %v3489 = vpop.permute.xlu0 %3488
          %3490 = vrot.lane.b32.xlu0 %v3473, 74
          %v3491 = vpop.permute.xlu0 %3490
          %vm3492 = vcmask 605184
          %v3493 = vsel %vm3492, %v3481, %v3483
          %v3494 = vsel %vm3492, %v3483, %v3485
          %v3495 = vsel %vm3492, %v3487, %v3489
          %v3496 = vsel %vm3492, %v3489, %v3491
          %v3503 = vadd.f32 %v3436, %v3481
          %v3504 = vadd.f32 %v3437, %v3493
          %v3505 = vadd.f32 %v3438, %v3494
          %v3506 = vadd.f32 %v3439, %v3487
          %v3507 = vadd.f32 %v3440, %v3495
          %v3508 = vadd.f32 %v3441, %v3496
          %s3509 = scalar_lea.vmem [#allocation3], 896
          %v3510 = vld [vmem:[%s3509] sm:$0xff]
          %v3511 = vld [vmem:[%s3509 + $0x8] sm:$0xff]
          %v3512 = vld [vmem:[%s3509 + $0x10] sm:$0xff]
          %v3513 = vld [vmem:[%s3509 + $0x18] sm:$0xff]
          %3518 = vrot.lane.b32.xlu0 %v3510, 13
          %v3519 = vpop.permute.xlu0 %3518
          %3520 = vrot.lane.b32.xlu0 %v3511, 13
          %v3521 = vpop.permute.xlu0 %3520
          %3522 = vrot.lane.b32.xlu0 %v3512, 13
          %v3523 = vpop.permute.xlu0 %3522
          %3524 = vrot.lane.b32.xlu0 %v3513, 13
          %v3525 = vpop.permute.xlu0 %3524
          %vm3526 = vcmask 105472
          %v3527 = vsel %vm3526, %v3519, %v3521
          %v3528 = vsel %vm3526, %v3523, %v3525
          %v3535 = vmul.f32 %v1702, %v3519
          %v3536 = vmul.f32 %v1703, %v3527
          %v3537 = vmul.f32 %v1704, %v3521
          %v3538 = vmul.f32 %v1706, %v3523
          %v3539 = vmul.f32 %v1707, %v3528
          %v3540 = vmul.f32 %v1708, %v3525
          %3547 = vrot.lane.b32.xlu0 %v3535, 64
          %v3548 = vpop.permute.xlu0 %3547
          %3549 = vrot.lane.b32.xlu0 %v3536, 64
          %v3550 = vpop.permute.xlu0 %3549
          %3551 = vrot.lane.b32.xlu0 %v3537, 64
          %v3552 = vpop.permute.xlu0 %3551
          %3553 = vrot.lane.b32.xlu0 %v3538, 64
          %v3554 = vpop.permute.xlu0 %3553
          %3555 = vrot.lane.b32.xlu0 %v3539, 64
          %v3556 = vpop.permute.xlu0 %3555
          %3557 = vrot.lane.b32.xlu0 %v3540, 64
          %v3558 = vpop.permute.xlu0 %3557
          %vm3559 = vcmask 523264
          %v3560 = vsel %vm3559, %v3548, %v3550
          %v3561 = vsel %vm3559, %v3550, %v3552
          %v3562 = vsel %vm3559, %v3554, %v3556
          %v3563 = vsel %vm3559, %v3556, %v3558
          %v3570 = vadd.f32 %v3503, %v3548
          %v3571 = vadd.f32 %v3504, %v3560
          %v3572 = vadd.f32 %v3505, %v3561
          %v3573 = vadd.f32 %v3506, %v3554
          %v3574 = vadd.f32 %v3507, %v3562
          %v3575 = vadd.f32 %v3508, %v3563
          %s3576 = scalar_lea.vmem [#allocation3], 928
          %v3577 = vld [vmem:[%s3576] sm:$0xff]
          %v3578 = vld [vmem:[%s3576 + $0x8] sm:$0xff]
          %v3579 = vld [vmem:[%s3576 + $0x10] sm:$0xff]
          %v3580 = vld [vmem:[%s3576 + $0x18] sm:$0xff]
          %3585 = vrot.lane.b32.xlu0 %v3577, 14
          %v3586 = vpop.permute.xlu0 %3585
          %3587 = vrot.lane.b32.xlu0 %v3578, 14
          %v3588 = vpop.permute.xlu0 %3587
          %3589 = vrot.lane.b32.xlu0 %v3579, 14
          %v3590 = vpop.permute.xlu0 %3589
          %3591 = vrot.lane.b32.xlu0 %v3580, 14
          %v3592 = vpop.permute.xlu0 %3591
          %vm3593 = vcmask 113664
          %v3594 = vsel %vm3593, %v3586, %v3588
          %v3595 = vsel %vm3593, %v3590, %v3592
          %v3602 = vmul.f32 %v1702, %v3586
          %v3603 = vmul.f32 %v1703, %v3594
          %v3604 = vmul.f32 %v1704, %v3588
          %v3605 = vmul.f32 %v1706, %v3590
          %v3606 = vmul.f32 %v1707, %v3595
          %v3607 = vmul.f32 %v1708, %v3592
          %3614 = vrot.lane.b32.xlu0 %v3602, 63
          %v3615 = vpop.permute.xlu0 %3614
          %3616 = vrot.lane.b32.xlu0 %v3603, 63
          %v3617 = vpop.permute.xlu0 %3616
          %3618 = vrot.lane.b32.xlu0 %v3604, 63
          %v3619 = vpop.permute.xlu0 %3618
          %3620 = vrot.lane.b32.xlu0 %v3605, 63
          %v3621 = vpop.permute.xlu0 %3620
          %3622 = vrot.lane.b32.xlu0 %v3606, 63
          %v3623 = vpop.permute.xlu0 %3622
          %3624 = vrot.lane.b32.xlu0 %v3607, 63
          %v3625 = vpop.permute.xlu0 %3624
          %vm3626 = vcmask 515072
          %v3627 = vsel %vm3626, %v3615, %v3617
          %v3628 = vsel %vm3626, %v3617, %v3619
          %v3629 = vsel %vm3626, %v3621, %v3623
          %v3630 = vsel %vm3626, %v3623, %v3625
          %v3637 = vadd.f32 %v3570, %v3615
          %v3638 = vadd.f32 %v3571, %v3627
          %v3639 = vadd.f32 %v3572, %v3628
          %v3640 = vadd.f32 %v3573, %v3621
          %v3641 = vadd.f32 %v3574, %v3629
          %v3642 = vadd.f32 %v3575, %v3630
          %s3643 = scalar_lea.vmem [#allocation3], 960
          %v3644 = vld [vmem:[%s3643] sm:$0xff]
          %v3645 = vld [vmem:[%s3643 + $0x8] sm:$0xff]
          %v3646 = vld [vmem:[%s3643 + $0x10] sm:$0xff]
          %v3647 = vld [vmem:[%s3643 + $0x18] sm:$0xff]
          %3652 = vrot.lane.b32.xlu0 %v3644, 15
          %v3653 = vpop.permute.xlu0 %3652
          %3654 = vrot.lane.b32.xlu0 %v3645, 15
          %v3655 = vpop.permute.xlu0 %3654
          %3656 = vrot.lane.b32.xlu0 %v3646, 15
          %v3657 = vpop.permute.xlu0 %3656
          %3658 = vrot.lane.b32.xlu0 %v3647, 15
          %v3659 = vpop.permute.xlu0 %3658
          %vm3660 = vcmask 121856
          %v3661 = vsel %vm3660, %v3653, %v3655
          %v3662 = vsel %vm3660, %v3657, %v3659
          %v3669 = vmul.f32 %v1702, %v3653
          %v3670 = vmul.f32 %v1703, %v3661
          %v3671 = vmul.f32 %v1704, %v3655
          %v3672 = vmul.f32 %v1706, %v3657
          %v3673 = vmul.f32 %v1707, %v3662
          %v3674 = vmul.f32 %v1708, %v3659
          %3681 = vrot.lane.b32.xlu0 %v3669, 62
          %v3682 = vpop.permute.xlu0 %3681
          %3683 = vrot.lane.b32.xlu0 %v3670, 62
          %v3684 = vpop.permute.xlu0 %3683
          %3685 = vrot.lane.b32.xlu0 %v3671, 62
          %v3686 = vpop.permute.xlu0 %3685
          %3687 = vrot.lane.b32.xlu0 %v3672, 62
          %v3688 = vpop.permute.xlu0 %3687
          %3689 = vrot.lane.b32.xlu0 %v3673, 62
          %v3690 = vpop.permute.xlu0 %3689
          %3691 = vrot.lane.b32.xlu0 %v3674, 62
          %v3692 = vpop.permute.xlu0 %3691
          %vm3693 = vcmask 506880
          %v3694 = vsel %vm3693, %v3682, %v3684
          %v3695 = vsel %vm3693, %v3684, %v3686
          %v3696 = vsel %vm3693, %v3688, %v3690
          %v3697 = vsel %vm3693, %v3690, %v3692
          %v3704 = vadd.f32 %v3637, %v3682
          %v3705 = vadd.f32 %v3638, %v3694
          %v3706 = vadd.f32 %v3639, %v3695
          %v3707 = vadd.f32 %v3640, %v3688
          %v3708 = vadd.f32 %v3641, %v3696
          %v3709 = vadd.f32 %v3642, %v3697
          %s3710 = scalar_lea.vmem [#allocation3], 992
          %v3711 = vld [vmem:[%s3710] sm:$0xff]
          %v3712 = vld [vmem:[%s3710 + $0x8] sm:$0xff]
          %v3713 = vld [vmem:[%s3710 + $0x10] sm:$0xff]
          %v3714 = vld [vmem:[%s3710 + $0x18] sm:$0xff]
          %3719 = vrot.lane.b32.xlu0 %v3711, 16
          %v3720 = vpop.permute.xlu0 %3719
          %3721 = vrot.lane.b32.xlu0 %v3712, 16
          %v3722 = vpop.permute.xlu0 %3721
          %3723 = vrot.lane.b32.xlu0 %v3713, 16
          %v3724 = vpop.permute.xlu0 %3723
          %3725 = vrot.lane.b32.xlu0 %v3714, 16
          %v3726 = vpop.permute.xlu0 %3725
          %vm3727 = vcmask 130048
          %v3728 = vsel %vm3727, %v3720, %v3722
          %v3729 = vsel %vm3727, %v3724, %v3726
          %v3736 = vmul.f32 %v1702, %v3720
          %v3737 = vmul.f32 %v1703, %v3728
          %v3738 = vmul.f32 %v1704, %v3722
          %v3739 = vmul.f32 %v1706, %v3724
          %v3740 = vmul.f32 %v1707, %v3729
          %v3741 = vmul.f32 %v1708, %v3726
          %3748 = vrot.lane.b32.xlu0 %v3736, 61
          %v3749 = vpop.permute.xlu0 %3748
          %3750 = vrot.lane.b32.xlu0 %v3737, 61
          %v3751 = vpop.permute.xlu0 %3750
          %3752 = vrot.lane.b32.xlu0 %v3738, 61
          %v3753 = vpop.permute.xlu0 %3752
          %3754 = vrot.lane.b32.xlu0 %v3739, 61
          %v3755 = vpop.permute.xlu0 %3754
          %3756 = vrot.lane.b32.xlu0 %v3740, 61
          %v3757 = vpop.permute.xlu0 %3756
          %3758 = vrot.lane.b32.xlu0 %v3741, 61
          %v3759 = vpop.permute.xlu0 %3758
          %vm3760 = vcmask 498688
          %v3761 = vsel %vm3760, %v3749, %v3751
          %v3762 = vsel %vm3760, %v3751, %v3753
          %v3763 = vsel %vm3760, %v3755, %v3757
          %v3764 = vsel %vm3760, %v3757, %v3759
          %v3771 = vadd.f32 %v3704, %v3749
          %v3772 = vadd.f32 %v3705, %v3761
          %v3773 = vadd.f32 %v3706, %v3762
          %v3774 = vadd.f32 %v3707, %v3755
          %v3775 = vadd.f32 %v3708, %v3763
          %v3776 = vadd.f32 %v3709, %v3764
          %s3777 = scalar_lea.vmem [#allocation3], 1024
          %v3778 = vld [vmem:[%s3777] sm:$0xff]
          %v3779 = vld [vmem:[%s3777 + $0x8] sm:$0xff]
          %v3780 = vld [vmem:[%s3777 + $0x10] sm:$0xff]
          %v3781 = vld [vmem:[%s3777 + $0x18] sm:$0xff]
          %3786 = vrot.lane.b32.xlu0 %v3778, 17
          %v3787 = vpop.permute.xlu0 %3786
          %3788 = vrot.lane.b32.xlu0 %v3779, 17
          %v3789 = vpop.permute.xlu0 %3788
          %3790 = vrot.lane.b32.xlu0 %v3780, 17
          %v3791 = vpop.permute.xlu0 %3790
          %3792 = vrot.lane.b32.xlu0 %v3781, 17
          %v3793 = vpop.permute.xlu0 %3792
          %vm3794 = vcmask 138240
          %v3795 = vsel %vm3794, %v3787, %v3789
          %v3796 = vsel %vm3794, %v3791, %v3793
          %v3803 = vmul.f32 %v1702, %v3787
          %v3804 = vmul.f32 %v1703, %v3795
          %v3805 = vmul.f32 %v1704, %v3789
          %v3806 = vmul.f32 %v1706, %v3791
          %v3807 = vmul.f32 %v1707, %v3796
          %v3808 = vmul.f32 %v1708, %v3793
          %3815 = vrot.lane.b32.xlu0 %v3803, 60
          %v3816 = vpop.permute.xlu0 %3815
          %3817 = vrot.lane.b32.xlu0 %v3804, 60
          %v3818 = vpop.permute.xlu0 %3817
          %3819 = vrot.lane.b32.xlu0 %v3805, 60
          %v3820 = vpop.permute.xlu0 %3819
          %3821 = vrot.lane.b32.xlu0 %v3806, 60
          %v3822 = vpop.permute.xlu0 %3821
          %3823 = vrot.lane.b32.xlu0 %v3807, 60
          %v3824 = vpop.permute.xlu0 %3823
          %3825 = vrot.lane.b32.xlu0 %v3808, 60
          %v3826 = vpop.permute.xlu0 %3825
          %vm3827 = vcmask 490496
          %v3828 = vsel %vm3827, %v3816, %v3818
          %v3829 = vsel %vm3827, %v3818, %v3820
          %v3830 = vsel %vm3827, %v3822, %v3824
          %v3831 = vsel %vm3827, %v3824, %v3826
          %v3838 = vadd.f32 %v3771, %v3816
          %v3839 = vadd.f32 %v3772, %v3828
          %v3840 = vadd.f32 %v3773, %v3829
          %v3841 = vadd.f32 %v3774, %v3822
          %v3842 = vadd.f32 %v3775, %v3830
          %v3843 = vadd.f32 %v3776, %v3831
          %s3844 = scalar_lea.vmem [#allocation3], 1056
          %v3845 = vld [vmem:[%s3844] sm:$0xff]
          %v3846 = vld [vmem:[%s3844 + $0x8] sm:$0xff]
          %v3847 = vld [vmem:[%s3844 + $0x10] sm:$0xff]
          %v3848 = vld [vmem:[%s3844 + $0x18] sm:$0xff]
          %3853 = vrot.lane.b32.xlu0 %v3845, 18
          %v3854 = vpop.permute.xlu0 %3853
          %3855 = vrot.lane.b32.xlu0 %v3846, 18
          %v3856 = vpop.permute.xlu0 %3855
          %3857 = vrot.lane.b32.xlu0 %v3847, 18
          %v3858 = vpop.permute.xlu0 %3857
          %3859 = vrot.lane.b32.xlu0 %v3848, 18
          %v3860 = vpop.permute.xlu0 %3859
          %vm3861 = vcmask 146432
          %v3862 = vsel %vm3861, %v3854, %v3856
          %v3863 = vsel %vm3861, %v3858, %v3860
          %v3870 = vmul.f32 %v1702, %v3854
          %v3871 = vmul.f32 %v1703, %v3862
          %v3872 = vmul.f32 %v1704, %v3856
          %v3873 = vmul.f32 %v1706, %v3858
          %v3874 = vmul.f32 %v1707, %v3863
          %v3875 = vmul.f32 %v1708, %v3860
          %3882 = vrot.lane.b32.xlu0 %v3870, 59
          %v3883 = vpop.permute.xlu0 %3882
          %3884 = vrot.lane.b32.xlu0 %v3871, 59
          %v3885 = vpop.permute.xlu0 %3884
          %3886 = vrot.lane.b32.xlu0 %v3872, 59
          %v3887 = vpop.permute.xlu0 %3886
          %3888 = vrot.lane.b32.xlu0 %v3873, 59
          %v3889 = vpop.permute.xlu0 %3888
          %3890 = vrot.lane.b32.xlu0 %v3874, 59
          %v3891 = vpop.permute.xlu0 %3890
          %3892 = vrot.lane.b32.xlu0 %v3875, 59
          %v3893 = vpop.permute.xlu0 %3892
          %vm3894 = vcmask 482304
          %v3895 = vsel %vm3894, %v3883, %v3885
          %v3896 = vsel %vm3894, %v3885, %v3887
          %v3897 = vsel %vm3894, %v3889, %v3891
          %v3898 = vsel %vm3894, %v3891, %v3893
          %v3905 = vadd.f32 %v3838, %v3883
          %v3906 = vadd.f32 %v3839, %v3895
          %v3907 = vadd.f32 %v3840, %v3896
          %v3908 = vadd.f32 %v3841, %v3889
          %v3909 = vadd.f32 %v3842, %v3897
          %v3910 = vadd.f32 %v3843, %v3898
          %s3911 = scalar_lea.vmem [#allocation3], 1088
          %v3912 = vld [vmem:[%s3911] sm:$0xff]
          %v3913 = vld [vmem:[%s3911 + $0x8] sm:$0xff]
          %v3914 = vld [vmem:[%s3911 + $0x10] sm:$0xff]
          %v3915 = vld [vmem:[%s3911 + $0x18] sm:$0xff]
          %3920 = vrot.lane.b32.xlu0 %v3912, 19
          %v3921 = vpop.permute.xlu0 %3920
          %3922 = vrot.lane.b32.xlu0 %v3913, 19
          %v3923 = vpop.permute.xlu0 %3922
          %3924 = vrot.lane.b32.xlu0 %v3914, 19
          %v3925 = vpop.permute.xlu0 %3924
          %3926 = vrot.lane.b32.xlu0 %v3915, 19
          %v3927 = vpop.permute.xlu0 %3926
          %vm3928 = vcmask 154624
          %v3929 = vsel %vm3928, %v3921, %v3923
          %v3930 = vsel %vm3928, %v3925, %v3927
          %v3937 = vmul.f32 %v1702, %v3921
          %v3938 = vmul.f32 %v1703, %v3929
          %v3939 = vmul.f32 %v1704, %v3923
          %v3940 = vmul.f32 %v1706, %v3925
          %v3941 = vmul.f32 %v1707, %v3930
          %v3942 = vmul.f32 %v1708, %v3927
          %3949 = vrot.lane.b32.xlu0 %v3937, 58
          %v3950 = vpop.permute.xlu0 %3949
          %3951 = vrot.lane.b32.xlu0 %v3938, 58
          %v3952 = vpop.permute.xlu0 %3951
          %3953 = vrot.lane.b32.xlu0 %v3939, 58
          %v3954 = vpop.permute.xlu0 %3953
          %3955 = vrot.lane.b32.xlu0 %v3940, 58
          %v3956 = vpop.permute.xlu0 %3955
          %3957 = vrot.lane.b32.xlu0 %v3941, 58
          %v3958 = vpop.permute.xlu0 %3957
          %3959 = vrot.lane.b32.xlu0 %v3942, 58
          %v3960 = vpop.permute.xlu0 %3959
          %vm3961 = vcmask 474112
          %v3962 = vsel %vm3961, %v3950, %v3952
          %v3963 = vsel %vm3961, %v3952, %v3954
          %v3964 = vsel %vm3961, %v3956, %v3958
          %v3965 = vsel %vm3961, %v3958, %v3960
          %v3972 = vadd.f32 %v3905, %v3950
          %v3973 = vadd.f32 %v3906, %v3962
          %v3974 = vadd.f32 %v3907, %v3963
          %v3975 = vadd.f32 %v3908, %v3956
          %v3976 = vadd.f32 %v3909, %v3964
          %v3977 = vadd.f32 %v3910, %v3965
          %s3978 = scalar_lea.vmem [#allocation3], 1120
          %v3979 = vld [vmem:[%s3978] sm:$0xff]
          %v3980 = vld [vmem:[%s3978 + $0x8] sm:$0xff]
          %v3981 = vld [vmem:[%s3978 + $0x10] sm:$0xff]
          %v3982 = vld [vmem:[%s3978 + $0x18] sm:$0xff]
          %3987 = vrot.lane.b32.xlu0 %v3979, 29
          %v3988 = vpop.permute.xlu0 %3987
          %3989 = vrot.lane.b32.xlu0 %v3980, 29
          %v3990 = vpop.permute.xlu0 %3989
          %3991 = vrot.lane.b32.xlu0 %v3981, 29
          %v3992 = vpop.permute.xlu0 %3991
          %3993 = vrot.lane.b32.xlu0 %v3982, 29
          %v3994 = vpop.permute.xlu0 %3993
          %vm3995 = vcmask 236544
          %v3996 = vsel %vm3995, %v3988, %v3990
          %v3997 = vsel %vm3995, %v3992, %v3994
          %v4004 = vmul.f32 %v1702, %v3988
          %v4005 = vmul.f32 %v1703, %v3996
          %v4006 = vmul.f32 %v1704, %v3990
          %v4007 = vmul.f32 %v1706, %v3992
          %v4008 = vmul.f32 %v1707, %v3997
          %v4009 = vmul.f32 %v1708, %v3994
          %4016 = vrot.lane.b32.xlu0 %v4004, 48
          %v4017 = vpop.permute.xlu0 %4016
          %4018 = vrot.lane.b32.xlu0 %v4005, 48
          %v4019 = vpop.permute.xlu0 %4018
          %4020 = vrot.lane.b32.xlu0 %v4006, 48
          %v4021 = vpop.permute.xlu0 %4020
          %4022 = vrot.lane.b32.xlu0 %v4007, 48
          %v4023 = vpop.permute.xlu0 %4022
          %4024 = vrot.lane.b32.xlu0 %v4008, 48
          %v4025 = vpop.permute.xlu0 %4024
          %4026 = vrot.lane.b32.xlu0 %v4009, 48
          %v4027 = vpop.permute.xlu0 %4026
          %vm4028 = vcmask 392192
          %v4029 = vsel %vm4028, %v4017, %v4019
          %v4030 = vsel %vm4028, %v4019, %v4021
          %v4031 = vsel %vm4028, %v4023, %v4025
          %v4032 = vsel %vm4028, %v4025, %v4027
          %v4039 = vadd.f32 %v3972, %v4017
          %v4040 = vadd.f32 %v3973, %v4029
          %v4041 = vadd.f32 %v3974, %v4030
          %v4042 = vadd.f32 %v3975, %v4023
          %v4043 = vadd.f32 %v3976, %v4031
          %v4044 = vadd.f32 %v3977, %v4032
          %s4045 = scalar_lea.vmem [#allocation3], 1152
          %v4046 = vld [vmem:[%s4045] sm:$0xff]
          %v4047 = vld [vmem:[%s4045 + $0x8] sm:$0xff]
          %v4048 = vld [vmem:[%s4045 + $0x10] sm:$0xff]
          %v4049 = vld [vmem:[%s4045 + $0x18] sm:$0xff]
          %4054 = vrot.lane.b32.xlu0 %v4046, 30
          %v4055 = vpop.permute.xlu0 %4054
          %4056 = vrot.lane.b32.xlu0 %v4047, 30
          %v4057 = vpop.permute.xlu0 %4056
          %4058 = vrot.lane.b32.xlu0 %v4048, 30
          %v4059 = vpop.permute.xlu0 %4058
          %4060 = vrot.lane.b32.xlu0 %v4049, 30
          %v4061 = vpop.permute.xlu0 %4060
          %vm4062 = vcmask 244736
          %v4063 = vsel %vm4062, %v4055, %v4057
          %v4064 = vsel %vm4062, %v4059, %v4061
          %v4071 = vmul.f32 %v1702, %v4055
          %v4072 = vmul.f32 %v1703, %v4063
          %v4073 = vmul.f32 %v1704, %v4057
          %v4074 = vmul.f32 %v1706, %v4059
          %v4075 = vmul.f32 %v1707, %v4064
          %v4076 = vmul.f32 %v1708, %v4061
          %4083 = vrot.lane.b32.xlu0 %v4071, 47
          %v4084 = vpop.permute.xlu0 %4083
          %4085 = vrot.lane.b32.xlu0 %v4072, 47
          %v4086 = vpop.permute.xlu0 %4085
          %4087 = vrot.lane.b32.xlu0 %v4073, 47
          %v4088 = vpop.permute.xlu0 %4087
          %4089 = vrot.lane.b32.xlu0 %v4074, 47
          %v4090 = vpop.permute.xlu0 %4089
          %4091 = vrot.lane.b32.xlu0 %v4075, 47
          %v4092 = vpop.permute.xlu0 %4091
          %4093 = vrot.lane.b32.xlu0 %v4076, 47
          %v4094 = vpop.permute.xlu0 %4093
          %vm4095 = vcmask 384000
          %v4096 = vsel %vm4095, %v4084, %v4086
          %v4097 = vsel %vm4095, %v4086, %v4088
          %v4098 = vsel %vm4095, %v4090, %v4092
          %v4099 = vsel %vm4095, %v4092, %v4094
          %v4106 = vadd.f32 %v4039, %v4084
          %v4107 = vadd.f32 %v4040, %v4096
          %v4108 = vadd.f32 %v4041, %v4097
          %v4109 = vadd.f32 %v4042, %v4090
          %v4110 = vadd.f32 %v4043, %v4098
          %v4111 = vadd.f32 %v4044, %v4099
          %s4112 = scalar_lea.vmem [#allocation3], 1184
          %v4113 = vld [vmem:[%s4112] sm:$0xff]
          %v4114 = vld [vmem:[%s4112 + $0x8] sm:$0xff]
          %v4115 = vld [vmem:[%s4112 + $0x10] sm:$0xff]
          %v4116 = vld [vmem:[%s4112 + $0x18] sm:$0xff]
          %4121 = vrot.lane.b32.xlu0 %v4113, 31
          %v4122 = vpop.permute.xlu0 %4121
          %4123 = vrot.lane.b32.xlu0 %v4114, 31
          %v4124 = vpop.permute.xlu0 %4123
          %4125 = vrot.lane.b32.xlu0 %v4115, 31
          %v4126 = vpop.permute.xlu0 %4125
          %4127 = vrot.lane.b32.xlu0 %v4116, 31
          %v4128 = vpop.permute.xlu0 %4127
          %vm4129 = vcmask 252928
          %v4130 = vsel %vm4129, %v4122, %v4124
          %v4131 = vsel %vm4129, %v4126, %v4128
          %v4138 = vmul.f32 %v1702, %v4122
          %v4139 = vmul.f32 %v1703, %v4130
          %v4140 = vmul.f32 %v1704, %v4124
          %v4141 = vmul.f32 %v1706, %v4126
          %v4142 = vmul.f32 %v1707, %v4131
          %v4143 = vmul.f32 %v1708, %v4128
          %4150 = vrot.lane.b32.xlu0 %v4138, 46
          %v4151 = vpop.permute.xlu0 %4150
          %4152 = vrot.lane.b32.xlu0 %v4139, 46
          %v4153 = vpop.permute.xlu0 %4152
          %4154 = vrot.lane.b32.xlu0 %v4140, 46
          %v4155 = vpop.permute.xlu0 %4154
          %4156 = vrot.lane.b32.xlu0 %v4141, 46
          %v4157 = vpop.permute.xlu0 %4156
          %4158 = vrot.lane.b32.xlu0 %v4142, 46
          %v4159 = vpop.permute.xlu0 %4158
          %4160 = vrot.lane.b32.xlu0 %v4143, 46
          %v4161 = vpop.permute.xlu0 %4160
          %vm4162 = vcmask 375808
          %v4163 = vsel %vm4162, %v4151, %v4153
          %v4164 = vsel %vm4162, %v4153, %v4155
          %v4165 = vsel %vm4162, %v4157, %v4159
          %v4166 = vsel %vm4162, %v4159, %v4161
          %v4173 = vadd.f32 %v4106, %v4151
          %v4174 = vadd.f32 %v4107, %v4163
          %v4175 = vadd.f32 %v4108, %v4164
          %v4176 = vadd.f32 %v4109, %v4157
          %v4177 = vadd.f32 %v4110, %v4165
          %v4178 = vadd.f32 %v4111, %v4166
          %s4179 = scalar_lea.vmem [#allocation3], 1216
          %v4180 = vld [vmem:[%s4179] sm:$0xff]
          %v4181 = vld [vmem:[%s4179 + $0x8] sm:$0xff]
          %v4182 = vld [vmem:[%s4179 + $0x10] sm:$0xff]
          %v4183 = vld [vmem:[%s4179 + $0x18] sm:$0xff]
          %4188 = vrot.lane.b32.xlu0 %v4180, 32
          %v4189 = vpop.permute.xlu0 %4188
          %4190 = vrot.lane.b32.xlu0 %v4181, 32
          %v4191 = vpop.permute.xlu0 %4190
          %4192 = vrot.lane.b32.xlu0 %v4182, 32
          %v4193 = vpop.permute.xlu0 %4192
          %4194 = vrot.lane.b32.xlu0 %v4183, 32
          %v4195 = vpop.permute.xlu0 %4194
          %vm4196 = vcmask 261120
          %v4197 = vsel %vm4196, %v4189, %v4191
          %v4198 = vsel %vm4196, %v4193, %v4195
          %v4205 = vmul.f32 %v1702, %v4189
          %v4206 = vmul.f32 %v1703, %v4197
          %v4207 = vmul.f32 %v1704, %v4191
          %v4208 = vmul.f32 %v1706, %v4193
          %v4209 = vmul.f32 %v1707, %v4198
          %v4210 = vmul.f32 %v1708, %v4195
          %4217 = vrot.lane.b32.xlu0 %v4205, 45
          %v4218 = vpop.permute.xlu0 %4217
          %4219 = vrot.lane.b32.xlu0 %v4206, 45
          %v4220 = vpop.permute.xlu0 %4219
          %4221 = vrot.lane.b32.xlu0 %v4207, 45
          %v4222 = vpop.permute.xlu0 %4221
          %4223 = vrot.lane.b32.xlu0 %v4208, 45
          %v4224 = vpop.permute.xlu0 %4223
          %4225 = vrot.lane.b32.xlu0 %v4209, 45
          %v4226 = vpop.permute.xlu0 %4225
          %4227 = vrot.lane.b32.xlu0 %v4210, 45
          %v4228 = vpop.permute.xlu0 %4227
          %vm4229 = vcmask 367616
          %v4230 = vsel %vm4229, %v4218, %v4220
          %v4231 = vsel %vm4229, %v4220, %v4222
          %v4232 = vsel %vm4229, %v4224, %v4226
          %v4233 = vsel %vm4229, %v4226, %v4228
          %v4240 = vadd.f32 %v4173, %v4218
          %v4241 = vadd.f32 %v4174, %v4230
          %v4242 = vadd.f32 %v4175, %v4231
          %v4243 = vadd.f32 %v4176, %v4224
          %v4244 = vadd.f32 %v4177, %v4232
          %v4245 = vadd.f32 %v4178, %v4233
          %s4246 = scalar_lea.vmem [#allocation3], 1248
          %v4247 = vld [vmem:[%s4246] sm:$0xff]
          %v4248 = vld [vmem:[%s4246 + $0x8] sm:$0xff]
          %v4249 = vld [vmem:[%s4246 + $0x10] sm:$0xff]
          %v4250 = vld [vmem:[%s4246 + $0x18] sm:$0xff]
          %4255 = vrot.lane.b32.xlu0 %v4247, 33
          %v4256 = vpop.permute.xlu0 %4255
          %4257 = vrot.lane.b32.xlu0 %v4248, 33
          %v4258 = vpop.permute.xlu0 %4257
          %4259 = vrot.lane.b32.xlu0 %v4249, 33
          %v4260 = vpop.permute.xlu0 %4259
          %4261 = vrot.lane.b32.xlu0 %v4250, 33
          %v4262 = vpop.permute.xlu0 %4261
          %vm4263 = vcmask 269312
          %v4264 = vsel %vm4263, %v4256, %v4258
          %v4265 = vsel %vm4263, %v4260, %v4262
          %v4272 = vmul.f32 %v1702, %v4256
          %v4273 = vmul.f32 %v1703, %v4264
          %v4274 = vmul.f32 %v1704, %v4258
          %v4275 = vmul.f32 %v1706, %v4260
          %v4276 = vmul.f32 %v1707, %v4265
          %v4277 = vmul.f32 %v1708, %v4262
          %4284 = vrot.lane.b32.xlu0 %v4272, 44
          %v4285 = vpop.permute.xlu0 %4284
          %4286 = vrot.lane.b32.xlu0 %v4273, 44
          %v4287 = vpop.permute.xlu0 %4286
          %4288 = vrot.lane.b32.xlu0 %v4274, 44
          %v4289 = vpop.permute.xlu0 %4288
          %4290 = vrot.lane.b32.xlu0 %v4275, 44
          %v4291 = vpop.permute.xlu0 %4290
          %4292 = vrot.lane.b32.xlu0 %v4276, 44
          %v4293 = vpop.permute.xlu0 %4292
          %4294 = vrot.lane.b32.xlu0 %v4277, 44
          %v4295 = vpop.permute.xlu0 %4294
          %vm4296 = vcmask 359424
          %v4297 = vsel %vm4296, %v4285, %v4287
          %v4298 = vsel %vm4296, %v4287, %v4289
          %v4299 = vsel %vm4296, %v4291, %v4293
          %v4300 = vsel %vm4296, %v4293, %v4295
          %v4307 = vadd.f32 %v4240, %v4285
          %v4308 = vadd.f32 %v4241, %v4297
          %v4309 = vadd.f32 %v4242, %v4298
          %v4310 = vadd.f32 %v4243, %v4291
          %v4311 = vadd.f32 %v4244, %v4299
          %v4312 = vadd.f32 %v4245, %v4300
          %s4313 = scalar_lea.vmem [#allocation3], 1280
          %v4314 = vld [vmem:[%s4313] sm:$0xff]
          %v4315 = vld [vmem:[%s4313 + $0x8] sm:$0xff]
          %v4316 = vld [vmem:[%s4313 + $0x10] sm:$0xff]
          %v4317 = vld [vmem:[%s4313 + $0x18] sm:$0xff]
          %4322 = vrot.lane.b32.xlu0 %v4314, 34
          %v4323 = vpop.permute.xlu0 %4322
          %4324 = vrot.lane.b32.xlu0 %v4315, 34
          %v4325 = vpop.permute.xlu0 %4324
          %4326 = vrot.lane.b32.xlu0 %v4316, 34
          %v4327 = vpop.permute.xlu0 %4326
          %4328 = vrot.lane.b32.xlu0 %v4317, 34
          %v4329 = vpop.permute.xlu0 %4328
          %vm4330 = vcmask 277504
          %v4331 = vsel %vm4330, %v4323, %v4325
          %v4332 = vsel %vm4330, %v4327, %v4329
          %v4339 = vmul.f32 %v1702, %v4323
          %v4340 = vmul.f32 %v1703, %v4331
          %v4341 = vmul.f32 %v1704, %v4325
          %v4342 = vmul.f32 %v1706, %v4327
          %v4343 = vmul.f32 %v1707, %v4332
          %v4344 = vmul.f32 %v1708, %v4329
          %4351 = vrot.lane.b32.xlu0 %v4339, 43
          %v4352 = vpop.permute.xlu0 %4351
          %4353 = vrot.lane.b32.xlu0 %v4340, 43
          %v4354 = vpop.permute.xlu0 %4353
          %4355 = vrot.lane.b32.xlu0 %v4341, 43
          %v4356 = vpop.permute.xlu0 %4355
          %4357 = vrot.lane.b32.xlu0 %v4342, 43
          %v4358 = vpop.permute.xlu0 %4357
          %4359 = vrot.lane.b32.xlu0 %v4343, 43
          %v4360 = vpop.permute.xlu0 %4359
          %4361 = vrot.lane.b32.xlu0 %v4344, 43
          %v4362 = vpop.permute.xlu0 %4361
          %vm4363 = vcmask 351232
          %v4364 = vsel %vm4363, %v4352, %v4354
          %v4365 = vsel %vm4363, %v4354, %v4356
          %v4366 = vsel %vm4363, %v4358, %v4360
          %v4367 = vsel %vm4363, %v4360, %v4362
          %v4374 = vadd.f32 %v4307, %v4352
          %v4375 = vadd.f32 %v4308, %v4364
          %v4376 = vadd.f32 %v4309, %v4365
          %v4377 = vadd.f32 %v4310, %v4358
          %v4378 = vadd.f32 %v4311, %v4366
          %v4379 = vadd.f32 %v4312, %v4367
          %s4380 = scalar_lea.vmem [#allocation3], 1312
          %v4381 = vld [vmem:[%s4380] sm:$0xff]
          %v4382 = vld [vmem:[%s4380 + $0x8] sm:$0xff]
          %v4383 = vld [vmem:[%s4380 + $0x10] sm:$0xff]
          %v4384 = vld [vmem:[%s4380 + $0x18] sm:$0xff]
          %4389 = vrot.lane.b32.xlu0 %v4381, 35
          %v4390 = vpop.permute.xlu0 %4389
          %4391 = vrot.lane.b32.xlu0 %v4382, 35
          %v4392 = vpop.permute.xlu0 %4391
          %4393 = vrot.lane.b32.xlu0 %v4383, 35
          %v4394 = vpop.permute.xlu0 %4393
          %4395 = vrot.lane.b32.xlu0 %v4384, 35
          %v4396 = vpop.permute.xlu0 %4395
          %vm4397 = vcmask 285696
          %v4398 = vsel %vm4397, %v4390, %v4392
          %v4399 = vsel %vm4397, %v4394, %v4396
          %v4406 = vmul.f32 %v1702, %v4390
          %v4407 = vmul.f32 %v1703, %v4398
          %v4408 = vmul.f32 %v1704, %v4392
          %v4409 = vmul.f32 %v1706, %v4394
          %v4410 = vmul.f32 %v1707, %v4399
          %v4411 = vmul.f32 %v1708, %v4396
          %4418 = vrot.lane.b32.xlu0 %v4406, 42
          %v4419 = vpop.permute.xlu0 %4418
          %4420 = vrot.lane.b32.xlu0 %v4407, 42
          %v4421 = vpop.permute.xlu0 %4420
          %4422 = vrot.lane.b32.xlu0 %v4408, 42
          %v4423 = vpop.permute.xlu0 %4422
          %4424 = vrot.lane.b32.xlu0 %v4409, 42
          %v4425 = vpop.permute.xlu0 %4424
          %4426 = vrot.lane.b32.xlu0 %v4410, 42
          %v4427 = vpop.permute.xlu0 %4426
          %4428 = vrot.lane.b32.xlu0 %v4411, 42
          %v4429 = vpop.permute.xlu0 %4428
          %vm4430 = vcmask 343040
          %v4431 = vsel %vm4430, %v4419, %v4421
          %v4432 = vsel %vm4430, %v4421, %v4423
          %v4433 = vsel %vm4430, %v4425, %v4427
          %v4434 = vsel %vm4430, %v4427, %v4429
          %v4441 = vadd.f32 %v4374, %v4419
          %v4442 = vadd.f32 %v4375, %v4431
          %v4443 = vadd.f32 %v4376, %v4432
          %v4444 = vadd.f32 %v4377, %v4425
          %v4445 = vadd.f32 %v4378, %v4433
          %v4446 = vadd.f32 %v4379, %v4434
          %s4447 = scalar_lea.vmem [#allocation3], 1344
          %v4448 = vld [vmem:[%s4447] sm:$0xff]
          %v4449 = vld [vmem:[%s4447 + $0x8] sm:$0xff]
          %v4450 = vld [vmem:[%s4447 + $0x10] sm:$0xff]
          %v4451 = vld [vmem:[%s4447 + $0x18] sm:$0xff]
          %4456 = vrot.lane.b32.xlu0 %v4448, 45
          %v4457 = vpop.permute.xlu0 %4456
          %4458 = vrot.lane.b32.xlu0 %v4449, 45
          %v4459 = vpop.permute.xlu0 %4458
          %4460 = vrot.lane.b32.xlu0 %v4450, 45
          %v4461 = vpop.permute.xlu0 %4460
          %4462 = vrot.lane.b32.xlu0 %v4451, 45
          %v4463 = vpop.permute.xlu0 %4462
          %v4464 = vsel %vm4229, %v4457, %v4459
          %v4465 = vsel %vm4229, %v4461, %v4463
          %v4472 = vmul.f32 %v1702, %v4457
          %v4473 = vmul.f32 %v1703, %v4464
          %v4474 = vmul.f32 %v1704, %v4459
          %v4475 = vmul.f32 %v1706, %v4461
          %v4476 = vmul.f32 %v1707, %v4465
          %v4477 = vmul.f32 %v1708, %v4463
          %4484 = vrot.lane.b32.xlu0 %v4472, 32
          %v4485 = vpop.permute.xlu0 %4484
          %4486 = vrot.lane.b32.xlu0 %v4473, 32
          %v4487 = vpop.permute.xlu0 %4486
          %4488 = vrot.lane.b32.xlu0 %v4474, 32
          %v4489 = vpop.permute.xlu0 %4488
          %4490 = vrot.lane.b32.xlu0 %v4475, 32
          %v4491 = vpop.permute.xlu0 %4490
          %4492 = vrot.lane.b32.xlu0 %v4476, 32
          %v4493 = vpop.permute.xlu0 %4492
          %4494 = vrot.lane.b32.xlu0 %v4477, 32
          %v4495 = vpop.permute.xlu0 %4494
          %v4496 = vsel %vm4196, %v4485, %v4487
          %v4497 = vsel %vm4196, %v4487, %v4489
          %v4498 = vsel %vm4196, %v4491, %v4493
          %v4499 = vsel %vm4196, %v4493, %v4495
          %v4506 = vadd.f32 %v4441, %v4485
          %v4507 = vadd.f32 %v4442, %v4496
          %v4508 = vadd.f32 %v4443, %v4497
          %v4509 = vadd.f32 %v4444, %v4491
          %v4510 = vadd.f32 %v4445, %v4498
          %v4511 = vadd.f32 %v4446, %v4499
          %s4512 = scalar_lea.vmem [#allocation3], 1376
          %v4513 = vld [vmem:[%s4512] sm:$0xff]
          %v4514 = vld [vmem:[%s4512 + $0x8] sm:$0xff]
          %v4515 = vld [vmem:[%s4512 + $0x10] sm:$0xff]
          %v4516 = vld [vmem:[%s4512 + $0x18] sm:$0xff]
          %4521 = vrot.lane.b32.xlu0 %v4513, 46
          %v4522 = vpop.permute.xlu0 %4521
          %4523 = vrot.lane.b32.xlu0 %v4514, 46
          %v4524 = vpop.permute.xlu0 %4523
          %4525 = vrot.lane.b32.xlu0 %v4515, 46
          %v4526 = vpop.permute.xlu0 %4525
          %4527 = vrot.lane.b32.xlu0 %v4516, 46
          %v4528 = vpop.permute.xlu0 %4527
          %v4529 = vsel %vm4162, %v4522, %v4524
          %v4530 = vsel %vm4162, %v4526, %v4528
          %v4537 = vmul.f32 %v1702, %v4522
          %v4538 = vmul.f32 %v1703, %v4529
          %v4539 = vmul.f32 %v1704, %v4524
          %v4540 = vmul.f32 %v1706, %v4526
          %v4541 = vmul.f32 %v1707, %v4530
          %v4542 = vmul.f32 %v1708, %v4528
          %4549 = vrot.lane.b32.xlu0 %v4537, 31
          %v4550 = vpop.permute.xlu0 %4549
          %4551 = vrot.lane.b32.xlu0 %v4538, 31
          %v4552 = vpop.permute.xlu0 %4551
          %4553 = vrot.lane.b32.xlu0 %v4539, 31
          %v4554 = vpop.permute.xlu0 %4553
          %4555 = vrot.lane.b32.xlu0 %v4540, 31
          %v4556 = vpop.permute.xlu0 %4555
          %4557 = vrot.lane.b32.xlu0 %v4541, 31
          %v4558 = vpop.permute.xlu0 %4557
          %4559 = vrot.lane.b32.xlu0 %v4542, 31
          %v4560 = vpop.permute.xlu0 %4559
          %v4561 = vsel %vm4129, %v4550, %v4552
          %v4562 = vsel %vm4129, %v4552, %v4554
          %v4563 = vsel %vm4129, %v4556, %v4558
          %v4564 = vsel %vm4129, %v4558, %v4560
          %v4571 = vadd.f32 %v4506, %v4550
          %v4572 = vadd.f32 %v4507, %v4561
          %v4573 = vadd.f32 %v4508, %v4562
          %v4574 = vadd.f32 %v4509, %v4556
          %v4575 = vadd.f32 %v4510, %v4563
          %v4576 = vadd.f32 %v4511, %v4564
          %s4577 = scalar_lea.vmem [#allocation3], 1408
          %v4578 = vld [vmem:[%s4577] sm:$0xff]
          %v4579 = vld [vmem:[%s4577 + $0x8] sm:$0xff]
          %v4580 = vld [vmem:[%s4577 + $0x10] sm:$0xff]
          %v4581 = vld [vmem:[%s4577 + $0x18] sm:$0xff]
          %4586 = vrot.lane.b32.xlu0 %v4578, 47
          %v4587 = vpop.permute.xlu0 %4586
          %4588 = vrot.lane.b32.xlu0 %v4579, 47
          %v4589 = vpop.permute.xlu0 %4588
          %4590 = vrot.lane.b32.xlu0 %v4580, 47
          %v4591 = vpop.permute.xlu0 %4590
          %4592 = vrot.lane.b32.xlu0 %v4581, 47
          %v4593 = vpop.permute.xlu0 %4592
          %v4594 = vsel %vm4095, %v4587, %v4589
          %v4595 = vsel %vm4095, %v4591, %v4593
          %v4602 = vmul.f32 %v1702, %v4587
          %v4603 = vmul.f32 %v1703, %v4594
          %v4604 = vmul.f32 %v1704, %v4589
          %v4605 = vmul.f32 %v1706, %v4591
          %v4606 = vmul.f32 %v1707, %v4595
          %v4607 = vmul.f32 %v1708, %v4593
          %4614 = vrot.lane.b32.xlu0 %v4602, 30
          %v4615 = vpop.permute.xlu0 %4614
          %4616 = vrot.lane.b32.xlu0 %v4603, 30
          %v4617 = vpop.permute.xlu0 %4616
          %4618 = vrot.lane.b32.xlu0 %v4604, 30
          %v4619 = vpop.permute.xlu0 %4618
          %4620 = vrot.lane.b32.xlu0 %v4605, 30
          %v4621 = vpop.permute.xlu0 %4620
          %4622 = vrot.lane.b32.xlu0 %v4606, 30
          %v4623 = vpop.permute.xlu0 %4622
          %4624 = vrot.lane.b32.xlu0 %v4607, 30
          %v4625 = vpop.permute.xlu0 %4624
          %v4626 = vsel %vm4062, %v4615, %v4617
          %v4627 = vsel %vm4062, %v4617, %v4619
          %v4628 = vsel %vm4062, %v4621, %v4623
          %v4629 = vsel %vm4062, %v4623, %v4625
          %v4636 = vadd.f32 %v4571, %v4615
          %v4637 = vadd.f32 %v4572, %v4626
          %v4638 = vadd.f32 %v4573, %v4627
          %v4639 = vadd.f32 %v4574, %v4621
          %v4640 = vadd.f32 %v4575, %v4628
          %v4641 = vadd.f32 %v4576, %v4629
          %s4642 = scalar_lea.vmem [#allocation3], 1440
          %v4643 = vld [vmem:[%s4642] sm:$0xff]
          %v4644 = vld [vmem:[%s4642 + $0x8] sm:$0xff]
          %v4645 = vld [vmem:[%s4642 + $0x10] sm:$0xff]
          %v4646 = vld [vmem:[%s4642 + $0x18] sm:$0xff]
          %4651 = vrot.lane.b32.xlu0 %v4643, 48
          %v4652 = vpop.permute.xlu0 %4651
          %4653 = vrot.lane.b32.xlu0 %v4644, 48
          %v4654 = vpop.permute.xlu0 %4653
          %4655 = vrot.lane.b32.xlu0 %v4645, 48
          %v4656 = vpop.permute.xlu0 %4655
          %4657 = vrot.lane.b32.xlu0 %v4646, 48
          %v4658 = vpop.permute.xlu0 %4657
          %v4659 = vsel %vm4028, %v4652, %v4654
          %v4660 = vsel %vm4028, %v4656, %v4658
          %v4667 = vmul.f32 %v1702, %v4652
          %v4668 = vmul.f32 %v1703, %v4659
          %v4669 = vmul.f32 %v1704, %v4654
          %v4670 = vmul.f32 %v1706, %v4656
          %v4671 = vmul.f32 %v1707, %v4660
          %v4672 = vmul.f32 %v1708, %v4658
          %4679 = vrot.lane.b32.xlu0 %v4667, 29
          %v4680 = vpop.permute.xlu0 %4679
          %4681 = vrot.lane.b32.xlu0 %v4668, 29
          %v4682 = vpop.permute.xlu0 %4681
          %4683 = vrot.lane.b32.xlu0 %v4669, 29
          %v4684 = vpop.permute.xlu0 %4683
          %4685 = vrot.lane.b32.xlu0 %v4670, 29
          %v4686 = vpop.permute.xlu0 %4685
          %4687 = vrot.lane.b32.xlu0 %v4671, 29
          %v4688 = vpop.permute.xlu0 %4687
          %4689 = vrot.lane.b32.xlu0 %v4672, 29
          %v4690 = vpop.permute.xlu0 %4689
          %v4691 = vsel %vm3995, %v4680, %v4682
          %v4692 = vsel %vm3995, %v4682, %v4684
          %v4693 = vsel %vm3995, %v4686, %v4688
          %v4694 = vsel %vm3995, %v4688, %v4690
          %v4701 = vadd.f32 %v4636, %v4680
          %v4702 = vadd.f32 %v4637, %v4691
          %v4703 = vadd.f32 %v4638, %v4692
          %v4704 = vadd.f32 %v4639, %v4686
          %v4705 = vadd.f32 %v4640, %v4693
          %v4706 = vadd.f32 %v4641, %v4694
          %s4707 = scalar_lea.vmem [#allocation3], 1472
          %v4708 = vld [vmem:[%s4707] sm:$0xff]
          %v4709 = vld [vmem:[%s4707 + $0x8] sm:$0xff]
          %v4710 = vld [vmem:[%s4707 + $0x10] sm:$0xff]
          %v4711 = vld [vmem:[%s4707 + $0x18] sm:$0xff]
          %4716 = vrot.lane.b32.xlu0 %v4708, 49
          %v4717 = vpop.permute.xlu0 %4716
          %4718 = vrot.lane.b32.xlu0 %v4709, 49
          %v4719 = vpop.permute.xlu0 %4718
          %4720 = vrot.lane.b32.xlu0 %v4710, 49
          %v4721 = vpop.permute.xlu0 %4720
          %4722 = vrot.lane.b32.xlu0 %v4711, 49
          %v4723 = vpop.permute.xlu0 %4722
          %vm4724 = vcmask 400384
          %v4725 = vsel %vm4724, %v4717, %v4719
          %v4726 = vsel %vm4724, %v4721, %v4723
          %v4733 = vmul.f32 %v1702, %v4717
          %v4734 = vmul.f32 %v1703, %v4725
          %v4735 = vmul.f32 %v1704, %v4719
          %v4736 = vmul.f32 %v1706, %v4721
          %v4737 = vmul.f32 %v1707, %v4726
          %v4738 = vmul.f32 %v1708, %v4723
          %4745 = vrot.lane.b32.xlu0 %v4733, 28
          %v4746 = vpop.permute.xlu0 %4745
          %4747 = vrot.lane.b32.xlu0 %v4734, 28
          %v4748 = vpop.permute.xlu0 %4747
          %4749 = vrot.lane.b32.xlu0 %v4735, 28
          %v4750 = vpop.permute.xlu0 %4749
          %4751 = vrot.lane.b32.xlu0 %v4736, 28
          %v4752 = vpop.permute.xlu0 %4751
          %4753 = vrot.lane.b32.xlu0 %v4737, 28
          %v4754 = vpop.permute.xlu0 %4753
          %4755 = vrot.lane.b32.xlu0 %v4738, 28
          %v4756 = vpop.permute.xlu0 %4755
          %vm4757 = vcmask 228352
          %v4758 = vsel %vm4757, %v4746, %v4748
          %v4759 = vsel %vm4757, %v4748, %v4750
          %v4760 = vsel %vm4757, %v4752, %v4754
          %v4761 = vsel %vm4757, %v4754, %v4756
          %v4768 = vadd.f32 %v4701, %v4746
          %v4769 = vadd.f32 %v4702, %v4758
          %v4770 = vadd.f32 %v4703, %v4759
          %v4771 = vadd.f32 %v4704, %v4752
          %v4772 = vadd.f32 %v4705, %v4760
          %v4773 = vadd.f32 %v4706, %v4761
          %s4774 = scalar_lea.vmem [#allocation3], 1504
          %v4775 = vld [vmem:[%s4774] sm:$0xff]
          %v4776 = vld [vmem:[%s4774 + $0x8] sm:$0xff]
          %v4777 = vld [vmem:[%s4774 + $0x10] sm:$0xff]
          %v4778 = vld [vmem:[%s4774 + $0x18] sm:$0xff]
          %4783 = vrot.lane.b32.xlu0 %v4775, 50
          %v4784 = vpop.permute.xlu0 %4783
          %4785 = vrot.lane.b32.xlu0 %v4776, 50
          %v4786 = vpop.permute.xlu0 %4785
          %4787 = vrot.lane.b32.xlu0 %v4777, 50
          %v4788 = vpop.permute.xlu0 %4787
          %4789 = vrot.lane.b32.xlu0 %v4778, 50
          %v4790 = vpop.permute.xlu0 %4789
          %vm4791 = vcmask 408576
          %v4792 = vsel %vm4791, %v4784, %v4786
          %v4793 = vsel %vm4791, %v4788, %v4790
          %v4800 = vmul.f32 %v1702, %v4784
          %v4801 = vmul.f32 %v1703, %v4792
          %v4802 = vmul.f32 %v1704, %v4786
          %v4803 = vmul.f32 %v1706, %v4788
          %v4804 = vmul.f32 %v1707, %v4793
          %v4805 = vmul.f32 %v1708, %v4790
          %4812 = vrot.lane.b32.xlu0 %v4800, 27
          %v4813 = vpop.permute.xlu0 %4812
          %4814 = vrot.lane.b32.xlu0 %v4801, 27
          %v4815 = vpop.permute.xlu0 %4814
          %4816 = vrot.lane.b32.xlu0 %v4802, 27
          %v4817 = vpop.permute.xlu0 %4816
          %4818 = vrot.lane.b32.xlu0 %v4803, 27
          %v4819 = vpop.permute.xlu0 %4818
          %4820 = vrot.lane.b32.xlu0 %v4804, 27
          %v4821 = vpop.permute.xlu0 %4820
          %4822 = vrot.lane.b32.xlu0 %v4805, 27
          %v4823 = vpop.permute.xlu0 %4822
          %vm4824 = vcmask 220160
          %v4825 = vsel %vm4824, %v4813, %v4815
          %v4826 = vsel %vm4824, %v4815, %v4817
          %v4827 = vsel %vm4824, %v4819, %v4821
          %v4828 = vsel %vm4824, %v4821, %v4823
          %v4835 = vadd.f32 %v4768, %v4813
          %v4836 = vadd.f32 %v4769, %v4825
          %v4837 = vadd.f32 %v4770, %v4826
          %v4838 = vadd.f32 %v4771, %v4819
          %v4839 = vadd.f32 %v4772, %v4827
          %v4840 = vadd.f32 %v4773, %v4828
          %s4841 = scalar_lea.vmem [#allocation3], 1536
          %v4842 = vld [vmem:[%s4841] sm:$0xff]
          %v4843 = vld [vmem:[%s4841 + $0x8] sm:$0xff]
          %v4844 = vld [vmem:[%s4841 + $0x10] sm:$0xff]
          %v4845 = vld [vmem:[%s4841 + $0x18] sm:$0xff]
          %4850 = vrot.lane.b32.xlu0 %v4842, 51
          %v4851 = vpop.permute.xlu0 %4850
          %4852 = vrot.lane.b32.xlu0 %v4843, 51
          %v4853 = vpop.permute.xlu0 %4852
          %4854 = vrot.lane.b32.xlu0 %v4844, 51
          %v4855 = vpop.permute.xlu0 %4854
          %4856 = vrot.lane.b32.xlu0 %v4845, 51
          %v4857 = vpop.permute.xlu0 %4856
          %vm4858 = vcmask 416768
          %v4859 = vsel %vm4858, %v4851, %v4853
          %v4860 = vsel %vm4858, %v4855, %v4857
          %v4867 = vmul.f32 %v1702, %v4851
          %v4868 = vmul.f32 %v1703, %v4859
          %v4869 = vmul.f32 %v1704, %v4853
          %v4870 = vmul.f32 %v1706, %v4855
          %v4871 = vmul.f32 %v1707, %v4860
          %v4872 = vmul.f32 %v1708, %v4857
          %4879 = vrot.lane.b32.xlu0 %v4867, 26
          %v4880 = vpop.permute.xlu0 %4879
          %4881 = vrot.lane.b32.xlu0 %v4868, 26
          %v4882 = vpop.permute.xlu0 %4881
          %4883 = vrot.lane.b32.xlu0 %v4869, 26
          %v4884 = vpop.permute.xlu0 %4883
          %4885 = vrot.lane.b32.xlu0 %v4870, 26
          %v4886 = vpop.permute.xlu0 %4885
          %4887 = vrot.lane.b32.xlu0 %v4871, 26
          %v4888 = vpop.permute.xlu0 %4887
          %4889 = vrot.lane.b32.xlu0 %v4872, 26
          %v4890 = vpop.permute.xlu0 %4889
          %vm4891 = vcmask 211968
          %v4892 = vsel %vm4891, %v4880, %v4882
          %v4893 = vsel %vm4891, %v4882, %v4884
          %v4894 = vsel %vm4891, %v4886, %v4888
          %v4895 = vsel %vm4891, %v4888, %v4890
          %v4902 = vadd.f32 %v4835, %v4880
          %v4903 = vadd.f32 %v4836, %v4892
          %v4904 = vadd.f32 %v4837, %v4893
          %v4905 = vadd.f32 %v4838, %v4886
          %v4906 = vadd.f32 %v4839, %v4894
          %v4907 = vadd.f32 %v4840, %v4895
          %4914 = vrot.lane.b32.xlu0 %v4902, 51
          %v4915 = vpop.permute.xlu0 %4914
          %4916 = vrot.lane.b32.xlu0 %v4903, 51
          %v4917 = vpop.permute.xlu0 %4916
          %4918 = vrot.lane.b32.xlu0 %v4904, 51
          %v4919 = vpop.permute.xlu0 %4918
          %4920 = vrot.lane.b32.xlu0 %v4905, 51
          %v4921 = vpop.permute.xlu0 %4920
          %4922 = vrot.lane.b32.xlu0 %v4906, 51
          %v4923 = vpop.permute.xlu0 %4922
          %4924 = vrot.lane.b32.xlu0 %v4907, 51
          %v4925 = vpop.permute.xlu0 %4924
          %v4926 = vsel %vm4858, %v4915, %v4917
          %v4927 = vsel %vm4858, %v4917, %v4919
          %v4928 = vsel %vm4858, %v4921, %v4923
          %v4929 = vsel %vm4858, %v4923, %v4925
          %s4934 = smul.addr %s1690, 8
          %s4935 = scalar_lea.vmem %s277, %s4934 [#allocation5]
          %4936 = vst [vmem:[%s4935] sm:$0xff] %v4926
          %4937 = vst [vmem:[%s4935 + $0x8] sm:$0xff] %v4927
          %4938 = vst [vmem:[%s4935 + $0x10] sm:$0xff] %v4928
          %4939 = vst [vmem:[%s4935 + $0x18] sm:$0xff] %v4929
        $region68: #{repcpe_forward.1} parent=54 // loop_footer
          %s1689 = sadd.s32 1, %s1685
        $region69: #{repcpe_forward.1} parent=54 // loop_footer_branch
          %1684 = sbr.rel target = $region65
        $region70: #{repcpe_forward.1} parent=54 // loop_exit
          _
        %s4940 = sand.u32 %s138, 1
        %s4941 = sand.u32 %s138, 1
        %s4942 = smul.addr %s4941, 64
        %s4943 = scalar_lea.vmem [#allocation5], %s4942
        // Predicated region
        $region71: #{repcpe_forward.1} parent=54 // pred_check
          %p4944 = pneg %p148
        $region72: #{repcpe_forward.1} parent=54 // pred_check_branch
          %4946 = sbr.rel (%p4944) target = $region74
        $region73: #{repcpe_forward.1} parent=54 // pred_region
          %s4947 = smul.u32 2, %s20
          %s4948 = smul.u32 2, %s19
          %s4949 = smul.addr %s4948, 2
          %s4950 = smul.addr %s4947, 8
          %s4951 = sadd.s32 %s4949, %s4950
          %s4952 = smul.addr %s4951, 8
          %s4953 = scalar_lea.vmem %s4, %s4952
          // Predicated region
          $region75: #{repcpe_forward.1} parent=73 // pred_check
            _
          $region76: #{repcpe_forward.1} parent=73 // pred_check_branch
            %4955 = sbr.rel (0) target = $region78
          $region77: #{repcpe_forward.1} parent=73 // pred_region
            // Predicated region
            $region79: #{repcpe_forward.1} parent=77 // pred_check
              _
            $region80: #{repcpe_forward.1} parent=77 // pred_check_branch
              %4957 = sbr.rel (0) target = $region82
            $region81: #{repcpe_forward.1} parent=77 // pred_region
              loop: start=0, step=1, limit=1
              $region83: #{repcpe_forward.1} parent=81 // loop_pre_header
                _
              $region84: #{repcpe_forward.1} parent=81 // loop_header
                %s4959 = sphi 0, %s4963
                %p4960 = scmp.ge.s32.totalorder %s4959, 1
                %s4964 = sphi %s4943, %s4943
                %s4965 = sphi %s4953, %s4953
              $region85: #{repcpe_forward.1} parent=81 // loop_header_branch
                %4962 = sbr.rel (%p4960) target = $region89
              $region86: #{repcpe_forward.1} parent=81 // loop_body
                %v4966 = vld [vmem:[%s4964] sm:$0xff]
                %4967 = vst [vmem:[%s4965] sm:$0xff] %v4966
                %v4968 = vld [vmem:[%s4964 + $0x8] sm:$0xff]
                %4969 = vst [vmem:[%s4965 + $0x8] sm:$0xff] %v4968
                %v4970 = vld [vmem:[%s4964 + $0x10] sm:$0xff]
                %4971 = vst [vmem:[%s4965 + $0x10] sm:$0xff] %v4970
                %v4972 = vld [vmem:[%s4964 + $0x18] sm:$0xff]
                %4973 = vst [vmem:[%s4965 + $0x18] sm:$0xff] %v4972
                %v4974 = vld [vmem:[%s4964 + $0x20] sm:$0xff]
                %4975 = vst [vmem:[%s4965 + $0x40] sm:$0xff] %v4974
                %v4976 = vld [vmem:[%s4964 + $0x28] sm:$0xff]
                %4977 = vst [vmem:[%s4965 + $0x48] sm:$0xff] %v4976
                %v4978 = vld [vmem:[%s4964 + $0x30] sm:$0xff]
                %4979 = vst [vmem:[%s4965 + $0x50] sm:$0xff] %v4978
                %v4980 = vld [vmem:[%s4964 + $0x38] sm:$0xff]
                %4981 = vst [vmem:[%s4965 + $0x58] sm:$0xff] %v4980
              $region87: #{repcpe_forward.1} parent=81 // loop_footer
                %s4963 = sadd.s32 1, %s4959
              $region88: #{repcpe_forward.1} parent=81 // loop_footer_branch
                %4958 = sbr.rel target = $region84
              $region89: #{repcpe_forward.1} parent=81 // loop_exit
                _
            $region82: #{repcpe_forward.1} parent=77 // pred_fallthru
              _
            // Predicated region
            $region90: #{repcpe_forward.1} parent=77 // pred_check
              _
            $region91: #{repcpe_forward.1} parent=77 // pred_check_branch
              %4983 = sbr.rel target = $region93
            $region92: #{repcpe_forward.1} parent=77 // pred_region
              _
            $region93: #{repcpe_forward.1} parent=77 // pred_fallthru
              _
          $region78: #{repcpe_forward.1} parent=73 // pred_fallthru
            _
          %4984 = vnop
        $region74: #{repcpe_forward.1} parent=54 // pred_fallthru
          _
      $region55: #{repcpe_forward.1} parent=5 // pred_fallthru
        _
      %p4985 = scmp.le.s32.totalorder 2, %s10
      // Predicated region
      $region94: #{repcpe_forward.1} parent=5 // pred_check
        %p4986 = pneg %p4985
      $region95: #{repcpe_forward.1} parent=5 // pred_check_branch
        %4988 = sbr.rel (%p4986) target = $region97
      $region96: #{repcpe_forward.1} parent=5 // pred_region
        %s4989 = ssub.s32 %s10, 2
        // Predicated region
        $region98: #{repcpe_forward.1} parent=96 // pred_check
          %p4990 = pneg %p154
        $region99: #{repcpe_forward.1} parent=96 // pred_check_branch
          %4992 = sbr.rel (%p4990) target = $region101
        $region100: #{repcpe_forward.1} parent=96 // pred_region
          %s4993 = sand.u32 %s139, 1
          %s4994 = sand.u32 %s139, 1
          %s4995 = smul.addr %s4994, 64
          %s4996 = scalar_lea.vmem [#allocation5], %s4995
        $region101: #{repcpe_forward.1} parent=96 // pred_fallthru
          _
      $region97: #{repcpe_forward.1} parent=5 // pred_fallthru
        _
    $region6: #{repcpe_forward.1} parent=1 // loop_footer
      %s14 = sadd.s32 1, %s10
    $region7: #{repcpe_forward.1} parent=1 // loop_footer_branch
      %9 = sbr.rel target = $region3
    $region8: #{repcpe_forward.1} parent=1 // loop_exit
      _

</llo_original>
